<compile_context>
chip_gen: v7x
topology: tpu7x:2x2x1
jax: 0.10.0
libtpu: 0.0.40
codegen_flags: <defaults>
</compile_context>

<pallas_src>
import functools
import jax
import jax.numpy as jnp
from jax import lax
from jax.experimental import pallas as pl
from jax.experimental.pallas import tpu as pltpu


# ----------------------------------------------------------------------------
# In-kernel helpers (operate on values, not refs)
# ----------------------------------------------------------------------------
def _softmax_rows(s):
    """Row softmax with EUP reciprocal + one Newton step (~f32 accuracy)."""
    m = jnp.max(s, axis=-1, keepdims=True)
    p = jnp.exp(s - m)
    denom = jnp.sum(p, axis=-1, keepdims=True)
    inv = pl.reciprocal(denom, approx=True)      # EUP slot (VALU stays free)
    inv = inv * (2.0 - denom * inv)              # Newton refinement
    return p * inv


def _attend(q, k, v, bias, wo, bo, n_heads, head_dim):
    """Multi-head attention core on already-projected Q/K/V values.

    q: [R, D], k/v: [C, D], bias: [R, C] additive (block-diag across batches).
    Per-head scores via dot_general contracting last dims (no written transpose);
    per-head PV results are lane-concatenated and projected with ONE Wo dot.
    """
    scale = 1.0 / (head_dim ** 0.5)
    dn = (((1,), (1,)), ((), ()))
    heads = []
    for h in range(n_heads):                     # static unroll (tiny heads)
        sl = slice(h * head_dim, (h + 1) * head_dim)
        s = lax.dot_general(q[:, sl], k[:, sl], dn,
                            preferred_element_type=jnp.float32)
        p = _softmax_rows(s * scale + bias)
        heads.append(jnp.dot(p, v[:, sl], preferred_element_type=jnp.float32))
    o = jnp.concatenate(heads, axis=-1)          # lane concat -> [R, D]
    return jnp.dot(o, wo, preferred_element_type=jnp.float32) + bo


def _layernorm(y, gamma, beta, eps):
    mu = jnp.mean(y, axis=-1, keepdims=True)
    var = jnp.mean(jnp.square(y - mu), axis=-1, keepdims=True)
    return (y - mu) * lax.rsqrt(var + eps) * gamma + beta


# ----------------------------------------------------------------------------
# Single fused decoder-layer kernel (one grid step; batch folded into rows)
# ----------------------------------------------------------------------------
def _decoder_layer_kernel(D, n_heads, head_dim, eps,
                          x_ref, mem_ref, sbias_ref, cbias_ref,
                          wqkv_s, bqkv_s, wo_s, bo_s,
                          wq_c, bq_c, wkv_c, bkv_c, wo_c, bo_c,
                          g1, be1, g2, be2,
                          w1, bf1, w2, bf2,
                          out_ref):
    x = x_ref[...]            # [B*Sq, D]
    mem = mem_ref[...]        # [B*Sk, D]

    # --- self-attention (fused QKV projection) + residual + LayerNorm1 ---
    qkv = jnp.dot(x, wqkv_s[...], preferred_element_type=jnp.float32) + bqkv_s[...]
    q, k, v = qkv[:, :D], qkv[:, D:2 * D], qkv[:, 2 * D:3 * D]
    sa = _attend(q, k, v, sbias_ref[...], wo_s[...], bo_s[...], n_heads, head_dim)
    y = _layernorm(x + sa, g1[...], be1[...], eps)

    # --- cross-attention (fused KV projection on memory) + residual + LN2 ---
    qc = jnp.dot(y, wq_c[...], preferred_element_type=jnp.float32) + bq_c[...]
    kvc = jnp.dot(mem, wkv_c[...], preferred_element_type=jnp.float32) + bkv_c[...]
    kc, vc = kvc[:, :D], kvc[:, D:2 * D]
    ca = _attend(qc, kc, vc, cbias_ref[...], wo_c[...], bo_c[...], n_heads, head_dim)
    y = _layernorm(y + ca, g2[...], be2[...], eps)

    # --- feed-forward (dropout = identity in eval mode) ---
    h = jnp.maximum(
        jnp.dot(y, w1[...], preferred_element_type=jnp.float32) + bf1[...], 0.0)
    out_ref[...] = (jnp.dot(h, w2[...], preferred_element_type=jnp.float32)
                    + bf2[...])


def _block_diag_bias(mask, B, Sq, Sk):
    """Additive attention bias over folded-batch rows.

    Within-batch blocks carry the user mask as 0 / -1e9; cross-batch blocks get
    -2e9 so they vanish in softmax even if a row is fully user-masked.
    Computed once on the host side (outside the kernel).
    """
    if mask is None:
        blk = jnp.zeros((Sq, Sk), jnp.float32)
    else:
        blk = jnp.where(mask == 0, jnp.float32(-1e9), jnp.float32(0.0))
    eye = jnp.kron(jnp.eye(B, dtype=jnp.float32),
                   jnp.ones((Sq, Sk), jnp.float32))
    return jnp.kron(jnp.eye(B, dtype=jnp.float32), blk) \
        + (1.0 - eye) * jnp.float32(-2e9)


def decoder_layer_pallas(tgt, memory, tgt_mask, memory_mask, params, n_heads,
                         eps=1e-5):
    B, Sq, D = tgt.shape
    Sk = memory.shape[1]
    head_dim = D // n_heads

    # Fold batch into rows: one grid step, full sublane occupancy on every dot.
    x = tgt.reshape(B * Sq, D).astype(jnp.float32)
    mem = memory.reshape(B * Sk, D).astype(jnp.float32)

    # Hoisted block-diagonal additive attention biases.
    sbias = _block_diag_bias(tgt_mask, B, Sq, Sq)
    cbias = _block_diag_bias(memory_mask, B, Sq, Sk)

    # Fused projection weights (packed once in the wrapper).
    swq, sbq, swk, sbk, swv, sbv, swo, sbo = params["self_attn"]
    wqkv_s = jnp.concatenate([swq, swk, swv], axis=1)    # [D, 3D]
    bqkv_s = jnp.concatenate([sbq, sbk, sbv], axis=1)    # [1, 3D]
    cwq, cbq, cwk, cbk, cwv, cbv, cwo, cbo = params["cross_attn"]
    wkv_c = jnp.concatenate([cwk, cwv], axis=1)          # [D, 2D]
    bkv_c = jnp.concatenate([cbk, cbv], axis=1)          # [1, 2D]

    g1, be1 = params["norm1"]
    g2, be2 = params["norm2"]
    w1, bf1, w2, bf2 = params["ffn"]

    operands = (x, mem, sbias, cbias,
                wqkv_s, bqkv_s, swo, sbo,
                cwq, cbq, wkv_c, bkv_c, cwo, cbo,
                g1, be1, g2, be2,
                w1, bf1, w2, bf2)

    zero2 = lambda i: (0, 0)                 # everything is 2-D, full-block
    in_specs = [pl.BlockSpec(a.shape, zero2) for a in operands]

    kernel = functools.partial(_decoder_layer_kernel, D, n_heads, head_dim, eps)
    out2d = pl.pallas_call(
        kernel,
        out_shape=jax.ShapeDtypeStruct((B * Sq, D), jnp.float32),
        grid=(1,),
        in_specs=in_specs,
        out_specs=pl.BlockSpec((B * Sq, D), zero2),
        compiler_params=pltpu.CompilerParams(
            dimension_semantics=("arbitrary",),
            vmem_limit_bytes=32 * 1024 * 1024,
        ),
    )(*operands)
    return out2d.reshape(B, Sq, D)


# ----------------------------------------------------------------------------
# Pure-JAX reference (matches the PyTorch forward in eval mode)
# ----------------------------------------------------------------------------
def _mha_ref(x, kv, mask, params, n_heads):
    wq, bq, wk, bk, wv, bv, wo, bo = params
    B, Sq, D = x.shape
    Sk = kv.shape[1]
    dh = D // n_heads
    q = (x @ wq + bq).reshape(B, Sq, n_heads, dh).transpose(0, 2, 1, 3)
    k = (kv @ wk + bk).reshape(B, Sk, n_heads, dh).transpose(0, 2, 1, 3)
    v = (kv @ wv + bv).reshape(B, Sk, n_heads, dh).transpose(0, 2, 1, 3)
    s = jnp.einsum("bhqd,bhkd->bhqk", q, k) / (dh ** 0.5)
    if mask is not None:
        s = jnp.where(mask[None, None] == 0, -1e9, s)
    p = jax.nn.softmax(s, axis=-1)
    o = jnp.einsum("bhqk,bhkd->bhqd", p, v).transpose(0, 2, 1, 3).reshape(B, Sq, D)
    return o @ wo + bo


def decoder_layer_ref(tgt, memory, tgt_mask, memory_mask, params, n_heads, eps=1e-5):
    def ln(x, g, b):
        m = jnp.mean(x, axis=-1, keepdims=True)
        v = jnp.mean((x - m) ** 2, axis=-1, keepdims=True)
        return (x - m) / jnp.sqrt(v + eps) * g + b
    sa = _mha_ref(tgt, tgt, tgt_mask, params["self_attn"], n_heads)
    tgt = ln(tgt + sa, *params["norm1"])
    ca = _mha_ref(tgt, memory, memory_mask, params["cross_attn"], n_heads)
    tgt = ln(tgt + ca, *params["norm2"])
    w1, b1, w2, b2 = params["ffn"]
    return jnp.maximum(tgt @ w1 + b1, 0.0) @ w2 + b2


def init_params(key, d_model, n_heads, dim_feedforward):
    keys = jax.random.split(key, 10)

    def lin(k, din, dout):
        kw, kb = jax.random.split(k)
        w = jax.random.normal(kw, (din, dout), jnp.float32) * 0.05
        b = jax.random.normal(kb, (1, dout), jnp.float32) * 0.05
        return w, b

    def attn(ks):
        wq, bq = lin(ks[0], d_model, d_model)
        wk, bk = lin(ks[1], d_model, d_model)
        wv, bv = lin(ks[2], d_model, d_model)
        wo, bo = lin(ks[3], d_model, d_model)
        return (wq, bq, wk, bk, wv, bv, wo, bo)

    w1, b1 = lin(keys[8], d_model, dim_feedforward)
    w2, b2 = lin(keys[9], dim_feedforward, d_model)
    return {
        "self_attn": attn(keys[0:4]),
        "cross_attn": attn(keys[4:8]),
        "norm1": (jnp.ones((1, d_model), jnp.float32), jnp.zeros((1, d_model), jnp.float32)),
        "norm2": (jnp.ones((1, d_model), jnp.float32), jnp.zeros((1, d_model), jnp.float32)),
        # norm3 exists in the PyTorch __init__ but is never used in forward.
        "ffn": (w1, b1, w2, b2),
    }


if __name__ == "__main__":
    B, S_tgt, S_mem = 2, 8, 8
    d_model, n_heads, dim_feedforward = 32, 4, 64

    key = jax.random.PRNGKey(0)
    k_tgt, k_mem, k_par = jax.random.split(key, 3)
    tgt = jax.random.normal(k_tgt, (B, S_tgt, d_model), jnp.float32)
    memory = jax.random.normal(k_mem, (B, S_mem, d_model), jnp.float32)
    params = init_params(k_par, d_model, n_heads, dim_feedforward)

    # causal self-attention mask (1 = keep, 0 = masked); memory_mask = all ones
    tgt_mask = jnp.tril(jnp.ones((S_tgt, S_tgt), jnp.float32))
    memory_mask = jnp.ones((S_tgt, S_mem), jnp.float32)

    out = decoder_layer_pallas(tgt, memory, tgt_mask, memory_mask, params, n_heads)
    out = jax.block_until_ready(out)

    ref = decoder_layer_ref(tgt, memory, tgt_mask, memory_mask, params, n_heads)
    assert out.shape == (B, S_tgt, d_model)
    assert jnp.allclose(out, ref, atol=1e-4, rtol=1e-4), "Pallas output mismatch vs reference"
    print("KERNEL_OK")
</pallas_src>

<mosaic_0001>
module attributes {stable_mosaic.version = 11 : i64} {
  func.func @_decoder_layer_kernel(%arg0: i32, %arg1: memref<16x32xf32, #tpu.memory_space<vmem>>, %arg2: memref<16x32xf32, #tpu.memory_space<vmem>>, %arg3: memref<16x16xf32, #tpu.memory_space<vmem>>, %arg4: memref<16x16xf32, #tpu.memory_space<vmem>>, %arg5: memref<32x96xf32, #tpu.memory_space<vmem>>, %arg6: memref<1x96xf32, #tpu.memory_space<vmem>>, %arg7: memref<32x32xf32, #tpu.memory_space<vmem>>, %arg8: memref<1x32xf32, #tpu.memory_space<vmem>>, %arg9: memref<32x32xf32, #tpu.memory_space<vmem>>, %arg10: memref<1x32xf32, #tpu.memory_space<vmem>>, %arg11: memref<32x64xf32, #tpu.memory_space<vmem>>, %arg12: memref<1x64xf32, #tpu.memory_space<vmem>>, %arg13: memref<32x32xf32, #tpu.memory_space<vmem>>, %arg14: memref<1x32xf32, #tpu.memory_space<vmem>>, %arg15: memref<1x32xf32, #tpu.memory_space<vmem>>, %arg16: memref<1x32xf32, #tpu.memory_space<vmem>>, %arg17: memref<1x32xf32, #tpu.memory_space<vmem>>, %arg18: memref<1x32xf32, #tpu.memory_space<vmem>>, %arg19: memref<32x64xf32, #tpu.memory_space<vmem>>, %arg20: memref<1x64xf32, #tpu.memory_space<vmem>>, %arg21: memref<64x32xf32, #tpu.memory_space<vmem>>, %arg22: memref<1x32xf32, #tpu.memory_space<vmem>>, %arg23: memref<16x32xf32, #tpu.memory_space<vmem>>) attributes {dimension_semantics = [#tpu.dimension_semantics<arbitrary>], iteration_bounds = array<i64: 1>, scalar_prefetch = 0 : i64, scratch_operands = 0 : i64, tpu.core_type = #tpu.core_type<tc>, window_params = [{pipeline_mode = #tpu.pipeline_mode<synchronous>, transform_indices = @transform_0, window_bounds = array<i64: 16, 32>}, {pipeline_mode = #tpu.pipeline_mode<synchronous>, transform_indices = @transform_1, window_bounds = array<i64: 16, 32>}, {pipeline_mode = #tpu.pipeline_mode<synchronous>, transform_indices = @transform_2, window_bounds = array<i64: 16, 16>}, {pipeline_mode = #tpu.pipeline_mode<synchronous>, transform_indices = @transform_3, window_bounds = array<i64: 16, 16>}, {pipeline_mode = #tpu.pipeline_mode<synchronous>, transform_indices = @transform_4, window_bounds = array<i64: 32, 96>}, {pipeline_mode = #tpu.pipeline_mode<synchronous>, transform_indices = @transform_5, window_bounds = array<i64: 1, 96>}, {pipeline_mode = #tpu.pipeline_mode<synchronous>, transform_indices = @transform_6, window_bounds = array<i64: 32, 32>}, {pipeline_mode = #tpu.pipeline_mode<synchronous>, transform_indices = @transform_7, window_bounds = array<i64: 1, 32>}, {pipeline_mode = #tpu.pipeline_mode<synchronous>, transform_indices = @transform_8, window_bounds = array<i64: 32, 32>}, {pipeline_mode = #tpu.pipeline_mode<synchronous>, transform_indices = @transform_9, window_bounds = array<i64: 1, 32>}, {pipeline_mode = #tpu.pipeline_mode<synchronous>, transform_indices = @transform_10, window_bounds = array<i64: 32, 64>}, {pipeline_mode = #tpu.pipeline_mode<synchronous>, transform_indices = @transform_11, window_bounds = array<i64: 1, 64>}, {pipeline_mode = #tpu.pipeline_mode<synchronous>, transform_indices = @transform_12, window_bounds = array<i64: 32, 32>}, {pipeline_mode = #tpu.pipeline_mode<synchronous>, transform_indices = @transform_13, window_bounds = array<i64: 1, 32>}, {pipeline_mode = #tpu.pipeline_mode<synchronous>, transform_indices = @transform_14, window_bounds = array<i64: 1, 32>}, {pipeline_mode = #tpu.pipeline_mode<synchronous>, transform_indices = @transform_15, window_bounds = array<i64: 1, 32>}, {pipeline_mode = #tpu.pipeline_mode<synchronous>, transform_indices = @transform_16, window_bounds = array<i64: 1, 32>}, {pipeline_mode = #tpu.pipeline_mode<synchronous>, transform_indices = @transform_17, window_bounds = array<i64: 1, 32>}, {pipeline_mode = #tpu.pipeline_mode<synchronous>, transform_indices = @transform_18, window_bounds = array<i64: 32, 64>}, {pipeline_mode = #tpu.pipeline_mode<synchronous>, transform_indices = @transform_19, window_bounds = array<i64: 1, 64>}, {pipeline_mode = #tpu.pipeline_mode<synchronous>, transform_indices = @transform_20, window_bounds = array<i64: 64, 32>}, {pipeline_mode = #tpu.pipeline_mode<synchronous>, transform_indices = @transform_21, window_bounds = array<i64: 1, 32>}, {pipeline_mode = #tpu.pipeline_mode<synchronous>, transform_indices = @transform_22, window_bounds = array<i64: 16, 32>}]} {
    %c0 = arith.constant 0 : index
    %c0_0 = arith.constant 0 : index
    %0 = vector.load %arg1[%c0, %c0_0] : memref<16x32xf32, #tpu.memory_space<vmem>>, vector<16x32xf32>
    %c0_1 = arith.constant 0 : index
    %c0_2 = arith.constant 0 : index
    %1 = vector.load %arg2[%c0_1, %c0_2] : memref<16x32xf32, #tpu.memory_space<vmem>>, vector<16x32xf32>
    %c0_3 = arith.constant 0 : index
    %c0_4 = arith.constant 0 : index
    %2 = vector.load %arg5[%c0_3, %c0_4] : memref<32x96xf32, #tpu.memory_space<vmem>>, vector<32x96xf32>
    %cst = arith.constant dense<0.000000e+00> : vector<16x96xf32>
    %3 = tpu.matmul %0, %2, %cst {dimension_numbers = #tpu.dot_dimension_numbers<[1], [0], [0], [1], [0, 0, 1, 1], [], []>} : vector<16x32xf32>, vector<32x96xf32>, vector<16x96xf32> -> vector<16x96xf32>
    %c0_5 = arith.constant 0 : index
    %c0_6 = arith.constant 0 : index
    %4 = vector.load %arg6[%c0_5, %c0_6] : memref<1x96xf32, #tpu.memory_space<vmem>>, vector<1x96xf32>
    %5 = vector.broadcast %4 : vector<1x96xf32> to vector<16x96xf32>
    %6 = arith.addf %3, %5 : vector<16x96xf32>
    %7 = vector.extract_strided_slice %6 {offsets = [0, 0], sizes = [16, 32], strides = [1, 1]} : vector<16x96xf32> to vector<16x32xf32>
    %8 = vector.extract_strided_slice %6 {offsets = [0, 32], sizes = [16, 32], strides = [1, 1]} : vector<16x96xf32> to vector<16x32xf32>
    %9 = vector.extract_strided_slice %6 {offsets = [0, 64], sizes = [16, 32], strides = [1, 1]} : vector<16x96xf32> to vector<16x32xf32>
    %c0_7 = arith.constant 0 : index
    %c0_8 = arith.constant 0 : index
    %10 = vector.load %arg3[%c0_7, %c0_8] : memref<16x16xf32, #tpu.memory_space<vmem>>, vector<16x16xf32>
    %c0_9 = arith.constant 0 : index
    %c0_10 = arith.constant 0 : index
    %11 = vector.load %arg7[%c0_9, %c0_10] : memref<32x32xf32, #tpu.memory_space<vmem>>, vector<32x32xf32>
    %c0_11 = arith.constant 0 : index
    %c0_12 = arith.constant 0 : index
    %12 = vector.load %arg8[%c0_11, %c0_12] : memref<1x32xf32, #tpu.memory_space<vmem>>, vector<1x32xf32>
    %13 = vector.extract_strided_slice %7 {offsets = [0, 0], sizes = [16, 8], strides = [1, 1]} : vector<16x32xf32> to vector<16x8xf32>
    %14 = vector.extract_strided_slice %8 {offsets = [0, 0], sizes = [16, 8], strides = [1, 1]} : vector<16x32xf32> to vector<16x8xf32>
    %cst_13 = arith.constant dense<0.000000e+00> : vector<16x16xf32>
    %15 = tpu.matmul %13, %14, %cst_13 {dimension_numbers = #tpu.dot_dimension_numbers<[1], [1], [0], [0], [0, 0, 1, 0], [], []>} : vector<16x8xf32>, vector<16x8xf32>, vector<16x16xf32> -> vector<16x16xf32>
    %cst_14 = arith.constant 0.353553385 : f32
    %16 = vector.broadcast %cst_14 : f32 to vector<16x16xf32>
    %17 = arith.mulf %15, %16 : vector<16x16xf32>
    %18 = arith.addf %17, %10 : vector<16x16xf32>
    %cst_15 = arith.constant dense<0xFF800000> : vector<16xf32>
    %19 = vector.multi_reduction <maximumf>, %18, %cst_15 [1] : vector<16x16xf32> to vector<16xf32>
    %20 = vector.shape_cast %19 : vector<16xf32> to vector<16x1xf32>
    %21 = vector.broadcast %20 : vector<16x1xf32> to vector<16x16xf32>
    %22 = arith.subf %18, %21 : vector<16x16xf32>
    %23 = math.exp %22 : vector<16x16xf32>
    %cst_16 = arith.constant dense<0.000000e+00> : vector<16xf32>
    %24 = vector.multi_reduction <add>, %23, %cst_16 [1] : vector<16x16xf32> to vector<16xf32>
    %25 = vector.shape_cast %24 : vector<16xf32> to vector<16x1xf32>
    %26 = tpu.reciprocal %25 {approx = true} : vector<16x1xf32> -> vector<16x1xf32>
    %27 = arith.mulf %25, %26 : vector<16x1xf32>
    %cst_17 = arith.constant 2.000000e+00 : f32
    %28 = vector.broadcast %cst_17 : f32 to vector<16x1xf32>
    %29 = arith.subf %28, %27 : vector<16x1xf32>
    %30 = arith.mulf %26, %29 : vector<16x1xf32>
    %31 = vector.broadcast %30 : vector<16x1xf32> to vector<16x16xf32>
    %32 = arith.mulf %23, %31 : vector<16x16xf32>
    %33 = vector.extract_strided_slice %9 {offsets = [0, 0], sizes = [16, 8], strides = [1, 1]} : vector<16x32xf32> to vector<16x8xf32>
    %cst_18 = arith.constant dense<0.000000e+00> : vector<16x8xf32>
    %34 = tpu.matmul %32, %33, %cst_18 {dimension_numbers = #tpu.dot_dimension_numbers<[1], [0], [0], [1], [0, 0, 1, 1], [], []>} : vector<16x16xf32>, vector<16x8xf32>, vector<16x8xf32> -> vector<16x8xf32>
    %35 = vector.extract_strided_slice %7 {offsets = [0, 8], sizes = [16, 8], strides = [1, 1]} : vector<16x32xf32> to vector<16x8xf32>
    %36 = vector.extract_strided_slice %8 {offsets = [0, 8], sizes = [16, 8], strides = [1, 1]} : vector<16x32xf32> to vector<16x8xf32>
    %cst_19 = arith.constant dense<0.000000e+00> : vector<16x16xf32>
    %37 = tpu.matmul %35, %36, %cst_19 {dimension_numbers = #tpu.dot_dimension_numbers<[1], [1], [0], [0], [0, 0, 1, 0], [], []>} : vector<16x8xf32>, vector<16x8xf32>, vector<16x16xf32> -> vector<16x16xf32>
    %cst_20 = arith.constant 0.353553385 : f32
    %38 = vector.broadcast %cst_20 : f32 to vector<16x16xf32>
    %39 = arith.mulf %37, %38 : vector<16x16xf32>
    %40 = arith.addf %39, %10 : vector<16x16xf32>
    %cst_21 = arith.constant dense<0xFF800000> : vector<16xf32>
    %41 = vector.multi_reduction <maximumf>, %40, %cst_21 [1] : vector<16x16xf32> to vector<16xf32>
    %42 = vector.shape_cast %41 : vector<16xf32> to vector<16x1xf32>
    %43 = vector.broadcast %42 : vector<16x1xf32> to vector<16x16xf32>
    %44 = arith.subf %40, %43 : vector<16x16xf32>
    %45 = math.exp %44 : vector<16x16xf32>
    %cst_22 = arith.constant dense<0.000000e+00> : vector<16xf32>
    %46 = vector.multi_reduction <add>, %45, %cst_22 [1] : vector<16x16xf32> to vector<16xf32>
    %47 = vector.shape_cast %46 : vector<16xf32> to vector<16x1xf32>
    %48 = tpu.reciprocal %47 {approx = true} : vector<16x1xf32> -> vector<16x1xf32>
    %49 = arith.mulf %47, %48 : vector<16x1xf32>
    %cst_23 = arith.constant 2.000000e+00 : f32
    %50 = vector.broadcast %cst_23 : f32 to vector<16x1xf32>
    %51 = arith.subf %50, %49 : vector<16x1xf32>
    %52 = arith.mulf %48, %51 : vector<16x1xf32>
    %53 = vector.broadcast %52 : vector<16x1xf32> to vector<16x16xf32>
    %54 = arith.mulf %45, %53 : vector<16x16xf32>
    %55 = vector.extract_strided_slice %9 {offsets = [0, 8], sizes = [16, 8], strides = [1, 1]} : vector<16x32xf32> to vector<16x8xf32>
    %cst_24 = arith.constant dense<0.000000e+00> : vector<16x8xf32>
    %56 = tpu.matmul %54, %55, %cst_24 {dimension_numbers = #tpu.dot_dimension_numbers<[1], [0], [0], [1], [0, 0, 1, 1], [], []>} : vector<16x16xf32>, vector<16x8xf32>, vector<16x8xf32> -> vector<16x8xf32>
    %57 = vector.extract_strided_slice %7 {offsets = [0, 16], sizes = [16, 8], strides = [1, 1]} : vector<16x32xf32> to vector<16x8xf32>
    %58 = vector.extract_strided_slice %8 {offsets = [0, 16], sizes = [16, 8], strides = [1, 1]} : vector<16x32xf32> to vector<16x8xf32>
    %cst_25 = arith.constant dense<0.000000e+00> : vector<16x16xf32>
    %59 = tpu.matmul %57, %58, %cst_25 {dimension_numbers = #tpu.dot_dimension_numbers<[1], [1], [0], [0], [0, 0, 1, 0], [], []>} : vector<16x8xf32>, vector<16x8xf32>, vector<16x16xf32> -> vector<16x16xf32>
    %cst_26 = arith.constant 0.353553385 : f32
    %60 = vector.broadcast %cst_26 : f32 to vector<16x16xf32>
    %61 = arith.mulf %59, %60 : vector<16x16xf32>
    %62 = arith.addf %61, %10 : vector<16x16xf32>
    %cst_27 = arith.constant dense<0xFF800000> : vector<16xf32>
    %63 = vector.multi_reduction <maximumf>, %62, %cst_27 [1] : vector<16x16xf32> to vector<16xf32>
    %64 = vector.shape_cast %63 : vector<16xf32> to vector<16x1xf32>
    %65 = vector.broadcast %64 : vector<16x1xf32> to vector<16x16xf32>
    %66 = arith.subf %62, %65 : vector<16x16xf32>
    %67 = math.exp %66 : vector<16x16xf32>
    %cst_28 = arith.constant dense<0.000000e+00> : vector<16xf32>
    %68 = vector.multi_reduction <add>, %67, %cst_28 [1] : vector<16x16xf32> to vector<16xf32>
    %69 = vector.shape_cast %68 : vector<16xf32> to vector<16x1xf32>
    %70 = tpu.reciprocal %69 {approx = true} : vector<16x1xf32> -> vector<16x1xf32>
    %71 = arith.mulf %69, %70 : vector<16x1xf32>
    %cst_29 = arith.constant 2.000000e+00 : f32
    %72 = vector.broadcast %cst_29 : f32 to vector<16x1xf32>
    %73 = arith.subf %72, %71 : vector<16x1xf32>
    %74 = arith.mulf %70, %73 : vector<16x1xf32>
    %75 = vector.broadcast %74 : vector<16x1xf32> to vector<16x16xf32>
    %76 = arith.mulf %67, %75 : vector<16x16xf32>
    %77 = vector.extract_strided_slice %9 {offsets = [0, 16], sizes = [16, 8], strides = [1, 1]} : vector<16x32xf32> to vector<16x8xf32>
    %cst_30 = arith.constant dense<0.000000e+00> : vector<16x8xf32>
    %78 = tpu.matmul %76, %77, %cst_30 {dimension_numbers = #tpu.dot_dimension_numbers<[1], [0], [0], [1], [0, 0, 1, 1], [], []>} : vector<16x16xf32>, vector<16x8xf32>, vector<16x8xf32> -> vector<16x8xf32>
    %79 = vector.extract_strided_slice %7 {offsets = [0, 24], sizes = [16, 8], strides = [1, 1]} : vector<16x32xf32> to vector<16x8xf32>
    %80 = vector.extract_strided_slice %8 {offsets = [0, 24], sizes = [16, 8], strides = [1, 1]} : vector<16x32xf32> to vector<16x8xf32>
    %cst_31 = arith.constant dense<0.000000e+00> : vector<16x16xf32>
    %81 = tpu.matmul %79, %80, %cst_31 {dimension_numbers = #tpu.dot_dimension_numbers<[1], [1], [0], [0], [0, 0, 1, 0], [], []>} : vector<16x8xf32>, vector<16x8xf32>, vector<16x16xf32> -> vector<16x16xf32>
    %cst_32 = arith.constant 0.353553385 : f32
    %82 = vector.broadcast %cst_32 : f32 to vector<16x16xf32>
    %83 = arith.mulf %81, %82 : vector<16x16xf32>
    %84 = arith.addf %83, %10 : vector<16x16xf32>
    %cst_33 = arith.constant dense<0xFF800000> : vector<16xf32>
    %85 = vector.multi_reduction <maximumf>, %84, %cst_33 [1] : vector<16x16xf32> to vector<16xf32>
    %86 = vector.shape_cast %85 : vector<16xf32> to vector<16x1xf32>
    %87 = vector.broadcast %86 : vector<16x1xf32> to vector<16x16xf32>
    %88 = arith.subf %84, %87 : vector<16x16xf32>
    %89 = math.exp %88 : vector<16x16xf32>
    %cst_34 = arith.constant dense<0.000000e+00> : vector<16xf32>
    %90 = vector.multi_reduction <add>, %89, %cst_34 [1] : vector<16x16xf32> to vector<16xf32>
    %91 = vector.shape_cast %90 : vector<16xf32> to vector<16x1xf32>
    %92 = tpu.reciprocal %91 {approx = true} : vector<16x1xf32> -> vector<16x1xf32>
    %93 = arith.mulf %91, %92 : vector<16x1xf32>
    %cst_35 = arith.constant 2.000000e+00 : f32
    %94 = vector.broadcast %cst_35 : f32 to vector<16x1xf32>
    %95 = arith.subf %94, %93 : vector<16x1xf32>
    %96 = arith.mulf %92, %95 : vector<16x1xf32>
    %97 = vector.broadcast %96 : vector<16x1xf32> to vector<16x16xf32>
    %98 = arith.mulf %89, %97 : vector<16x16xf32>
    %99 = vector.extract_strided_slice %9 {offsets = [0, 24], sizes = [16, 8], strides = [1, 1]} : vector<16x32xf32> to vector<16x8xf32>
    %cst_36 = arith.constant dense<0.000000e+00> : vector<16x8xf32>
    %100 = tpu.matmul %98, %99, %cst_36 {dimension_numbers = #tpu.dot_dimension_numbers<[1], [0], [0], [1], [0, 0, 1, 1], [], []>} : vector<16x16xf32>, vector<16x8xf32>, vector<16x8xf32> -> vector<16x8xf32>
    %101 = tpu.concatenate %34, %56, %78, %100 in 1 : vector<16x8xf32>, vector<16x8xf32>, vector<16x8xf32>, vector<16x8xf32> -> vector<16x32xf32>
    %cst_37 = arith.constant dense<0.000000e+00> : vector<16x32xf32>
    %102 = tpu.matmul %101, %11, %cst_37 {dimension_numbers = #tpu.dot_dimension_numbers<[1], [0], [0], [1], [0, 0, 1, 1], [], []>} : vector<16x32xf32>, vector<32x32xf32>, vector<16x32xf32> -> vector<16x32xf32>
    %103 = vector.broadcast %12 : vector<1x32xf32> to vector<16x32xf32>
    %104 = arith.addf %102, %103 : vector<16x32xf32>
    %105 = arith.addf %0, %104 : vector<16x32xf32>
    %c0_38 = arith.constant 0 : index
    %c0_39 = arith.constant 0 : index
    %106 = vector.load %arg15[%c0_38, %c0_39] : memref<1x32xf32, #tpu.memory_space<vmem>>, vector<1x32xf32>
    %c0_40 = arith.constant 0 : index
    %c0_41 = arith.constant 0 : index
    %107 = vector.load %arg16[%c0_40, %c0_41] : memref<1x32xf32, #tpu.memory_space<vmem>>, vector<1x32xf32>
    %cst_42 = arith.constant dense<0.000000e+00> : vector<16xf32>
    %108 = vector.multi_reduction <add>, %105, %cst_42 [1] : vector<16x32xf32> to vector<16xf32>
    %109 = vector.shape_cast %108 : vector<16xf32> to vector<16x1xf32>
    %cst_43 = arith.constant 3.200000e+01 : f32
    %110 = vector.broadcast %cst_43 : f32 to vector<16x1xf32>
    %111 = arith.divf %109, %110 : vector<16x1xf32>
    %112 = vector.broadcast %111 : vector<16x1xf32> to vector<16x32xf32>
    %113 = arith.subf %105, %112 : vector<16x32xf32>
    %114 = arith.mulf %113, %113 : vector<16x32xf32>
    %cst_44 = arith.constant dense<0.000000e+00> : vector<16xf32>
    %115 = vector.multi_reduction <add>, %114, %cst_44 [1] : vector<16x32xf32> to vector<16xf32>
    %116 = vector.shape_cast %115 : vector<16xf32> to vector<16x1xf32>
    %cst_45 = arith.constant 3.200000e+01 : f32
    %117 = vector.broadcast %cst_45 : f32 to vector<16x1xf32>
    %118 = arith.divf %116, %117 : vector<16x1xf32>
    %119 = vector.broadcast %111 : vector<16x1xf32> to vector<16x32xf32>
    %120 = arith.subf %105, %119 : vector<16x32xf32>
    %cst_46 = arith.constant 9.99999974E-6 : f32
    %121 = vector.broadcast %cst_46 : f32 to vector<16x1xf32>
    %122 = arith.addf %118, %121 : vector<16x1xf32>
    %123 = math.rsqrt %122 : vector<16x1xf32>
    %124 = vector.broadcast %123 : vector<16x1xf32> to vector<16x32xf32>
    %125 = arith.mulf %120, %124 : vector<16x32xf32>
    %126 = vector.broadcast %106 : vector<1x32xf32> to vector<16x32xf32>
    %127 = arith.mulf %125, %126 : vector<16x32xf32>
    %128 = vector.broadcast %107 : vector<1x32xf32> to vector<16x32xf32>
    %129 = arith.addf %127, %128 : vector<16x32xf32>
    %c0_47 = arith.constant 0 : index
    %c0_48 = arith.constant 0 : index
    %130 = vector.load %arg9[%c0_47, %c0_48] : memref<32x32xf32, #tpu.memory_space<vmem>>, vector<32x32xf32>
    %cst_49 = arith.constant dense<0.000000e+00> : vector<16x32xf32>
    %131 = tpu.matmul %129, %130, %cst_49 {dimension_numbers = #tpu.dot_dimension_numbers<[1], [0], [0], [1], [0, 0, 1, 1], [], []>} : vector<16x32xf32>, vector<32x32xf32>, vector<16x32xf32> -> vector<16x32xf32>
    %c0_50 = arith.constant 0 : index
    %c0_51 = arith.constant 0 : index
    %132 = vector.load %arg10[%c0_50, %c0_51] : memref<1x32xf32, #tpu.memory_space<vmem>>, vector<1x32xf32>
    %133 = vector.broadcast %132 : vector<1x32xf32> to vector<16x32xf32>
    %134 = arith.addf %131, %133 : vector<16x32xf32>
    %c0_52 = arith.constant 0 : index
    %c0_53 = arith.constant 0 : index
    %135 = vector.load %arg11[%c0_52, %c0_53] : memref<32x64xf32, #tpu.memory_space<vmem>>, vector<32x64xf32>
    %cst_54 = arith.constant dense<0.000000e+00> : vector<16x64xf32>
    %136 = tpu.matmul %1, %135, %cst_54 {dimension_numbers = #tpu.dot_dimension_numbers<[1], [0], [0], [1], [0, 0, 1, 1], [], []>} : vector<16x32xf32>, vector<32x64xf32>, vector<16x64xf32> -> vector<16x64xf32>
    %c0_55 = arith.constant 0 : index
    %c0_56 = arith.constant 0 : index
    %137 = vector.load %arg12[%c0_55, %c0_56] : memref<1x64xf32, #tpu.memory_space<vmem>>, vector<1x64xf32>
    %138 = vector.broadcast %137 : vector<1x64xf32> to vector<16x64xf32>
    %139 = arith.addf %136, %138 : vector<16x64xf32>
    %140 = vector.extract_strided_slice %139 {offsets = [0, 0], sizes = [16, 32], strides = [1, 1]} : vector<16x64xf32> to vector<16x32xf32>
    %141 = vector.extract_strided_slice %139 {offsets = [0, 32], sizes = [16, 32], strides = [1, 1]} : vector<16x64xf32> to vector<16x32xf32>
    %c0_57 = arith.constant 0 : index
    %c0_58 = arith.constant 0 : index
    %142 = vector.load %arg4[%c0_57, %c0_58] : memref<16x16xf32, #tpu.memory_space<vmem>>, vector<16x16xf32>
    %c0_59 = arith.constant 0 : index
    %c0_60 = arith.constant 0 : index
    %143 = vector.load %arg13[%c0_59, %c0_60] : memref<32x32xf32, #tpu.memory_space<vmem>>, vector<32x32xf32>
    %c0_61 = arith.constant 0 : index
    %c0_62 = arith.constant 0 : index
    %144 = vector.load %arg14[%c0_61, %c0_62] : memref<1x32xf32, #tpu.memory_space<vmem>>, vector<1x32xf32>
    %145 = vector.extract_strided_slice %134 {offsets = [0, 0], sizes = [16, 8], strides = [1, 1]} : vector<16x32xf32> to vector<16x8xf32>
    %146 = vector.extract_strided_slice %140 {offsets = [0, 0], sizes = [16, 8], strides = [1, 1]} : vector<16x32xf32> to vector<16x8xf32>
    %cst_63 = arith.constant dense<0.000000e+00> : vector<16x16xf32>
    %147 = tpu.matmul %145, %146, %cst_63 {dimension_numbers = #tpu.dot_dimension_numbers<[1], [1], [0], [0], [0, 0, 1, 0], [], []>} : vector<16x8xf32>, vector<16x8xf32>, vector<16x16xf32> -> vector<16x16xf32>
    %cst_64 = arith.constant 0.353553385 : f32
    %148 = vector.broadcast %cst_64 : f32 to vector<16x16xf32>
    %149 = arith.mulf %147, %148 : vector<16x16xf32>
    %150 = arith.addf %149, %142 : vector<16x16xf32>
    %cst_65 = arith.constant dense<0xFF800000> : vector<16xf32>
    %151 = vector.multi_reduction <maximumf>, %150, %cst_65 [1] : vector<16x16xf32> to vector<16xf32>
    %152 = vector.shape_cast %151 : vector<16xf32> to vector<16x1xf32>
    %153 = vector.broadcast %152 : vector<16x1xf32> to vector<16x16xf32>
    %154 = arith.subf %150, %153 : vector<16x16xf32>
    %155 = math.exp %154 : vector<16x16xf32>
    %cst_66 = arith.constant dense<0.000000e+00> : vector<16xf32>
    %156 = vector.multi_reduction <add>, %155, %cst_66 [1] : vector<16x16xf32> to vector<16xf32>
    %157 = vector.shape_cast %156 : vector<16xf32> to vector<16x1xf32>
    %158 = tpu.reciprocal %157 {approx = true} : vector<16x1xf32> -> vector<16x1xf32>
    %159 = arith.mulf %157, %158 : vector<16x1xf32>
    %cst_67 = arith.constant 2.000000e+00 : f32
    %160 = vector.broadcast %cst_67 : f32 to vector<16x1xf32>
    %161 = arith.subf %160, %159 : vector<16x1xf32>
    %162 = arith.mulf %158, %161 : vector<16x1xf32>
    %163 = vector.broadcast %162 : vector<16x1xf32> to vector<16x16xf32>
    %164 = arith.mulf %155, %163 : vector<16x16xf32>
    %165 = vector.extract_strided_slice %141 {offsets = [0, 0], sizes = [16, 8], strides = [1, 1]} : vector<16x32xf32> to vector<16x8xf32>
    %cst_68 = arith.constant dense<0.000000e+00> : vector<16x8xf32>
    %166 = tpu.matmul %164, %165, %cst_68 {dimension_numbers = #tpu.dot_dimension_numbers<[1], [0], [0], [1], [0, 0, 1, 1], [], []>} : vector<16x16xf32>, vector<16x8xf32>, vector<16x8xf32> -> vector<16x8xf32>
    %167 = vector.extract_strided_slice %134 {offsets = [0, 8], sizes = [16, 8], strides = [1, 1]} : vector<16x32xf32> to vector<16x8xf32>
    %168 = vector.extract_strided_slice %140 {offsets = [0, 8], sizes = [16, 8], strides = [1, 1]} : vector<16x32xf32> to vector<16x8xf32>
    %cst_69 = arith.constant dense<0.000000e+00> : vector<16x16xf32>
    %169 = tpu.matmul %167, %168, %cst_69 {dimension_numbers = #tpu.dot_dimension_numbers<[1], [1], [0], [0], [0, 0, 1, 0], [], []>} : vector<16x8xf32>, vector<16x8xf32>, vector<16x16xf32> -> vector<16x16xf32>
    %cst_70 = arith.constant 0.353553385 : f32
    %170 = vector.broadcast %cst_70 : f32 to vector<16x16xf32>
    %171 = arith.mulf %169, %170 : vector<16x16xf32>
    %172 = arith.addf %171, %142 : vector<16x16xf32>
    %cst_71 = arith.constant dense<0xFF800000> : vector<16xf32>
    %173 = vector.multi_reduction <maximumf>, %172, %cst_71 [1] : vector<16x16xf32> to vector<16xf32>
    %174 = vector.shape_cast %173 : vector<16xf32> to vector<16x1xf32>
    %175 = vector.broadcast %174 : vector<16x1xf32> to vector<16x16xf32>
    %176 = arith.subf %172, %175 : vector<16x16xf32>
    %177 = math.exp %176 : vector<16x16xf32>
    %cst_72 = arith.constant dense<0.000000e+00> : vector<16xf32>
    %178 = vector.multi_reduction <add>, %177, %cst_72 [1] : vector<16x16xf32> to vector<16xf32>
    %179 = vector.shape_cast %178 : vector<16xf32> to vector<16x1xf32>
    %180 = tpu.reciprocal %179 {approx = true} : vector<16x1xf32> -> vector<16x1xf32>
    %181 = arith.mulf %179, %180 : vector<16x1xf32>
    %cst_73 = arith.constant 2.000000e+00 : f32
    %182 = vector.broadcast %cst_73 : f32 to vector<16x1xf32>
    %183 = arith.subf %182, %181 : vector<16x1xf32>
    %184 = arith.mulf %180, %183 : vector<16x1xf32>
    %185 = vector.broadcast %184 : vector<16x1xf32> to vector<16x16xf32>
    %186 = arith.mulf %177, %185 : vector<16x16xf32>
    %187 = vector.extract_strided_slice %141 {offsets = [0, 8], sizes = [16, 8], strides = [1, 1]} : vector<16x32xf32> to vector<16x8xf32>
    %cst_74 = arith.constant dense<0.000000e+00> : vector<16x8xf32>
    %188 = tpu.matmul %186, %187, %cst_74 {dimension_numbers = #tpu.dot_dimension_numbers<[1], [0], [0], [1], [0, 0, 1, 1], [], []>} : vector<16x16xf32>, vector<16x8xf32>, vector<16x8xf32> -> vector<16x8xf32>
    %189 = vector.extract_strided_slice %134 {offsets = [0, 16], sizes = [16, 8], strides = [1, 1]} : vector<16x32xf32> to vector<16x8xf32>
    %190 = vector.extract_strided_slice %140 {offsets = [0, 16], sizes = [16, 8], strides = [1, 1]} : vector<16x32xf32> to vector<16x8xf32>
    %cst_75 = arith.constant dense<0.000000e+00> : vector<16x16xf32>
    %191 = tpu.matmul %189, %190, %cst_75 {dimension_numbers = #tpu.dot_dimension_numbers<[1], [1], [0], [0], [0, 0, 1, 0], [], []>} : vector<16x8xf32>, vector<16x8xf32>, vector<16x16xf32> -> vector<16x16xf32>
    %cst_76 = arith.constant 0.353553385 : f32
    %192 = vector.broadcast %cst_76 : f32 to vector<16x16xf32>
    %193 = arith.mulf %191, %192 : vector<16x16xf32>
    %194 = arith.addf %193, %142 : vector<16x16xf32>
    %cst_77 = arith.constant dense<0xFF800000> : vector<16xf32>
    %195 = vector.multi_reduction <maximumf>, %194, %cst_77 [1] : vector<16x16xf32> to vector<16xf32>
    %196 = vector.shape_cast %195 : vector<16xf32> to vector<16x1xf32>
    %197 = vector.broadcast %196 : vector<16x1xf32> to vector<16x16xf32>
    %198 = arith.subf %194, %197 : vector<16x16xf32>
    %199 = math.exp %198 : vector<16x16xf32>
    %cst_78 = arith.constant dense<0.000000e+00> : vector<16xf32>
    %200 = vector.multi_reduction <add>, %199, %cst_78 [1] : vector<16x16xf32> to vector<16xf32>
    %201 = vector.shape_cast %200 : vector<16xf32> to vector<16x1xf32>
    %202 = tpu.reciprocal %201 {approx = true} : vector<16x1xf32> -> vector<16x1xf32>
    %203 = arith.mulf %201, %202 : vector<16x1xf32>
    %cst_79 = arith.constant 2.000000e+00 : f32
    %204 = vector.broadcast %cst_79 : f32 to vector<16x1xf32>
    %205 = arith.subf %204, %203 : vector<16x1xf32>
    %206 = arith.mulf %202, %205 : vector<16x1xf32>
    %207 = vector.broadcast %206 : vector<16x1xf32> to vector<16x16xf32>
    %208 = arith.mulf %199, %207 : vector<16x16xf32>
    %209 = vector.extract_strided_slice %141 {offsets = [0, 16], sizes = [16, 8], strides = [1, 1]} : vector<16x32xf32> to vector<16x8xf32>
    %cst_80 = arith.constant dense<0.000000e+00> : vector<16x8xf32>
    %210 = tpu.matmul %208, %209, %cst_80 {dimension_numbers = #tpu.dot_dimension_numbers<[1], [0], [0], [1], [0, 0, 1, 1], [], []>} : vector<16x16xf32>, vector<16x8xf32>, vector<16x8xf32> -> vector<16x8xf32>
    %211 = vector.extract_strided_slice %134 {offsets = [0, 24], sizes = [16, 8], strides = [1, 1]} : vector<16x32xf32> to vector<16x8xf32>
    %212 = vector.extract_strided_slice %140 {offsets = [0, 24], sizes = [16, 8], strides = [1, 1]} : vector<16x32xf32> to vector<16x8xf32>
    %cst_81 = arith.constant dense<0.000000e+00> : vector<16x16xf32>
    %213 = tpu.matmul %211, %212, %cst_81 {dimension_numbers = #tpu.dot_dimension_numbers<[1], [1], [0], [0], [0, 0, 1, 0], [], []>} : vector<16x8xf32>, vector<16x8xf32>, vector<16x16xf32> -> vector<16x16xf32>
    %cst_82 = arith.constant 0.353553385 : f32
    %214 = vector.broadcast %cst_82 : f32 to vector<16x16xf32>
    %215 = arith.mulf %213, %214 : vector<16x16xf32>
    %216 = arith.addf %215, %142 : vector<16x16xf32>
    %cst_83 = arith.constant dense<0xFF800000> : vector<16xf32>
    %217 = vector.multi_reduction <maximumf>, %216, %cst_83 [1] : vector<16x16xf32> to vector<16xf32>
    %218 = vector.shape_cast %217 : vector<16xf32> to vector<16x1xf32>
    %219 = vector.broadcast %218 : vector<16x1xf32> to vector<16x16xf32>
    %220 = arith.subf %216, %219 : vector<16x16xf32>
    %221 = math.exp %220 : vector<16x16xf32>
    %cst_84 = arith.constant dense<0.000000e+00> : vector<16xf32>
    %222 = vector.multi_reduction <add>, %221, %cst_84 [1] : vector<16x16xf32> to vector<16xf32>
    %223 = vector.shape_cast %222 : vector<16xf32> to vector<16x1xf32>
    %224 = tpu.reciprocal %223 {approx = true} : vector<16x1xf32> -> vector<16x1xf32>
    %225 = arith.mulf %223, %224 : vector<16x1xf32>
    %cst_85 = arith.constant 2.000000e+00 : f32
    %226 = vector.broadcast %cst_85 : f32 to vector<16x1xf32>
    %227 = arith.subf %226, %225 : vector<16x1xf32>
    %228 = arith.mulf %224, %227 : vector<16x1xf32>
    %229 = vector.broadcast %228 : vector<16x1xf32> to vector<16x16xf32>
    %230 = arith.mulf %221, %229 : vector<16x16xf32>
    %231 = vector.extract_strided_slice %141 {offsets = [0, 24], sizes = [16, 8], strides = [1, 1]} : vector<16x32xf32> to vector<16x8xf32>
    %cst_86 = arith.constant dense<0.000000e+00> : vector<16x8xf32>
    %232 = tpu.matmul %230, %231, %cst_86 {dimension_numbers = #tpu.dot_dimension_numbers<[1], [0], [0], [1], [0, 0, 1, 1], [], []>} : vector<16x16xf32>, vector<16x8xf32>, vector<16x8xf32> -> vector<16x8xf32>
    %233 = tpu.concatenate %166, %188, %210, %232 in 1 : vector<16x8xf32>, vector<16x8xf32>, vector<16x8xf32>, vector<16x8xf32> -> vector<16x32xf32>
    %cst_87 = arith.constant dense<0.000000e+00> : vector<16x32xf32>
    %234 = tpu.matmul %233, %143, %cst_87 {dimension_numbers = #tpu.dot_dimension_numbers<[1], [0], [0], [1], [0, 0, 1, 1], [], []>} : vector<16x32xf32>, vector<32x32xf32>, vector<16x32xf32> -> vector<16x32xf32>
    %235 = vector.broadcast %144 : vector<1x32xf32> to vector<16x32xf32>
    %236 = arith.addf %234, %235 : vector<16x32xf32>
    %237 = arith.addf %129, %236 : vector<16x32xf32>
    %c0_88 = arith.constant 0 : index
    %c0_89 = arith.constant 0 : index
    %238 = vector.load %arg17[%c0_88, %c0_89] : memref<1x32xf32, #tpu.memory_space<vmem>>, vector<1x32xf32>
    %c0_90 = arith.constant 0 : index
    %c0_91 = arith.constant 0 : index
    %239 = vector.load %arg18[%c0_90, %c0_91] : memref<1x32xf32, #tpu.memory_space<vmem>>, vector<1x32xf32>
    %cst_92 = arith.constant dense<0.000000e+00> : vector<16xf32>
    %240 = vector.multi_reduction <add>, %237, %cst_92 [1] : vector<16x32xf32> to vector<16xf32>
    %241 = vector.shape_cast %240 : vector<16xf32> to vector<16x1xf32>
    %cst_93 = arith.constant 3.200000e+01 : f32
    %242 = vector.broadcast %cst_93 : f32 to vector<16x1xf32>
    %243 = arith.divf %241, %242 : vector<16x1xf32>
    %244 = vector.broadcast %243 : vector<16x1xf32> to vector<16x32xf32>
    %245 = arith.subf %237, %244 : vector<16x32xf32>
    %246 = arith.mulf %245, %245 : vector<16x32xf32>
    %cst_94 = arith.constant dense<0.000000e+00> : vector<16xf32>
    %247 = vector.multi_reduction <add>, %246, %cst_94 [1] : vector<16x32xf32> to vector<16xf32>
    %248 = vector.shape_cast %247 : vector<16xf32> to vector<16x1xf32>
    %cst_95 = arith.constant 3.200000e+01 : f32
    %249 = vector.broadcast %cst_95 : f32 to vector<16x1xf32>
    %250 = arith.divf %248, %249 : vector<16x1xf32>
    %251 = vector.broadcast %243 : vector<16x1xf32> to vector<16x32xf32>
    %252 = arith.subf %237, %251 : vector<16x32xf32>
    %cst_96 = arith.constant 9.99999974E-6 : f32
    %253 = vector.broadcast %cst_96 : f32 to vector<16x1xf32>
    %254 = arith.addf %250, %253 : vector<16x1xf32>
    %255 = math.rsqrt %254 : vector<16x1xf32>
    %256 = vector.broadcast %255 : vector<16x1xf32> to vector<16x32xf32>
    %257 = arith.mulf %252, %256 : vector<16x32xf32>
    %258 = vector.broadcast %238 : vector<1x32xf32> to vector<16x32xf32>
    %259 = arith.mulf %257, %258 : vector<16x32xf32>
    %260 = vector.broadcast %239 : vector<1x32xf32> to vector<16x32xf32>
    %261 = arith.addf %259, %260 : vector<16x32xf32>
    %c0_97 = arith.constant 0 : index
    %c0_98 = arith.constant 0 : index
    %262 = vector.load %arg19[%c0_97, %c0_98] : memref<32x64xf32, #tpu.memory_space<vmem>>, vector<32x64xf32>
    %cst_99 = arith.constant dense<0.000000e+00> : vector<16x64xf32>
    %263 = tpu.matmul %261, %262, %cst_99 {dimension_numbers = #tpu.dot_dimension_numbers<[1], [0], [0], [1], [0, 0, 1, 1], [], []>} : vector<16x32xf32>, vector<32x64xf32>, vector<16x64xf32> -> vector<16x64xf32>
    %c0_100 = arith.constant 0 : index
    %c0_101 = arith.constant 0 : index
    %264 = vector.load %arg20[%c0_100, %c0_101] : memref<1x64xf32, #tpu.memory_space<vmem>>, vector<1x64xf32>
    %265 = vector.broadcast %264 : vector<1x64xf32> to vector<16x64xf32>
    %266 = arith.addf %263, %265 : vector<16x64xf32>
    %cst_102 = arith.constant 0.000000e+00 : f32
    %267 = vector.broadcast %cst_102 : f32 to vector<16x64xf32>
    %268 = arith.maximumf %266, %267 : vector<16x64xf32>
    %c0_103 = arith.constant 0 : index
    %c0_104 = arith.constant 0 : index
    %269 = vector.load %arg21[%c0_103, %c0_104] : memref<64x32xf32, #tpu.memory_space<vmem>>, vector<64x32xf32>
    %cst_105 = arith.constant dense<0.000000e+00> : vector<16x32xf32>
    %270 = tpu.matmul %268, %269, %cst_105 {dimension_numbers = #tpu.dot_dimension_numbers<[1], [0], [0], [1], [0, 0, 1, 1], [], []>} : vector<16x64xf32>, vector<64x32xf32>, vector<16x32xf32> -> vector<16x32xf32>
    %c0_106 = arith.constant 0 : index
    %c0_107 = arith.constant 0 : index
    %271 = vector.load %arg22[%c0_106, %c0_107] : memref<1x32xf32, #tpu.memory_space<vmem>>, vector<1x32xf32>
    %272 = vector.broadcast %271 : vector<1x32xf32> to vector<16x32xf32>
    %273 = arith.addf %270, %272 : vector<16x32xf32>
    %c0_108 = arith.constant 0 : index
    %c0_109 = arith.constant 0 : index
    %274 = vector.load %arg23[%c0_108, %c0_109] : memref<16x32xf32, #tpu.memory_space<vmem>>, vector<16x32xf32>
    tpu.vector_store %arg23[%c0_108, %c0_109], %273 {strides = array<i32>} : memref<16x32xf32, #tpu.memory_space<vmem>>, vector<16x32xf32>,
    return
  }
  func.func @transform_0(%arg0: i32) -> (i32, i32) {
    %c0_i32 = arith.constant 0 : i32
    %c0_i32_0 = arith.constant 0 : i32
    %c0_i32_1 = arith.constant 0 : i32
    return %c0_i32, %c0_i32_0 : i32, i32
  }
  func.func @transform_1(%arg0: i32) -> (i32, i32) {
    %c0_i32 = arith.constant 0 : i32
    %c0_i32_0 = arith.constant 0 : i32
    %c0_i32_1 = arith.constant 0 : i32
    return %c0_i32, %c0_i32_0 : i32, i32
  }
  func.func @transform_2(%arg0: i32) -> (i32, i32) {
    %c0_i32 = arith.constant 0 : i32
    %c0_i32_0 = arith.constant 0 : i32
    %c0_i32_1 = arith.constant 0 : i32
    return %c0_i32, %c0_i32_0 : i32, i32
  }
  func.func @transform_3(%arg0: i32) -> (i32, i32) {
    %c0_i32 = arith.constant 0 : i32
    %c0_i32_0 = arith.constant 0 : i32
    %c0_i32_1 = arith.constant 0 : i32
    return %c0_i32, %c0_i32_0 : i32, i32
  }
  func.func @transform_4(%arg0: i32) -> (i32, i32) {
    %c0_i32 = arith.constant 0 : i32
    %c0_i32_0 = arith.constant 0 : i32
    %c0_i32_1 = arith.constant 0 : i32
    return %c0_i32, %c0_i32_0 : i32, i32
  }
  func.func @transform_5(%arg0: i32) -> (i32, i32) {
    %c0_i32 = arith.constant 0 : i32
    %c0_i32_0 = arith.constant 0 : i32
    %c0_i32_1 = arith.constant 0 : i32
    return %c0_i32, %c0_i32_0 : i32, i32
  }
  func.func @transform_6(%arg0: i32) -> (i32, i32) {
    %c0_i32 = arith.constant 0 : i32
    %c0_i32_0 = arith.constant 0 : i32
    %c0_i32_1 = arith.constant 0 : i32
    return %c0_i32, %c0_i32_0 : i32, i32
  }
  func.func @transform_7(%arg0: i32) -> (i32, i32) {
    %c0_i32 = arith.constant 0 : i32
    %c0_i32_0 = arith.constant 0 : i32
    %c0_i32_1 = arith.constant 0 : i32
    return %c0_i32, %c0_i32_0 : i32, i32
  }
  func.func @transform_8(%arg0: i32) -> (i32, i32) {
    %c0_i32 = arith.constant 0 : i32
    %c0_i32_0 = arith.constant 0 : i32
    %c0_i32_1 = arith.constant 0 : i32
    return %c0_i32, %c0_i32_0 : i32, i32
  }
  func.func @transform_9(%arg0: i32) -> (i32, i32) {
    %c0_i32 = arith.constant 0 : i32
    %c0_i32_0 = arith.constant 0 : i32
    %c0_i32_1 = arith.constant 0 : i32
    return %c0_i32, %c0_i32_0 : i32, i32
  }
  func.func @transform_10(%arg0: i32) -> (i32, i32) {
    %c0_i32 = arith.constant 0 : i32
    %c0_i32_0 = arith.constant 0 : i32
    %c0_i32_1 = arith.constant 0 : i32
    return %c0_i32, %c0_i32_0 : i32, i32
  }
  func.func @transform_11(%arg0: i32) -> (i32, i32) {
    %c0_i32 = arith.constant 0 : i32
    %c0_i32_0 = arith.constant 0 : i32
    %c0_i32_1 = arith.constant 0 : i32
    return %c0_i32, %c0_i32_0 : i32, i32
  }
  func.func @transform_12(%arg0: i32) -> (i32, i32) {
    %c0_i32 = arith.constant 0 : i32
    %c0_i32_0 = arith.constant 0 : i32
    %c0_i32_1 = arith.constant 0 : i32
    return %c0_i32, %c0_i32_0 : i32, i32
  }
  func.func @transform_13(%arg0: i32) -> (i32, i32) {
    %c0_i32 = arith.constant 0 : i32
    %c0_i32_0 = arith.constant 0 : i32
    %c0_i32_1 = arith.constant 0 : i32
    return %c0_i32, %c0_i32_0 : i32, i32
  }
  func.func @transform_14(%arg0: i32) -> (i32, i32) {
    %c0_i32 = arith.constant 0 : i32
    %c0_i32_0 = arith.constant 0 : i32
    %c0_i32_1 = arith.constant 0 : i32
    return %c0_i32, %c0_i32_0 : i32, i32
  }
  func.func @transform_15(%arg0: i32) -> (i32, i32) {
    %c0_i32 = arith.constant 0 : i32
    %c0_i32_0 = arith.constant 0 : i32
    %c0_i32_1 = arith.constant 0 : i32
    return %c0_i32, %c0_i32_0 : i32, i32
  }
  func.func @transform_16(%arg0: i32) -> (i32, i32) {
    %c0_i32 = arith.constant 0 : i32
    %c0_i32_0 = arith.constant 0 : i32
    %c0_i32_1 = arith.constant 0 : i32
    return %c0_i32, %c0_i32_0 : i32, i32
  }
  func.func @transform_17(%arg0: i32) -> (i32, i32) {
    %c0_i32 = arith.constant 0 : i32
    %c0_i32_0 = arith.constant 0 : i32
    %c0_i32_1 = arith.constant 0 : i32
    return %c0_i32, %c0_i32_0 : i32, i32
  }
  func.func @transform_18(%arg0: i32) -> (i32, i32) {
    %c0_i32 = arith.constant 0 : i32
    %c0_i32_0 = arith.constant 0 : i32
    %c0_i32_1 = arith.constant 0 : i32
    return %c0_i32, %c0_i32_0 : i32, i32
  }
  func.func @transform_19(%arg0: i32) -> (i32, i32) {
    %c0_i32 = arith.constant 0 : i32
    %c0_i32_0 = arith.constant 0 : i32
    %c0_i32_1 = arith.constant 0 : i32
    return %c0_i32, %c0_i32_0 : i32, i32
  }
  func.func @transform_20(%arg0: i32) -> (i32, i32) {
    %c0_i32 = arith.constant 0 : i32
    %c0_i32_0 = arith.constant 0 : i32
    %c0_i32_1 = arith.constant 0 : i32
    return %c0_i32, %c0_i32_0 : i32, i32
  }
  func.func @transform_21(%arg0: i32) -> (i32, i32) {
    %c0_i32 = arith.constant 0 : i32
    %c0_i32_0 = arith.constant 0 : i32
    %c0_i32_1 = arith.constant 0 : i32
    return %c0_i32, %c0_i32_0 : i32, i32
  }
  func.func @transform_22(%arg0: i32) -> (i32, i32) {
    %c0_i32 = arith.constant 0 : i32
    %c0_i32_0 = arith.constant 0 : i32
    %c0_i32_1 = arith.constant 0 : i32
    return %c0_i32, %c0_i32_0 : i32, i32
  }
}

</mosaic_0001>

<llo_original>
// kernel: tpu_custom_call.1
$region0: #{tpu_custom_call.1}
  #allocation0 [shape = 'u32[]', space=smem, size = 0x4, offset = 0x4, fixed_abs, tag = 'smem constant byte address 0x4 - core index']
  #allocation1 [shape = 'u32[144,128]{1,0:T(1,128)}', space=vmem, size = 0x12000, scoped, tag = 'internal scratch']
  %s0 = inlined_call_operand.hbm [shape: f32[16,32], index: 0, kind: input, shape index: {}]
  %s1 = inlined_call_operand.hbm [shape: f32[16,32], index: 1, kind: input, shape index: {}]
  %s2 = inlined_call_operand.hbm [shape: f32[16,16], index: 2, kind: input, shape index: {}]
  %s3 = inlined_call_operand.hbm [shape: f32[16,16], index: 3, kind: input, shape index: {}]
  %s4 = inlined_call_operand.vmem [shape: f32[32,96], index: 4, kind: input, shape index: {}]
  %s5 = inlined_call_operand.hbm [shape: f32[1,96], index: 5, kind: input, shape index: {}]
  %s6 = inlined_call_operand.vmem [shape: f32[32,32], index: 6, kind: input, shape index: {}]
  %s7 = inlined_call_operand.hbm [shape: f32[1,32], index: 7, kind: input, shape index: {}]
  %s8 = inlined_call_operand.vmem [shape: f32[32,32], index: 8, kind: input, shape index: {}]
  %s9 = inlined_call_operand.hbm [shape: f32[1,32], index: 9, kind: input, shape index: {}]
  %s10 = inlined_call_operand.vmem [shape: f32[32,64], index: 10, kind: input, shape index: {}]
  %s11 = inlined_call_operand.hbm [shape: f32[1,64], index: 11, kind: input, shape index: {}]
  %s12 = inlined_call_operand.hbm [shape: f32[32,32], index: 12, kind: input, shape index: {}]
  %s13 = inlined_call_operand.hbm [shape: f32[1,32], index: 13, kind: input, shape index: {}]
  %s14 = inlined_call_operand.hbm [shape: f32[1,32], index: 14, kind: input, shape index: {}]
  %s15 = inlined_call_operand.hbm [shape: f32[1,32], index: 15, kind: input, shape index: {}]
  %s16 = inlined_call_operand.hbm [shape: f32[1,32], index: 16, kind: input, shape index: {}]
  %s17 = inlined_call_operand.hbm [shape: f32[1,32], index: 17, kind: input, shape index: {}]
  %s18 = inlined_call_operand.hbm [shape: f32[32,64], index: 18, kind: input, shape index: {}]
  %s19 = inlined_call_operand.vmem [shape: f32[1,64], index: 19, kind: input, shape index: {}]
  %s20 = inlined_call_operand.vmem [shape: f32[64,32], index: 20, kind: input, shape index: {}]
  %s21 = inlined_call_operand.vmem [shape: f32[1,32], index: 21, kind: input, shape index: {}]
  %s22 = inlined_call_operand.hbm [shape: f32[16,32], index: 22, kind: output, shape index: {}]
  %s23 = sld [smem:[#allocation0]]
  $region158: #{tpu_custom_call.1} parent=0
    _
  %s25 = ssub.s32 1, %s23
  %s26 = scalar_select 0, %s25, %s23
  $region1: #{tpu_custom_call.1} parent=0
    #allocation2 [shape = 'u8[8192]{0}', space=vmem, size = 0x2000, scoped, tag = 'input window, operand 0, single buffered']
    #allocation3 [shape = 's32[1]{0}', space=sflag, size = 0x4, scoped, tag = 'scoped memory for tpu_custom_call.1']
    #allocation4 [shape = 's32[1]{0}', space=sflag, size = 0x4, scoped, tag = 'scoped memory for tpu_custom_call.1']
    #allocation5 [shape = 'u8[8192]{0}', space=vmem, size = 0x2000, scoped, tag = 'input window, operand 1, single buffered']
    #allocation6 [shape = 's32[1]{0}', space=sflag, size = 0x4, scoped, tag = 'scoped memory for tpu_custom_call.1']
    #allocation7 [shape = 'u8[8192]{0}', space=vmem, size = 0x2000, scoped, tag = 'input window, operand 2, single buffered']
    #allocation8 [shape = 'u8[8192]{0}', space=vmem, size = 0x2000, scoped, tag = 'input window, operand 3, single buffered']
    #allocation9 [shape = 's32[1]{0}', space=sflag, size = 0x4, scoped, tag = 'scoped memory for tpu_custom_call.1']
    #allocation10 [shape = 'u8[512]{0}', space=vmem, size = 0x400, scoped, tag = 'input window, operand 5, single buffered']
    #allocation11 [shape = 'u8[512]{0}', space=vmem, size = 0x400, scoped, tag = 'input window, operand 7, single buffered']
    #allocation12 [shape = 's32[1]{0}', space=sflag, size = 0x4, scoped, tag = 'scoped memory for tpu_custom_call.1']
    #allocation13 [shape = 'u8[512]{0}', space=vmem, size = 0x400, scoped, tag = 'input window, operand 9, single buffered']
    #allocation14 [shape = 'u8[512]{0}', space=vmem, size = 0x400, scoped, tag = 'input window, operand 11, single buffered']
    #allocation15 [shape = 's32[1]{0}', space=sflag, size = 0x4, scoped, tag = 'scoped memory for tpu_custom_call.1']
    #allocation16 [shape = 'u8[16384]{0}', space=vmem, size = 0x4000, scoped, tag = 'input window, operand 12, single buffered']
    #allocation17 [shape = 'u8[512]{0}', space=vmem, size = 0x400, scoped, tag = 'input window, operand 13, single buffered']
    #allocation18 [shape = 's32[1]{0}', space=sflag, size = 0x4, scoped, tag = 'scoped memory for tpu_custom_call.1']
    #allocation19 [shape = 'u8[512]{0}', space=vmem, size = 0x400, scoped, tag = 'input window, operand 14, single buffered']
    #allocation20 [shape = 'u8[512]{0}', space=vmem, size = 0x400, scoped, tag = 'input window, operand 15, single buffered']
    #allocation21 [shape = 's32[1]{0}', space=sflag, size = 0x4, scoped, tag = 'scoped memory for tpu_custom_call.1']
    #allocation22 [shape = 'u8[512]{0}', space=vmem, size = 0x400, scoped, tag = 'input window, operand 16, single buffered']
    #allocation23 [shape = 'u8[512]{0}', space=vmem, size = 0x400, scoped, tag = 'input window, operand 17, single buffered']
    #allocation24 [shape = 's32[1]{0}', space=sflag, size = 0x4, scoped, tag = 'scoped memory for tpu_custom_call.1']
    #allocation25 [shape = 'u8[16384]{0}', space=vmem, size = 0x4000, scoped, tag = 'input window, operand 18, single buffered']
    #allocation26 [shape = 'u8[8192]{0}', space=vmem, size = 0x2000, scoped, tag = 'output window, operand 0, single buffered']
    %27 = vsyncpa [#allocation3], 0
    %28 = vsyncpa [#allocation6], 0
    %29 = vsyncpa [#allocation9], 0
    %30 = vsyncpa [#allocation12], 0
    %31 = vsyncpa [#allocation15], 0
    %32 = vsyncpa [#allocation18], 0
    %33 = vsyncpa [#allocation21], 0
    %34 = vsyncpa [#allocation24], 0
    %35 = vsyncpa [#allocation4], 0
    // Predicated region
    $region2: #{tpu_custom_call.1} parent=1 // pred_check
      _
    $region3: #{tpu_custom_call.1} parent=1 // pred_check_branch
      %37 = sbr.rel (0) target = $region5
    $region4: #{tpu_custom_call.1} parent=1 // pred_region
      %s39 = ssub.s32 256, 256
      %40 = vsyncadd [#allocation3], %s39
      %s41 = sshll.u32 [#allocation2], 4
      %s42 = int_to_ptr.vmem [resolvable:$true] %s41
      %47 = dma.hbm_to_vmem [thread:$0]  %s0, 256, %s42, [#allocation3], 128, 128, 8
    $region5: #{tpu_custom_call.1} parent=1 // pred_fallthru
      _
    // Predicated region
    $region6: #{tpu_custom_call.1} parent=1 // pred_check
      _
    $region7: #{tpu_custom_call.1} parent=1 // pred_check_branch
      %49 = sbr.rel (0) target = $region9
    $region8: #{tpu_custom_call.1} parent=1 // pred_region
      %s51 = ssub.s32 256, 256
      %52 = vsyncadd [#allocation6], %s51
      %s53 = sshll.u32 [#allocation5], 4
      %s54 = int_to_ptr.vmem [resolvable:$true] %s53
      %59 = dma.hbm_to_vmem [thread:$0]  %s1, 256, %s54, [#allocation6], 128, 128, 8
    $region9: #{tpu_custom_call.1} parent=1 // pred_fallthru
      _
    // Predicated region
    $region10: #{tpu_custom_call.1} parent=1 // pred_check
      _
    $region11: #{tpu_custom_call.1} parent=1 // pred_check_branch
      %61 = sbr.rel (0) target = $region13
    $region12: #{tpu_custom_call.1} parent=1 // pred_region
      %s63 = ssub.s32 256, 256
      %64 = vsyncadd [#allocation6], %s63
      %s65 = sshll.u32 [#allocation7], 4
      %s66 = int_to_ptr.vmem [resolvable:$true] %s65
      %71 = dma.hbm_to_vmem [thread:$0]  %s2, 256, %s66, [#allocation6], 128, 128, 8
    $region13: #{tpu_custom_call.1} parent=1 // pred_fallthru
      _
    // Predicated region
    $region14: #{tpu_custom_call.1} parent=1 // pred_check
      _
    $region15: #{tpu_custom_call.1} parent=1 // pred_check_branch
      %73 = sbr.rel (0) target = $region17
    $region16: #{tpu_custom_call.1} parent=1 // pred_region
      %s75 = ssub.s32 256, 256
      %76 = vsyncadd [#allocation9], %s75
      %s77 = sshll.u32 [#allocation8], 4
      %s78 = int_to_ptr.vmem [resolvable:$true] %s77
      %83 = dma.hbm_to_vmem [thread:$0]  %s3, 256, %s78, [#allocation9], 128, 128, 8
    $region17: #{tpu_custom_call.1} parent=1 // pred_fallthru
      _
    // Predicated region
    $region18: #{tpu_custom_call.1} parent=1 // pred_check
      _
    $region19: #{tpu_custom_call.1} parent=1 // pred_check_branch
      %85 = sbr.rel (0) target = $region21
    $region20: #{tpu_custom_call.1} parent=1 // pred_region
      _
    $region21: #{tpu_custom_call.1} parent=1 // pred_fallthru
      _
    // Predicated region
    $region22: #{tpu_custom_call.1} parent=1 // pred_check
      _
    $region23: #{tpu_custom_call.1} parent=1 // pred_check_branch
      %87 = sbr.rel (0) target = $region25
    $region24: #{tpu_custom_call.1} parent=1 // pred_region
      %s89 = ssub.s32 16, 16
      %90 = vsyncadd [#allocation9], %s89
      %s92 = sshll.u32 [#allocation10], 4
      %s93 = int_to_ptr.vmem [resolvable:$true] %s92
      %95 = dma.hbm_to_vmem [thread:$0]  %s5, 16, %s93, [#allocation9]
    $region25: #{tpu_custom_call.1} parent=1 // pred_fallthru
      _
    // Predicated region
    $region26: #{tpu_custom_call.1} parent=1 // pred_check
      _
    $region27: #{tpu_custom_call.1} parent=1 // pred_check_branch
      %97 = sbr.rel (0) target = $region29
    $region28: #{tpu_custom_call.1} parent=1 // pred_region
      _
    $region29: #{tpu_custom_call.1} parent=1 // pred_fallthru
      _
    // Predicated region
    $region30: #{tpu_custom_call.1} parent=1 // pred_check
      _
    $region31: #{tpu_custom_call.1} parent=1 // pred_check_branch
      %99 = sbr.rel (0) target = $region33
    $region32: #{tpu_custom_call.1} parent=1 // pred_region
      %s101 = ssub.s32 16, 16
      %102 = vsyncadd [#allocation12], %s101
      %s104 = sshll.u32 [#allocation11], 4
      %s105 = int_to_ptr.vmem [resolvable:$true] %s104
      %107 = dma.hbm_to_vmem [thread:$0]  %s7, 16, %s105, [#allocation12]
    $region33: #{tpu_custom_call.1} parent=1 // pred_fallthru
      _
    // Predicated region
    $region34: #{tpu_custom_call.1} parent=1 // pred_check
      _
    $region35: #{tpu_custom_call.1} parent=1 // pred_check_branch
      %109 = sbr.rel (0) target = $region37
    $region36: #{tpu_custom_call.1} parent=1 // pred_region
      _
    $region37: #{tpu_custom_call.1} parent=1 // pred_fallthru
      _
    // Predicated region
    $region38: #{tpu_custom_call.1} parent=1 // pred_check
      _
    $region39: #{tpu_custom_call.1} parent=1 // pred_check_branch
      %111 = sbr.rel (0) target = $region41
    $region40: #{tpu_custom_call.1} parent=1 // pred_region
      %s113 = ssub.s32 16, 16
      %114 = vsyncadd [#allocation12], %s113
      %s116 = sshll.u32 [#allocation13], 4
      %s117 = int_to_ptr.vmem [resolvable:$true] %s116
      %119 = dma.hbm_to_vmem [thread:$0]  %s9, 16, %s117, [#allocation12]
    $region41: #{tpu_custom_call.1} parent=1 // pred_fallthru
      _
    // Predicated region
    $region42: #{tpu_custom_call.1} parent=1 // pred_check
      _
    $region43: #{tpu_custom_call.1} parent=1 // pred_check_branch
      %121 = sbr.rel (0) target = $region45
    $region44: #{tpu_custom_call.1} parent=1 // pred_region
      _
    $region45: #{tpu_custom_call.1} parent=1 // pred_fallthru
      _
    // Predicated region
    $region46: #{tpu_custom_call.1} parent=1 // pred_check
      _
    $region47: #{tpu_custom_call.1} parent=1 // pred_check_branch
      %123 = sbr.rel (0) target = $region49
    $region48: #{tpu_custom_call.1} parent=1 // pred_region
      %s125 = ssub.s32 16, 16
      %126 = vsyncadd [#allocation15], %s125
      %s128 = sshll.u32 [#allocation14], 4
      %s129 = int_to_ptr.vmem [resolvable:$true] %s128
      %131 = dma.hbm_to_vmem [thread:$0]  %s11, 16, %s129, [#allocation15]
    $region49: #{tpu_custom_call.1} parent=1 // pred_fallthru
      _
    // Predicated region
    $region50: #{tpu_custom_call.1} parent=1 // pred_check
      _
    $region51: #{tpu_custom_call.1} parent=1 // pred_check_branch
      %133 = sbr.rel (0) target = $region53
    $region52: #{tpu_custom_call.1} parent=1 // pred_region
      %s135 = ssub.s32 512, 512
      %136 = vsyncadd [#allocation15], %s135
      %s137 = sshll.u32 [#allocation16], 4
      %s138 = int_to_ptr.vmem [resolvable:$true] %s137
      %143 = dma.hbm_to_vmem [thread:$0]  %s12, 512, %s138, [#allocation15], 128, 128, 8
    $region53: #{tpu_custom_call.1} parent=1 // pred_fallthru
      _
    // Predicated region
    $region54: #{tpu_custom_call.1} parent=1 // pred_check
      _
    $region55: #{tpu_custom_call.1} parent=1 // pred_check_branch
      %145 = sbr.rel (0) target = $region57
    $region56: #{tpu_custom_call.1} parent=1 // pred_region
      %s147 = ssub.s32 16, 16
      %148 = vsyncadd [#allocation18], %s147
      %s150 = sshll.u32 [#allocation17], 4
      %s151 = int_to_ptr.vmem [resolvable:$true] %s150
      %153 = dma.hbm_to_vmem [thread:$0]  %s13, 16, %s151, [#allocation18]
    $region57: #{tpu_custom_call.1} parent=1 // pred_fallthru
      _
    // Predicated region
    $region58: #{tpu_custom_call.1} parent=1 // pred_check
      _
    $region59: #{tpu_custom_call.1} parent=1 // pred_check_branch
      %155 = sbr.rel (0) target = $region61
    $region60: #{tpu_custom_call.1} parent=1 // pred_region
      %s157 = ssub.s32 16, 16
      %158 = vsyncadd [#allocation18], %s157
      %s160 = sshll.u32 [#allocation19], 4
      %s161 = int_to_ptr.vmem [resolvable:$true] %s160
      %163 = dma.hbm_to_vmem [thread:$0]  %s14, 16, %s161, [#allocation18]
    $region61: #{tpu_custom_call.1} parent=1 // pred_fallthru
      _
    // Predicated region
    $region62: #{tpu_custom_call.1} parent=1 // pred_check
      _
    $region63: #{tpu_custom_call.1} parent=1 // pred_check_branch
      %165 = sbr.rel (0) target = $region65
    $region64: #{tpu_custom_call.1} parent=1 // pred_region
      %s167 = ssub.s32 16, 16
      %168 = vsyncadd [#allocation21], %s167
      %s170 = sshll.u32 [#allocation20], 4
      %s171 = int_to_ptr.vmem [resolvable:$true] %s170
      %173 = dma.hbm_to_vmem [thread:$0]  %s15, 16, %s171, [#allocation21]
    $region65: #{tpu_custom_call.1} parent=1 // pred_fallthru
      _
    // Predicated region
    $region66: #{tpu_custom_call.1} parent=1 // pred_check
      _
    $region67: #{tpu_custom_call.1} parent=1 // pred_check_branch
      %175 = sbr.rel (0) target = $region69
    $region68: #{tpu_custom_call.1} parent=1 // pred_region
      %s177 = ssub.s32 16, 16
      %178 = vsyncadd [#allocation21], %s177
      %s180 = sshll.u32 [#allocation22], 4
      %s181 = int_to_ptr.vmem [resolvable:$true] %s180
      %183 = dma.hbm_to_vmem [thread:$0]  %s16, 16, %s181, [#allocation21]
    $region69: #{tpu_custom_call.1} parent=1 // pred_fallthru
      _
    // Predicated region
    $region70: #{tpu_custom_call.1} parent=1 // pred_check
      _
    $region71: #{tpu_custom_call.1} parent=1 // pred_check_branch
      %185 = sbr.rel (0) target = $region73
    $region72: #{tpu_custom_call.1} parent=1 // pred_region
      %s187 = ssub.s32 16, 16
      %188 = vsyncadd [#allocation24], %s187
      %s190 = sshll.u32 [#allocation23], 4
      %s191 = int_to_ptr.vmem [resolvable:$true] %s190
      %193 = dma.hbm_to_vmem [thread:$0]  %s17, 16, %s191, [#allocation24]
    $region73: #{tpu_custom_call.1} parent=1 // pred_fallthru
      _
    // Predicated region
    $region74: #{tpu_custom_call.1} parent=1 // pred_check
      _
    $region75: #{tpu_custom_call.1} parent=1 // pred_check_branch
      %195 = sbr.rel (0) target = $region77
    $region76: #{tpu_custom_call.1} parent=1 // pred_region
      %s197 = ssub.s32 512, 512
      %198 = vsyncadd [#allocation24], %s197
      %s199 = sshll.u32 [#allocation25], 4
      %s200 = int_to_ptr.vmem [resolvable:$true] %s199
      %205 = dma.hbm_to_vmem [thread:$0]  %s18, 512, %s200, [#allocation24], 128, 128, 8
    $region77: #{tpu_custom_call.1} parent=1 // pred_fallthru
      _
    // Predicated region
    $region78: #{tpu_custom_call.1} parent=1 // pred_check
      _
    $region79: #{tpu_custom_call.1} parent=1 // pred_check_branch
      %207 = sbr.rel (0) target = $region81
    $region80: #{tpu_custom_call.1} parent=1 // pred_region
      _
    $region81: #{tpu_custom_call.1} parent=1 // pred_fallthru
      _
    // Predicated region
    $region82: #{tpu_custom_call.1} parent=1 // pred_check
      _
    $region83: #{tpu_custom_call.1} parent=1 // pred_check_branch
      %209 = sbr.rel (0) target = $region85
    $region84: #{tpu_custom_call.1} parent=1 // pred_region
      _
    $region85: #{tpu_custom_call.1} parent=1 // pred_fallthru
      _
    // Predicated region
    $region86: #{tpu_custom_call.1} parent=1 // pred_check
      _
    $region87: #{tpu_custom_call.1} parent=1 // pred_check_branch
      %211 = sbr.rel (0) target = $region89
    $region88: #{tpu_custom_call.1} parent=1 // pred_region
      _
    $region89: #{tpu_custom_call.1} parent=1 // pred_fallthru
      _
    // Predicated region
    $region90: #{tpu_custom_call.1} parent=1 // pred_check
      _
    $region91: #{tpu_custom_call.1} parent=1 // pred_check_branch
      %213 = sbr.rel (0) target = $region93
    $region92: #{tpu_custom_call.1} parent=1 // pred_region
      %214 = dma.done [#allocation3], 256
    $region93: #{tpu_custom_call.1} parent=1 // pred_fallthru
      _
    // Predicated region
    $region94: #{tpu_custom_call.1} parent=1 // pred_check
      _
    $region95: #{tpu_custom_call.1} parent=1 // pred_check_branch
      %216 = sbr.rel (0) target = $region97
    $region96: #{tpu_custom_call.1} parent=1 // pred_region
      %217 = dma.done [#allocation6], 256
    $region97: #{tpu_custom_call.1} parent=1 // pred_fallthru
      _
    // Predicated region
    $region98: #{tpu_custom_call.1} parent=1 // pred_check
      _
    $region99: #{tpu_custom_call.1} parent=1 // pred_check_branch
      %219 = sbr.rel (0) target = $region101
    $region100: #{tpu_custom_call.1} parent=1 // pred_region
      %220 = dma.done [#allocation6], 256
    $region101: #{tpu_custom_call.1} parent=1 // pred_fallthru
      _
    // Predicated region
    $region102: #{tpu_custom_call.1} parent=1 // pred_check
      _
    $region103: #{tpu_custom_call.1} parent=1 // pred_check_branch
      %222 = sbr.rel (0) target = $region105
    $region104: #{tpu_custom_call.1} parent=1 // pred_region
      %223 = dma.done [#allocation9], 256
    $region105: #{tpu_custom_call.1} parent=1 // pred_fallthru
      _
    // Predicated region
    $region106: #{tpu_custom_call.1} parent=1 // pred_check
      _
    $region107: #{tpu_custom_call.1} parent=1 // pred_check_branch
      %225 = sbr.rel (0) target = $region109
    $region108: #{tpu_custom_call.1} parent=1 // pred_region
      %226 = dma.done [#allocation9], 16
    $region109: #{tpu_custom_call.1} parent=1 // pred_fallthru
      _
    // Predicated region
    $region110: #{tpu_custom_call.1} parent=1 // pred_check
      _
    $region111: #{tpu_custom_call.1} parent=1 // pred_check_branch
      %228 = sbr.rel (0) target = $region113
    $region112: #{tpu_custom_call.1} parent=1 // pred_region
      %229 = dma.done [#allocation12], 16
    $region113: #{tpu_custom_call.1} parent=1 // pred_fallthru
      _
    // Predicated region
    $region114: #{tpu_custom_call.1} parent=1 // pred_check
      _
    $region115: #{tpu_custom_call.1} parent=1 // pred_check_branch
      %231 = sbr.rel (0) target = $region117
    $region116: #{tpu_custom_call.1} parent=1 // pred_region
      %232 = dma.done [#allocation12], 16
    $region117: #{tpu_custom_call.1} parent=1 // pred_fallthru
      _
    // Predicated region
    $region118: #{tpu_custom_call.1} parent=1 // pred_check
      _
    $region119: #{tpu_custom_call.1} parent=1 // pred_check_branch
      %234 = sbr.rel (0) target = $region121
    $region120: #{tpu_custom_call.1} parent=1 // pred_region
      %235 = dma.done [#allocation15], 16
    $region121: #{tpu_custom_call.1} parent=1 // pred_fallthru
      _
    // Predicated region
    $region122: #{tpu_custom_call.1} parent=1 // pred_check
      _
    $region123: #{tpu_custom_call.1} parent=1 // pred_check_branch
      %237 = sbr.rel (0) target = $region125
    $region124: #{tpu_custom_call.1} parent=1 // pred_region
      %238 = dma.done [#allocation15], 512
    $region125: #{tpu_custom_call.1} parent=1 // pred_fallthru
      _
    // Predicated region
    $region126: #{tpu_custom_call.1} parent=1 // pred_check
      _
    $region127: #{tpu_custom_call.1} parent=1 // pred_check_branch
      %240 = sbr.rel (0) target = $region129
    $region128: #{tpu_custom_call.1} parent=1 // pred_region
      %241 = dma.done [#allocation18], 16
    $region129: #{tpu_custom_call.1} parent=1 // pred_fallthru
      _
    // Predicated region
    $region130: #{tpu_custom_call.1} parent=1 // pred_check
      _
    $region131: #{tpu_custom_call.1} parent=1 // pred_check_branch
      %243 = sbr.rel (0) target = $region133
    $region132: #{tpu_custom_call.1} parent=1 // pred_region
      %244 = dma.done [#allocation18], 16
    $region133: #{tpu_custom_call.1} parent=1 // pred_fallthru
      _
    // Predicated region
    $region134: #{tpu_custom_call.1} parent=1 // pred_check
      _
    $region135: #{tpu_custom_call.1} parent=1 // pred_check_branch
      %246 = sbr.rel (0) target = $region137
    $region136: #{tpu_custom_call.1} parent=1 // pred_region
      %247 = dma.done [#allocation21], 16
    $region137: #{tpu_custom_call.1} parent=1 // pred_fallthru
      _
    // Predicated region
    $region138: #{tpu_custom_call.1} parent=1 // pred_check
      _
    $region139: #{tpu_custom_call.1} parent=1 // pred_check_branch
      %249 = sbr.rel (0) target = $region141
    $region140: #{tpu_custom_call.1} parent=1 // pred_region
      %250 = dma.done [#allocation21], 16
    $region141: #{tpu_custom_call.1} parent=1 // pred_fallthru
      _
    // Predicated region
    $region142: #{tpu_custom_call.1} parent=1 // pred_check
      _
    $region143: #{tpu_custom_call.1} parent=1 // pred_check_branch
      %252 = sbr.rel (0) target = $region145
    $region144: #{tpu_custom_call.1} parent=1 // pred_region
      %253 = dma.done [#allocation24], 16
    $region145: #{tpu_custom_call.1} parent=1 // pred_fallthru
      _
    // Predicated region
    $region146: #{tpu_custom_call.1} parent=1 // pred_check
      _
    $region147: #{tpu_custom_call.1} parent=1 // pred_check_branch
      %255 = sbr.rel (0) target = $region149
    $region148: #{tpu_custom_call.1} parent=1 // pred_region
      %256 = dma.done [#allocation24], 512
    $region149: #{tpu_custom_call.1} parent=1 // pred_fallthru
      _
    %v257 = vld [vmem:[#allocation2] sm:$0xff]
    %v258 = vld [vmem:[#allocation2 + $0x8] sm:$0xff]
    %v259 = vld [vmem:[#allocation5] sm:$0xff]
    %v260 = vld [vmem:[#allocation5 + $0x8] sm:$0xff]
    %v261 = vld [vmem:[%s4] sm:$0xff]
    %v262 = vld [vmem:[%s4 + $0x8] sm:$0xff]
    %v263 = vld [vmem:[%s4 + $0x10] sm:$0xff]
    %v264 = vld [vmem:[%s4 + $0x18] sm:$0xff]
    %v265 = vld [vmem:[#allocation10] sm:$0x1]
    %v267 = vlaneseq
    %v268 = vshrl.u32 %v267, 7
    %v269 = vsub.s32 0, %v268
    %v270 = vrot.slane %v265, %v269
    %vm272 = vcmask 261120
    %v274 = vsel %vm272, %v257, 0
    %v277 = vsel %vm272, %v258, 0
    %279 = vmatprep.subr.mxu0 0.0
    %280 = vmatpush1.msra.mxu0 %v261
    %281 = vmatprep.subr.mxu0 0.0
    %282 = vmatpush1.msra.mxu0 %v262
    %283 = vmatprep.subr.mxu0 0.0
    %284 = vmatpush1.msra.mxu0 %v263
    %285 = vmatprep.subr.mxu0 0.0
    %286 = vmatpush1.msra.mxu0 %v264
    %287 = vmatprep.subr.mxu0 0.0
    %288 = vmatpush1.msra.mxu0 0.0
    %289 = vmatprep.subr.mxu0 0.0
    %290 = vmatpush1.msra.mxu0 0.0
    %291 = vmatprep.subr.mxu0 0.0
    %292 = vmatpush1.msra.mxu0 0.0
    %293 = vmatprep.subr.mxu0 0.0
    %294 = vmatpush1.msra.mxu0 0.0
    %295 = vmatprep.subr.mxu0 0.0
    %296 = vmatpush1.msra.mxu0 0.0
    %297 = vmatprep.subr.mxu0 0.0
    %298 = vmatpush1.msra.mxu0 0.0
    %299 = vmatprep.subr.mxu0 0.0
    %300 = vmatpush1.msra.mxu0 0.0
    %301 = vmatprep.subr.mxu0 0.0
    %302 = vmatpush1.msra.mxu0 0.0
    %303 = vmatprep.subr.mxu0 0.0
    %304 = vmatpush1.msra.mxu0 0.0
    %305 = vmatprep.subr.mxu0 0.0
    %306 = vmatpush1.msra.mxu0 0.0
    %307 = vmatprep.subr.mxu0 0.0
    %308 = vmatpush1.msra.mxu0 0.0
    %309 = vmatprep.subr.mxu0 0.0
    %310 = vmatpush1.msra.mxu0 0.0
    %311 = vmatprep.subr.mxu0 0.0
    %312 = vmatpush1.msra.mxu0 0.0
    %313 = vmatprep.subr.mxu0 0.0
    %314 = vmatpush1.msra.mxu0 0.0
    %315 = vmatprep.subr.mxu0 0.0
    %316 = vmatpush1.msra.mxu0 0.0
    %317 = vmatprep.subr.mxu0 0.0
    %318 = vmatpush1.msra.mxu0 0.0
    %319 = vmatprep.subr.mxu0 0.0
    %320 = vmatpush1.msra.mxu0 0.0
    %321 = vmatprep.subr.mxu0 0.0
    %322 = vmatpush1.msra.mxu0 0.0
    %323 = vmatprep.subr.mxu0 0.0
    %324 = vmatpush1.msra.mxu0 0.0
    %325 = vmatprep.subr.mxu0 0.0
    %326 = vmatpush1.msra.mxu0 0.0
    %327 = vmatprep.subr.mxu0 0.0
    %328 = vmatpush1.msra.mxu0 0.0
    %329 = vmatprep.subr.mxu0 0.0
    %330 = vmatpush1.msra.mxu0 0.0
    %331 = vmatprep.subr.mxu0 0.0
    %332 = vmatpush1.msra.mxu0 0.0
    %333 = vmatprep.subr.mxu0 0.0
    %334 = vmatpush1.msra.mxu0 0.0
    %335 = vmatprep.subr.mxu0 0.0
    %336 = vmatpush1.msra.mxu0 0.0
    %337 = vmatprep.subr.mxu0 0.0
    %338 = vmatpush1.msra.mxu0 0.0
    %339 = vmatprep.subr.mxu0 0.0
    %340 = vmatpush1.msra.mxu0 0.0
    %341 = vmatprep.subr.mxu0 0.0
    %342 = vmatpush1.msra.mxu0 0.0
    %343 = vmatprep.mubr.f32.mxu0 0.0
    %344 = vmatmul.mubr.f32.gmra.mrb[0].mxu0 %v274
    %v345 = vpop.f32.mrb[0].mxu0
    %v346 = vadd.f32 %v270, %v345
    %v347 = vpop.f32.mrb[0].mxu0
    %348 = vmatprep.mubr.f32.mxu0 0.0
    %349 = vmatmul.mubr.f32.gmra.mrb[0].mxu0 %v277
    %v350 = vpop.f32.mrb[0].mxu0
    %v351 = vadd.f32 %v270, %v350
    %v352 = vpop.f32.mrb[0].mxu0
    %353 = vdwg.mxu0
    %v354 = vld [vmem:[#allocation7] sm:$0xff]
    %v355 = vld [vmem:[#allocation7 + $0x8] sm:$0xff]
    %v356 = vld [vmem:[%s6] sm:$0xff]
    %v357 = vld [vmem:[%s6 + $0x8] sm:$0xff]
    %v358 = vld [vmem:[%s6 + $0x10] sm:$0xff]
    %v359 = vld [vmem:[%s6 + $0x18] sm:$0xff]
    %v360 = vld [vmem:[#allocation11] sm:$0x1]
    %363 = vrot.lane.b32.xlu0 %v346, 96
    %v364 = vpop.permute.xlu0 %363
    %365 = vrot.lane.b32.xlu0 %v351, 96
    %v366 = vpop.permute.xlu0 %365
    %vm367 = vcmask 64512
    %v368 = vsel %vm367, %v346, 0
    %v370 = vsel %vm367, %v351, 0
    %v372 = vsel %vm367, %v364, 0
    %v374 = vsel %vm367, %v366, 0
    %376 = vmatprep.subr.mxu0 0.0
    %377 = vmatpush1.xpose.msra.mxu0 %v372
    %378 = vmatprep.subr.mxu0 0.0
    %379 = vmatpush1.xpose.msra.mxu0 %v374
    %380 = vmatprep.subr.mxu0 0.0
    %381 = vmatpush1.xpose.msra.mxu0 0.0
    %382 = vmatprep.subr.mxu0 0.0
    %383 = vmatpush1.xpose.msra.mxu0 0.0
    %384 = vmatprep.subr.mxu0 0.0
    %385 = vmatpush1.xpose.msra.mxu0 0.0
    %386 = vmatprep.subr.mxu0 0.0
    %387 = vmatpush1.xpose.msra.mxu0 0.0
    %388 = vmatprep.subr.mxu0 0.0
    %389 = vmatpush1.xpose.msra.mxu0 0.0
    %390 = vmatprep.subr.mxu0 0.0
    %391 = vmatpush1.xpose.msra.mxu0 0.0
    %392 = vmatprep.subr.mxu0 0.0
    %393 = vmatpush1.xpose.msra.mxu0 0.0
    %394 = vmatprep.subr.mxu0 0.0
    %395 = vmatpush1.xpose.msra.mxu0 0.0
    %396 = vmatprep.subr.mxu0 0.0
    %397 = vmatpush1.xpose.msra.mxu0 0.0
    %398 = vmatprep.subr.mxu0 0.0
    %399 = vmatpush1.xpose.msra.mxu0 0.0
    %400 = vmatprep.subr.mxu0 0.0
    %401 = vmatpush1.xpose.msra.mxu0 0.0
    %402 = vmatprep.subr.mxu0 0.0
    %403 = vmatpush1.xpose.msra.mxu0 0.0
    %404 = vmatprep.subr.mxu0 0.0
    %405 = vmatpush1.xpose.msra.mxu0 0.0
    %406 = vmatprep.subr.mxu0 0.0
    %407 = vmatpush1.xpose.msra.mxu0 0.0
    %408 = vmatprep.subr.mxu0 0.0
    %409 = vmatpush1.xpose.msra.mxu0 0.0
    %410 = vmatprep.subr.mxu0 0.0
    %411 = vmatpush1.xpose.msra.mxu0 0.0
    %412 = vmatprep.subr.mxu0 0.0
    %413 = vmatpush1.xpose.msra.mxu0 0.0
    %414 = vmatprep.subr.mxu0 0.0
    %415 = vmatpush1.xpose.msra.mxu0 0.0
    %416 = vmatprep.subr.mxu0 0.0
    %417 = vmatpush1.xpose.msra.mxu0 0.0
    %418 = vmatprep.subr.mxu0 0.0
    %419 = vmatpush1.xpose.msra.mxu0 0.0
    %420 = vmatprep.subr.mxu0 0.0
    %421 = vmatpush1.xpose.msra.mxu0 0.0
    %422 = vmatprep.subr.mxu0 0.0
    %423 = vmatpush1.xpose.msra.mxu0 0.0
    %424 = vmatprep.subr.mxu0 0.0
    %425 = vmatpush1.xpose.msra.mxu0 0.0
    %426 = vmatprep.subr.mxu0 0.0
    %427 = vmatpush1.xpose.msra.mxu0 0.0
    %428 = vmatprep.subr.mxu0 0.0
    %429 = vmatpush1.xpose.msra.mxu0 0.0
    %430 = vmatprep.subr.mxu0 0.0
    %431 = vmatpush1.xpose.msra.mxu0 0.0
    %432 = vmatprep.subr.mxu0 0.0
    %433 = vmatpush1.xpose.msra.mxu0 0.0
    %434 = vmatprep.subr.mxu0 0.0
    %435 = vmatpush1.xpose.msra.mxu0 0.0
    %436 = vmatprep.subr.mxu0 0.0
    %437 = vmatpush1.xpose.msra.mxu0 0.0
    %438 = vmatprep.subr.mxu0 0.0
    %439 = vmatpush1.xpose.msra.mxu0 0.0
    %440 = vmatprep.mubr.f32.mxu0 0.0
    %441 = vmatmul.mubr.f32.gmra.mrb[0].mxu0 %v368
    %v442 = vpop.f32.mrb[0].mxu0
    %v443 = vadd.f32 0.0, %v442
    %v444 = vpop.f32.mrb[0].mxu0
    %445 = vmatprep.mubr.f32.mxu0 0.0
    %446 = vmatmul.mubr.f32.gmra.mrb[0].mxu0 %v370
    %v447 = vpop.f32.mrb[0].mxu0
    %v448 = vadd.f32 0.0, %v447
    %v449 = vpop.f32.mrb[0].mxu0
    %450 = vdwg.mxu0
    %v451 = vmul.f32 %v443, 0.35355338
    %v452 = vmul.f32 %v448, 0.35355338
    %v453 = vadd.f32 %v451, %v354
    %v454 = vadd.f32 %v452, %v355
    %vm455 = vcmask 130048
    %v456 = vsel %vm455, %v453, -inf
    %457 = vmax.xlane.f32.xlu0 %v456
    %v458 = vpop.xlane.xlu0 %457
    %v459 = vsel %vm455, %v454, -inf
    %460 = vmax.xlane.f32.xlu0 %v459
    %v461 = vpop.xlane.xlu0 %460
    %v462 = vsub.f32 %v453, %v458
    %v463 = vsub.f32 %v454, %v461
    %v464 = vmul.f32 %v462, 1.442695
    %v465 = vpow.pop %v464
    %v466 = vmul.f32 %v463, 1.442695
    %v467 = vpow.pop %v466
    %v468 = vsel %vm455, %v465, 0.0
    %469 = vadd.xlane.f32.xlu0 %v468
    %v470 = vpop.xlane.xlu0 %469
    %v471 = vsel %vm455, %v467, 0.0
    %472 = vadd.xlane.f32.xlu0 %v471
    %v473 = vpop.xlane.xlu0 %472
    %v474 = vrcp.pop %v470
    %v475 = vrcp.pop %v473
    %v476 = vmul.f32 %v470, %v474
    %v477 = vmul.f32 %v473, %v475
    %v478 = vsub.f32 2.0, %v476
    %v479 = vsub.f32 2.0, %v477
    %v480 = vmul.f32 %v474, %v478
    %v481 = vmul.f32 %v475, %v479
    %v482 = vmul.f32 %v465, %v480
    %v483 = vmul.f32 %v467, %v481
    %484 = vrot.lane.b32.xlu0 %v346, 64
    %v485 = vpop.permute.xlu0 %484
    %486 = vrot.lane.b32.xlu0 %v351, 64
    %v487 = vpop.permute.xlu0 %486
    %v491 = vsel %vm455, %v482, 0
    %v494 = vsel %vm455, %v483, 0
    %496 = vmatprep.subr.mxu0 0.0
    %497 = vmatpush1.msra.mxu0 %v485
    %498 = vmatprep.subr.mxu0 0.0
    %499 = vmatpush1.msra.mxu0 %v487
    %500 = vmatprep.subr.mxu0 0.0
    %501 = vmatpush1.msra.mxu0 0.0
    %502 = vmatprep.subr.mxu0 0.0
    %503 = vmatpush1.msra.mxu0 0.0
    %504 = vmatprep.subr.mxu0 0.0
    %505 = vmatpush1.msra.mxu0 0.0
    %506 = vmatprep.subr.mxu0 0.0
    %507 = vmatpush1.msra.mxu0 0.0
    %508 = vmatprep.subr.mxu0 0.0
    %509 = vmatpush1.msra.mxu0 0.0
    %510 = vmatprep.subr.mxu0 0.0
    %511 = vmatpush1.msra.mxu0 0.0
    %512 = vmatprep.subr.mxu0 0.0
    %513 = vmatpush1.msra.mxu0 0.0
    %514 = vmatprep.subr.mxu0 0.0
    %515 = vmatpush1.msra.mxu0 0.0
    %516 = vmatprep.subr.mxu0 0.0
    %517 = vmatpush1.msra.mxu0 0.0
    %518 = vmatprep.subr.mxu0 0.0
    %519 = vmatpush1.msra.mxu0 0.0
    %520 = vmatprep.subr.mxu0 0.0
    %521 = vmatpush1.msra.mxu0 0.0
    %522 = vmatprep.subr.mxu0 0.0
    %523 = vmatpush1.msra.mxu0 0.0
    %524 = vmatprep.subr.mxu0 0.0
    %525 = vmatpush1.msra.mxu0 0.0
    %526 = vmatprep.subr.mxu0 0.0
    %527 = vmatpush1.msra.mxu0 0.0
    %528 = vmatprep.subr.mxu0 0.0
    %529 = vmatpush1.msra.mxu0 0.0
    %530 = vmatprep.subr.mxu0 0.0
    %531 = vmatpush1.msra.mxu0 0.0
    %532 = vmatprep.subr.mxu0 0.0
    %533 = vmatpush1.msra.mxu0 0.0
    %534 = vmatprep.subr.mxu0 0.0
    %535 = vmatpush1.msra.mxu0 0.0
    %536 = vmatprep.subr.mxu0 0.0
    %537 = vmatpush1.msra.mxu0 0.0
    %538 = vmatprep.subr.mxu0 0.0
    %539 = vmatpush1.msra.mxu0 0.0
    %540 = vmatprep.subr.mxu0 0.0
    %541 = vmatpush1.msra.mxu0 0.0
    %542 = vmatprep.subr.mxu0 0.0
    %543 = vmatpush1.msra.mxu0 0.0
    %544 = vmatprep.subr.mxu0 0.0
    %545 = vmatpush1.msra.mxu0 0.0
    %546 = vmatprep.subr.mxu0 0.0
    %547 = vmatpush1.msra.mxu0 0.0
    %548 = vmatprep.subr.mxu0 0.0
    %549 = vmatpush1.msra.mxu0 0.0
    %550 = vmatprep.subr.mxu0 0.0
    %551 = vmatpush1.msra.mxu0 0.0
    %552 = vmatprep.subr.mxu0 0.0
    %553 = vmatpush1.msra.mxu0 0.0
    %554 = vmatprep.subr.mxu0 0.0
    %555 = vmatpush1.msra.mxu0 0.0
    %556 = vmatprep.subr.mxu0 0.0
    %557 = vmatpush1.msra.mxu0 0.0
    %558 = vmatprep.subr.mxu0 0.0
    %559 = vmatpush1.msra.mxu0 0.0
    %560 = vmatprep.mubr.f32.mxu0 0.0
    %561 = vmatmul.mubr.f32.gmra.mrb[0].mxu0 %v491
    %v562 = vpop.f32.mrb[0].mxu0
    %v563 = vadd.f32 0.0, %v562
    %v564 = vpop.f32.mrb[0].mxu0
    %565 = vmatprep.mubr.f32.mxu0 0.0
    %566 = vmatmul.mubr.f32.gmra.mrb[0].mxu0 %v494
    %v567 = vpop.f32.mrb[0].mxu0
    %v568 = vadd.f32 0.0, %v567
    %v569 = vpop.f32.mrb[0].mxu0
    %570 = vdwg.mxu0
    %571 = vrot.lane.b32.xlu0 %v346, 120
    %v572 = vpop.permute.xlu0 %571
    %573 = vrot.lane.b32.xlu0 %v351, 120
    %v574 = vpop.permute.xlu0 %573
    %575 = vrot.lane.b32.xlu0 %v346, 88
    %v576 = vpop.permute.xlu0 %575
    %577 = vrot.lane.b32.xlu0 %v351, 88
    %v578 = vpop.permute.xlu0 %577
    %v579 = vsel %vm367, %v572, 0
    %v581 = vsel %vm367, %v574, 0
    %v583 = vsel %vm367, %v576, 0
    %v585 = vsel %vm367, %v578, 0
    %587 = vmatprep.subr.mxu0 0.0
    %588 = vmatpush1.xpose.msra.mxu0 %v583
    %589 = vmatprep.subr.mxu0 0.0
    %590 = vmatpush1.xpose.msra.mxu0 %v585
    %591 = vmatprep.subr.mxu0 0.0
    %592 = vmatpush1.xpose.msra.mxu0 0.0
    %593 = vmatprep.subr.mxu0 0.0
    %594 = vmatpush1.xpose.msra.mxu0 0.0
    %595 = vmatprep.subr.mxu0 0.0
    %596 = vmatpush1.xpose.msra.mxu0 0.0
    %597 = vmatprep.subr.mxu0 0.0
    %598 = vmatpush1.xpose.msra.mxu0 0.0
    %599 = vmatprep.subr.mxu0 0.0
    %600 = vmatpush1.xpose.msra.mxu0 0.0
    %601 = vmatprep.subr.mxu0 0.0
    %602 = vmatpush1.xpose.msra.mxu0 0.0
    %603 = vmatprep.subr.mxu0 0.0
    %604 = vmatpush1.xpose.msra.mxu0 0.0
    %605 = vmatprep.subr.mxu0 0.0
    %606 = vmatpush1.xpose.msra.mxu0 0.0
    %607 = vmatprep.subr.mxu0 0.0
    %608 = vmatpush1.xpose.msra.mxu0 0.0
    %609 = vmatprep.subr.mxu0 0.0
    %610 = vmatpush1.xpose.msra.mxu0 0.0
    %611 = vmatprep.subr.mxu0 0.0
    %612 = vmatpush1.xpose.msra.mxu0 0.0
    %613 = vmatprep.subr.mxu0 0.0
    %614 = vmatpush1.xpose.msra.mxu0 0.0
    %615 = vmatprep.subr.mxu0 0.0
    %616 = vmatpush1.xpose.msra.mxu0 0.0
    %617 = vmatprep.subr.mxu0 0.0
    %618 = vmatpush1.xpose.msra.mxu0 0.0
    %619 = vmatprep.subr.mxu0 0.0
    %620 = vmatpush1.xpose.msra.mxu0 0.0
    %621 = vmatprep.subr.mxu0 0.0
    %622 = vmatpush1.xpose.msra.mxu0 0.0
    %623 = vmatprep.subr.mxu0 0.0
    %624 = vmatpush1.xpose.msra.mxu0 0.0
    %625 = vmatprep.subr.mxu0 0.0
    %626 = vmatpush1.xpose.msra.mxu0 0.0
    %627 = vmatprep.subr.mxu0 0.0
    %628 = vmatpush1.xpose.msra.mxu0 0.0
    %629 = vmatprep.subr.mxu0 0.0
    %630 = vmatpush1.xpose.msra.mxu0 0.0
    %631 = vmatprep.subr.mxu0 0.0
    %632 = vmatpush1.xpose.msra.mxu0 0.0
    %633 = vmatprep.subr.mxu0 0.0
    %634 = vmatpush1.xpose.msra.mxu0 0.0
    %635 = vmatprep.subr.mxu0 0.0
    %636 = vmatpush1.xpose.msra.mxu0 0.0
    %637 = vmatprep.subr.mxu0 0.0
    %638 = vmatpush1.xpose.msra.mxu0 0.0
    %639 = vmatprep.subr.mxu0 0.0
    %640 = vmatpush1.xpose.msra.mxu0 0.0
    %641 = vmatprep.subr.mxu0 0.0
    %642 = vmatpush1.xpose.msra.mxu0 0.0
    %643 = vmatprep.subr.mxu0 0.0
    %644 = vmatpush1.xpose.msra.mxu0 0.0
    %645 = vmatprep.subr.mxu0 0.0
    %646 = vmatpush1.xpose.msra.mxu0 0.0
    %647 = vmatprep.subr.mxu0 0.0
    %648 = vmatpush1.xpose.msra.mxu0 0.0
    %649 = vmatprep.subr.mxu0 0.0
    %650 = vmatpush1.xpose.msra.mxu0 0.0
    %651 = vmatprep.mubr.f32.mxu0 0.0
    %652 = vmatmul.mubr.f32.gmra.mrb[0].mxu0 %v579
    %v653 = vpop.f32.mrb[0].mxu0
    %v654 = vadd.f32 0.0, %v653
    %v655 = vpop.f32.mrb[0].mxu0
    %656 = vmatprep.mubr.f32.mxu0 0.0
    %657 = vmatmul.mubr.f32.gmra.mrb[0].mxu0 %v581
    %v658 = vpop.f32.mrb[0].mxu0
    %v659 = vadd.f32 0.0, %v658
    %v660 = vpop.f32.mrb[0].mxu0
    %661 = vdwg.mxu0
    %v662 = vmul.f32 %v654, 0.35355338
    %v663 = vmul.f32 %v659, 0.35355338
    %v664 = vadd.f32 %v662, %v354
    %v665 = vadd.f32 %v663, %v355
    %v666 = vsel %vm455, %v664, -inf
    %667 = vmax.xlane.f32.xlu0 %v666
    %v668 = vpop.xlane.xlu0 %667
    %v669 = vsel %vm455, %v665, -inf
    %670 = vmax.xlane.f32.xlu0 %v669
    %v671 = vpop.xlane.xlu0 %670
    %v672 = vsub.f32 %v664, %v668
    %v673 = vsub.f32 %v665, %v671
    %v674 = vmul.f32 %v672, 1.442695
    %v675 = vpow.pop %v674
    %v676 = vmul.f32 %v673, 1.442695
    %v677 = vpow.pop %v676
    %v678 = vsel %vm455, %v675, 0.0
    %679 = vadd.xlane.f32.xlu0 %v678
    %v680 = vpop.xlane.xlu0 %679
    %v681 = vsel %vm455, %v677, 0.0
    %682 = vadd.xlane.f32.xlu0 %v681
    %v683 = vpop.xlane.xlu0 %682
    %v684 = vrcp.pop %v680
    %v685 = vrcp.pop %v683
    %v686 = vmul.f32 %v680, %v684
    %v687 = vmul.f32 %v683, %v685
    %v688 = vsub.f32 2.0, %v686
    %v689 = vsub.f32 2.0, %v687
    %v690 = vmul.f32 %v684, %v688
    %v691 = vmul.f32 %v685, %v689
    %v692 = vmul.f32 %v675, %v690
    %v693 = vmul.f32 %v677, %v691
    %694 = vrot.lane.b32.xlu0 %v346, 56
    %v695 = vpop.permute.xlu0 %694
    %696 = vrot.lane.b32.xlu0 %v351, 56
    %v697 = vpop.permute.xlu0 %696
    %v701 = vsel %vm455, %v692, 0
    %v704 = vsel %vm455, %v693, 0
    %706 = vmatprep.subr.mxu0 0.0
    %707 = vmatpush1.msra.mxu0 %v695
    %708 = vmatprep.subr.mxu0 0.0
    %709 = vmatpush1.msra.mxu0 %v697
    %710 = vmatprep.subr.mxu0 0.0
    %711 = vmatpush1.msra.mxu0 0.0
    %712 = vmatprep.subr.mxu0 0.0
    %713 = vmatpush1.msra.mxu0 0.0
    %714 = vmatprep.subr.mxu0 0.0
    %715 = vmatpush1.msra.mxu0 0.0
    %716 = vmatprep.subr.mxu0 0.0
    %717 = vmatpush1.msra.mxu0 0.0
    %718 = vmatprep.subr.mxu0 0.0
    %719 = vmatpush1.msra.mxu0 0.0
    %720 = vmatprep.subr.mxu0 0.0
    %721 = vmatpush1.msra.mxu0 0.0
    %722 = vmatprep.subr.mxu0 0.0
    %723 = vmatpush1.msra.mxu0 0.0
    %724 = vmatprep.subr.mxu0 0.0
    %725 = vmatpush1.msra.mxu0 0.0
    %726 = vmatprep.subr.mxu0 0.0
    %727 = vmatpush1.msra.mxu0 0.0
    %728 = vmatprep.subr.mxu0 0.0
    %729 = vmatpush1.msra.mxu0 0.0
    %730 = vmatprep.subr.mxu0 0.0
    %731 = vmatpush1.msra.mxu0 0.0
    %732 = vmatprep.subr.mxu0 0.0
    %733 = vmatpush1.msra.mxu0 0.0
    %734 = vmatprep.subr.mxu0 0.0
    %735 = vmatpush1.msra.mxu0 0.0
    %736 = vmatprep.subr.mxu0 0.0
    %737 = vmatpush1.msra.mxu0 0.0
    %738 = vmatprep.subr.mxu0 0.0
    %739 = vmatpush1.msra.mxu0 0.0
    %740 = vmatprep.subr.mxu0 0.0
    %741 = vmatpush1.msra.mxu0 0.0
    %742 = vmatprep.subr.mxu0 0.0
    %743 = vmatpush1.msra.mxu0 0.0
    %744 = vmatprep.subr.mxu0 0.0
    %745 = vmatpush1.msra.mxu0 0.0
    %746 = vmatprep.subr.mxu0 0.0
    %747 = vmatpush1.msra.mxu0 0.0
    %748 = vmatprep.subr.mxu0 0.0
    %749 = vmatpush1.msra.mxu0 0.0
    %750 = vmatprep.subr.mxu0 0.0
    %751 = vmatpush1.msra.mxu0 0.0
    %752 = vmatprep.subr.mxu0 0.0
    %753 = vmatpush1.msra.mxu0 0.0
    %754 = vmatprep.subr.mxu0 0.0
    %755 = vmatpush1.msra.mxu0 0.0
    %756 = vmatprep.subr.mxu0 0.0
    %757 = vmatpush1.msra.mxu0 0.0
    %758 = vmatprep.subr.mxu0 0.0
    %759 = vmatpush1.msra.mxu0 0.0
    %760 = vmatprep.subr.mxu0 0.0
    %761 = vmatpush1.msra.mxu0 0.0
    %762 = vmatprep.subr.mxu0 0.0
    %763 = vmatpush1.msra.mxu0 0.0
    %764 = vmatprep.subr.mxu0 0.0
    %765 = vmatpush1.msra.mxu0 0.0
    %766 = vmatprep.subr.mxu0 0.0
    %767 = vmatpush1.msra.mxu0 0.0
    %768 = vmatprep.subr.mxu0 0.0
    %769 = vmatpush1.msra.mxu0 0.0
    %770 = vmatprep.mubr.f32.mxu0 0.0
    %771 = vmatmul.mubr.f32.gmra.mrb[0].mxu0 %v701
    %v772 = vpop.f32.mrb[0].mxu0
    %v773 = vadd.f32 0.0, %v772
    %v774 = vpop.f32.mrb[0].mxu0
    %775 = vmatprep.mubr.f32.mxu0 0.0
    %776 = vmatmul.mubr.f32.gmra.mrb[0].mxu0 %v704
    %v777 = vpop.f32.mrb[0].mxu0
    %v778 = vadd.f32 0.0, %v777
    %v779 = vpop.f32.mrb[0].mxu0
    %780 = vdwg.mxu0
    %781 = vrot.lane.b32.xlu0 %v346, 112
    %v782 = vpop.permute.xlu0 %781
    %783 = vrot.lane.b32.xlu0 %v351, 112
    %v784 = vpop.permute.xlu0 %783
    %785 = vrot.lane.b32.xlu0 %v346, 80
    %v786 = vpop.permute.xlu0 %785
    %787 = vrot.lane.b32.xlu0 %v351, 80
    %v788 = vpop.permute.xlu0 %787
    %v789 = vsel %vm367, %v782, 0
    %v791 = vsel %vm367, %v784, 0
    %v793 = vsel %vm367, %v786, 0
    %v795 = vsel %vm367, %v788, 0
    %797 = vmatprep.subr.mxu0 0.0
    %798 = vmatpush1.xpose.msra.mxu0 %v793
    %799 = vmatprep.subr.mxu0 0.0
    %800 = vmatpush1.xpose.msra.mxu0 %v795
    %801 = vmatprep.subr.mxu0 0.0
    %802 = vmatpush1.xpose.msra.mxu0 0.0
    %803 = vmatprep.subr.mxu0 0.0
    %804 = vmatpush1.xpose.msra.mxu0 0.0
    %805 = vmatprep.subr.mxu0 0.0
    %806 = vmatpush1.xpose.msra.mxu0 0.0
    %807 = vmatprep.subr.mxu0 0.0
    %808 = vmatpush1.xpose.msra.mxu0 0.0
    %809 = vmatprep.subr.mxu0 0.0
    %810 = vmatpush1.xpose.msra.mxu0 0.0
    %811 = vmatprep.subr.mxu0 0.0
    %812 = vmatpush1.xpose.msra.mxu0 0.0
    %813 = vmatprep.subr.mxu0 0.0
    %814 = vmatpush1.xpose.msra.mxu0 0.0
    %815 = vmatprep.subr.mxu0 0.0
    %816 = vmatpush1.xpose.msra.mxu0 0.0
    %817 = vmatprep.subr.mxu0 0.0
    %818 = vmatpush1.xpose.msra.mxu0 0.0
    %819 = vmatprep.subr.mxu0 0.0
    %820 = vmatpush1.xpose.msra.mxu0 0.0
    %821 = vmatprep.subr.mxu0 0.0
    %822 = vmatpush1.xpose.msra.mxu0 0.0
    %823 = vmatprep.subr.mxu0 0.0
    %824 = vmatpush1.xpose.msra.mxu0 0.0
    %825 = vmatprep.subr.mxu0 0.0
    %826 = vmatpush1.xpose.msra.mxu0 0.0
    %827 = vmatprep.subr.mxu0 0.0
    %828 = vmatpush1.xpose.msra.mxu0 0.0
    %829 = vmatprep.subr.mxu0 0.0
    %830 = vmatpush1.xpose.msra.mxu0 0.0
    %831 = vmatprep.subr.mxu0 0.0
    %832 = vmatpush1.xpose.msra.mxu0 0.0
    %833 = vmatprep.subr.mxu0 0.0
    %834 = vmatpush1.xpose.msra.mxu0 0.0
    %835 = vmatprep.subr.mxu0 0.0
    %836 = vmatpush1.xpose.msra.mxu0 0.0
    %837 = vmatprep.subr.mxu0 0.0
    %838 = vmatpush1.xpose.msra.mxu0 0.0
    %839 = vmatprep.subr.mxu0 0.0
    %840 = vmatpush1.xpose.msra.mxu0 0.0
    %841 = vmatprep.subr.mxu0 0.0
    %842 = vmatpush1.xpose.msra.mxu0 0.0
    %843 = vmatprep.subr.mxu0 0.0
    %844 = vmatpush1.xpose.msra.mxu0 0.0
    %845 = vmatprep.subr.mxu0 0.0
    %846 = vmatpush1.xpose.msra.mxu0 0.0
    %847 = vmatprep.subr.mxu0 0.0
    %848 = vmatpush1.xpose.msra.mxu0 0.0
    %849 = vmatprep.subr.mxu0 0.0
    %850 = vmatpush1.xpose.msra.mxu0 0.0
    %851 = vmatprep.subr.mxu0 0.0
    %852 = vmatpush1.xpose.msra.mxu0 0.0
    %853 = vmatprep.subr.mxu0 0.0
    %854 = vmatpush1.xpose.msra.mxu0 0.0
    %855 = vmatprep.subr.mxu0 0.0
    %856 = vmatpush1.xpose.msra.mxu0 0.0
    %857 = vmatprep.subr.mxu0 0.0
    %858 = vmatpush1.xpose.msra.mxu0 0.0
    %859 = vmatprep.subr.mxu0 0.0
    %860 = vmatpush1.xpose.msra.mxu0 0.0
    %861 = vmatprep.mubr.f32.mxu0 0.0
    %862 = vmatmul.mubr.f32.gmra.mrb[0].mxu0 %v789
    %v863 = vpop.f32.mrb[0].mxu0
    %v864 = vadd.f32 0.0, %v863
    %v865 = vpop.f32.mrb[0].mxu0
    %866 = vmatprep.mubr.f32.mxu0 0.0
    %867 = vmatmul.mubr.f32.gmra.mrb[0].mxu0 %v791
    %v868 = vpop.f32.mrb[0].mxu0
    %v869 = vadd.f32 0.0, %v868
    %v870 = vpop.f32.mrb[0].mxu0
    %871 = vdwg.mxu0
    %v872 = vmul.f32 %v864, 0.35355338
    %v873 = vmul.f32 %v869, 0.35355338
    %v874 = vadd.f32 %v872, %v354
    %v875 = vadd.f32 %v873, %v355
    %v876 = vsel %vm455, %v874, -inf
    %877 = vmax.xlane.f32.xlu0 %v876
    %v878 = vpop.xlane.xlu0 %877
    %v879 = vsel %vm455, %v875, -inf
    %880 = vmax.xlane.f32.xlu0 %v879
    %v881 = vpop.xlane.xlu0 %880
    %v882 = vsub.f32 %v874, %v878
    %v883 = vsub.f32 %v875, %v881
    %v884 = vmul.f32 %v882, 1.442695
    %v885 = vpow.pop %v884
    %v886 = vmul.f32 %v883, 1.442695
    %v887 = vpow.pop %v886
    %v888 = vsel %vm455, %v885, 0.0
    %889 = vadd.xlane.f32.xlu0 %v888
    %v890 = vpop.xlane.xlu0 %889
    %v891 = vsel %vm455, %v887, 0.0
    %892 = vadd.xlane.f32.xlu0 %v891
    %v893 = vpop.xlane.xlu0 %892
    %v894 = vrcp.pop %v890
    %v895 = vrcp.pop %v893
    %v896 = vmul.f32 %v890, %v894
    %v897 = vmul.f32 %v893, %v895
    %v898 = vsub.f32 2.0, %v896
    %v899 = vsub.f32 2.0, %v897
    %v900 = vmul.f32 %v894, %v898
    %v901 = vmul.f32 %v895, %v899
    %v902 = vmul.f32 %v885, %v900
    %v903 = vmul.f32 %v887, %v901
    %904 = vrot.lane.b32.xlu0 %v346, 48
    %v905 = vpop.permute.xlu0 %904
    %906 = vrot.lane.b32.xlu0 %v351, 48
    %v907 = vpop.permute.xlu0 %906
    %v911 = vsel %vm455, %v902, 0
    %v914 = vsel %vm455, %v903, 0
    %916 = vmatprep.subr.mxu0 0.0
    %917 = vmatpush1.msra.mxu0 %v905
    %918 = vmatprep.subr.mxu0 0.0
    %919 = vmatpush1.msra.mxu0 %v907
    %920 = vmatprep.subr.mxu0 0.0
    %921 = vmatpush1.msra.mxu0 0.0
    %922 = vmatprep.subr.mxu0 0.0
    %923 = vmatpush1.msra.mxu0 0.0
    %924 = vmatprep.subr.mxu0 0.0
    %925 = vmatpush1.msra.mxu0 0.0
    %926 = vmatprep.subr.mxu0 0.0
    %927 = vmatpush1.msra.mxu0 0.0
    %928 = vmatprep.subr.mxu0 0.0
    %929 = vmatpush1.msra.mxu0 0.0
    %930 = vmatprep.subr.mxu0 0.0
    %931 = vmatpush1.msra.mxu0 0.0
    %932 = vmatprep.subr.mxu0 0.0
    %933 = vmatpush1.msra.mxu0 0.0
    %934 = vmatprep.subr.mxu0 0.0
    %935 = vmatpush1.msra.mxu0 0.0
    %936 = vmatprep.subr.mxu0 0.0
    %937 = vmatpush1.msra.mxu0 0.0
    %938 = vmatprep.subr.mxu0 0.0
    %939 = vmatpush1.msra.mxu0 0.0
    %940 = vmatprep.subr.mxu0 0.0
    %941 = vmatpush1.msra.mxu0 0.0
    %942 = vmatprep.subr.mxu0 0.0
    %943 = vmatpush1.msra.mxu0 0.0
    %944 = vmatprep.subr.mxu0 0.0
    %945 = vmatpush1.msra.mxu0 0.0
    %946 = vmatprep.subr.mxu0 0.0
    %947 = vmatpush1.msra.mxu0 0.0
    %948 = vmatprep.subr.mxu0 0.0
    %949 = vmatpush1.msra.mxu0 0.0
    %950 = vmatprep.subr.mxu0 0.0
    %951 = vmatpush1.msra.mxu0 0.0
    %952 = vmatprep.subr.mxu0 0.0
    %953 = vmatpush1.msra.mxu0 0.0
    %954 = vmatprep.subr.mxu0 0.0
    %955 = vmatpush1.msra.mxu0 0.0
    %956 = vmatprep.subr.mxu0 0.0
    %957 = vmatpush1.msra.mxu0 0.0
    %958 = vmatprep.subr.mxu0 0.0
    %959 = vmatpush1.msra.mxu0 0.0
    %960 = vmatprep.subr.mxu0 0.0
    %961 = vmatpush1.msra.mxu0 0.0
    %962 = vmatprep.subr.mxu0 0.0
    %963 = vmatpush1.msra.mxu0 0.0
    %964 = vmatprep.subr.mxu0 0.0
    %965 = vmatpush1.msra.mxu0 0.0
    %966 = vmatprep.subr.mxu0 0.0
    %967 = vmatpush1.msra.mxu0 0.0
    %968 = vmatprep.subr.mxu0 0.0
    %969 = vmatpush1.msra.mxu0 0.0
    %970 = vmatprep.subr.mxu0 0.0
    %971 = vmatpush1.msra.mxu0 0.0
    %972 = vmatprep.subr.mxu0 0.0
    %973 = vmatpush1.msra.mxu0 0.0
    %974 = vmatprep.subr.mxu0 0.0
    %975 = vmatpush1.msra.mxu0 0.0
    %976 = vmatprep.subr.mxu0 0.0
    %977 = vmatpush1.msra.mxu0 0.0
    %978 = vmatprep.subr.mxu0 0.0
    %979 = vmatpush1.msra.mxu0 0.0
    %980 = vmatprep.mubr.f32.mxu0 0.0
    %981 = vmatmul.mubr.f32.gmra.mrb[0].mxu0 %v911
    %v982 = vpop.f32.mrb[0].mxu0
    %v983 = vadd.f32 0.0, %v982
    %v984 = vpop.f32.mrb[0].mxu0
    %985 = vmatprep.mubr.f32.mxu0 0.0
    %986 = vmatmul.mubr.f32.gmra.mrb[0].mxu0 %v914
    %v987 = vpop.f32.mrb[0].mxu0
    %v988 = vadd.f32 0.0, %v987
    %v989 = vpop.f32.mrb[0].mxu0
    %990 = vdwg.mxu0
    %991 = vrot.lane.b32.xlu0 %v346, 104
    %v992 = vpop.permute.xlu0 %991
    %993 = vrot.lane.b32.xlu0 %v351, 104
    %v994 = vpop.permute.xlu0 %993
    %995 = vrot.lane.b32.xlu0 %v346, 72
    %v996 = vpop.permute.xlu0 %995
    %997 = vrot.lane.b32.xlu0 %v351, 72
    %v998 = vpop.permute.xlu0 %997
    %v999 = vsel %vm367, %v992, 0
    %v1001 = vsel %vm367, %v994, 0
    %v1003 = vsel %vm367, %v996, 0
    %v1005 = vsel %vm367, %v998, 0
    %1007 = vmatprep.subr.mxu0 0.0
    %1008 = vmatpush1.xpose.msra.mxu0 %v1003
    %1009 = vmatprep.subr.mxu0 0.0
    %1010 = vmatpush1.xpose.msra.mxu0 %v1005
    %1011 = vmatprep.subr.mxu0 0.0
    %1012 = vmatpush1.xpose.msra.mxu0 0.0
    %1013 = vmatprep.subr.mxu0 0.0
    %1014 = vmatpush1.xpose.msra.mxu0 0.0
    %1015 = vmatprep.subr.mxu0 0.0
    %1016 = vmatpush1.xpose.msra.mxu0 0.0
    %1017 = vmatprep.subr.mxu0 0.0
    %1018 = vmatpush1.xpose.msra.mxu0 0.0
    %1019 = vmatprep.subr.mxu0 0.0
    %1020 = vmatpush1.xpose.msra.mxu0 0.0
    %1021 = vmatprep.subr.mxu0 0.0
    %1022 = vmatpush1.xpose.msra.mxu0 0.0
    %1023 = vmatprep.subr.mxu0 0.0
    %1024 = vmatpush1.xpose.msra.mxu0 0.0
    %1025 = vmatprep.subr.mxu0 0.0
    %1026 = vmatpush1.xpose.msra.mxu0 0.0
    %1027 = vmatprep.subr.mxu0 0.0
    %1028 = vmatpush1.xpose.msra.mxu0 0.0
    %1029 = vmatprep.subr.mxu0 0.0
    %1030 = vmatpush1.xpose.msra.mxu0 0.0
    %1031 = vmatprep.subr.mxu0 0.0
    %1032 = vmatpush1.xpose.msra.mxu0 0.0
    %1033 = vmatprep.subr.mxu0 0.0
    %1034 = vmatpush1.xpose.msra.mxu0 0.0
    %1035 = vmatprep.subr.mxu0 0.0
    %1036 = vmatpush1.xpose.msra.mxu0 0.0
    %1037 = vmatprep.subr.mxu0 0.0
    %1038 = vmatpush1.xpose.msra.mxu0 0.0
    %1039 = vmatprep.subr.mxu0 0.0
    %1040 = vmatpush1.xpose.msra.mxu0 0.0
    %1041 = vmatprep.subr.mxu0 0.0
    %1042 = vmatpush1.xpose.msra.mxu0 0.0
    %1043 = vmatprep.subr.mxu0 0.0
    %1044 = vmatpush1.xpose.msra.mxu0 0.0
    %1045 = vmatprep.subr.mxu0 0.0
    %1046 = vmatpush1.xpose.msra.mxu0 0.0
    %1047 = vmatprep.subr.mxu0 0.0
    %1048 = vmatpush1.xpose.msra.mxu0 0.0
    %1049 = vmatprep.subr.mxu0 0.0
    %1050 = vmatpush1.xpose.msra.mxu0 0.0
    %1051 = vmatprep.subr.mxu0 0.0
    %1052 = vmatpush1.xpose.msra.mxu0 0.0
    %1053 = vmatprep.subr.mxu0 0.0
    %1054 = vmatpush1.xpose.msra.mxu0 0.0
    %1055 = vmatprep.subr.mxu0 0.0
    %1056 = vmatpush1.xpose.msra.mxu0 0.0
    %1057 = vmatprep.subr.mxu0 0.0
    %1058 = vmatpush1.xpose.msra.mxu0 0.0
    %1059 = vmatprep.subr.mxu0 0.0
    %1060 = vmatpush1.xpose.msra.mxu0 0.0
    %1061 = vmatprep.subr.mxu0 0.0
    %1062 = vmatpush1.xpose.msra.mxu0 0.0
    %1063 = vmatprep.subr.mxu0 0.0
    %1064 = vmatpush1.xpose.msra.mxu0 0.0
    %1065 = vmatprep.subr.mxu0 0.0
    %1066 = vmatpush1.xpose.msra.mxu0 0.0
    %1067 = vmatprep.subr.mxu0 0.0
    %1068 = vmatpush1.xpose.msra.mxu0 0.0
    %1069 = vmatprep.subr.mxu0 0.0
    %1070 = vmatpush1.xpose.msra.mxu0 0.0
    %1071 = vmatprep.mubr.f32.mxu0 0.0
    %1072 = vmatmul.mubr.f32.gmra.mrb[0].mxu0 %v999
    %v1073 = vpop.f32.mrb[0].mxu0
    %v1074 = vadd.f32 0.0, %v1073
    %v1075 = vpop.f32.mrb[0].mxu0
    %1076 = vmatprep.mubr.f32.mxu0 0.0
    %1077 = vmatmul.mubr.f32.gmra.mrb[0].mxu0 %v1001
    %v1078 = vpop.f32.mrb[0].mxu0
    %v1079 = vadd.f32 0.0, %v1078
    %v1080 = vpop.f32.mrb[0].mxu0
    %1081 = vdwg.mxu0
    %v1082 = vmul.f32 %v1074, 0.35355338
    %v1083 = vmul.f32 %v1079, 0.35355338
    %v1084 = vadd.f32 %v1082, %v354
    %v1085 = vadd.f32 %v1083, %v355
    %v1086 = vsel %vm455, %v1084, -inf
    %1087 = vmax.xlane.f32.xlu0 %v1086
    %v1088 = vpop.xlane.xlu0 %1087
    %v1089 = vsel %vm455, %v1085, -inf
    %1090 = vmax.xlane.f32.xlu0 %v1089
    %v1091 = vpop.xlane.xlu0 %1090
    %v1092 = vsub.f32 %v1084, %v1088
    %v1093 = vsub.f32 %v1085, %v1091
    %v1094 = vmul.f32 %v1092, 1.442695
    %v1095 = vpow.pop %v1094
    %v1096 = vmul.f32 %v1093, 1.442695
    %v1097 = vpow.pop %v1096
    %v1098 = vsel %vm455, %v1095, 0.0
    %1099 = vadd.xlane.f32.xlu0 %v1098
    %v1100 = vpop.xlane.xlu0 %1099
    %v1101 = vsel %vm455, %v1097, 0.0
    %1102 = vadd.xlane.f32.xlu0 %v1101
    %v1103 = vpop.xlane.xlu0 %1102
    %v1104 = vrcp.pop %v1100
    %v1105 = vrcp.pop %v1103
    %v1106 = vmul.f32 %v1100, %v1104
    %v1107 = vmul.f32 %v1103, %v1105
    %v1108 = vsub.f32 2.0, %v1106
    %v1109 = vsub.f32 2.0, %v1107
    %v1110 = vmul.f32 %v1104, %v1108
    %v1111 = vmul.f32 %v1105, %v1109
    %v1112 = vmul.f32 %v1095, %v1110
    %v1113 = vmul.f32 %v1097, %v1111
    %1114 = vrot.lane.b32.xlu0 %v346, 40
    %v1115 = vpop.permute.xlu0 %1114
    %1116 = vrot.lane.b32.xlu0 %v351, 40
    %v1117 = vpop.permute.xlu0 %1116
    %v1121 = vsel %vm455, %v1112, 0
    %v1124 = vsel %vm455, %v1113, 0
    %1126 = vmatprep.subr.mxu0 0.0
    %1127 = vmatpush1.msra.mxu0 %v1115
    %1128 = vmatprep.subr.mxu0 0.0
    %1129 = vmatpush1.msra.mxu0 %v1117
    %1130 = vmatprep.subr.mxu0 0.0
    %1131 = vmatpush1.msra.mxu0 0.0
    %1132 = vmatprep.subr.mxu0 0.0
    %1133 = vmatpush1.msra.mxu0 0.0
    %1134 = vmatprep.subr.mxu0 0.0
    %1135 = vmatpush1.msra.mxu0 0.0
    %1136 = vmatprep.subr.mxu0 0.0
    %1137 = vmatpush1.msra.mxu0 0.0
    %1138 = vmatprep.subr.mxu0 0.0
    %1139 = vmatpush1.msra.mxu0 0.0
    %1140 = vmatprep.subr.mxu0 0.0
    %1141 = vmatpush1.msra.mxu0 0.0
    %1142 = vmatprep.subr.mxu0 0.0
    %1143 = vmatpush1.msra.mxu0 0.0
    %1144 = vmatprep.subr.mxu0 0.0
    %1145 = vmatpush1.msra.mxu0 0.0
    %1146 = vmatprep.subr.mxu0 0.0
    %1147 = vmatpush1.msra.mxu0 0.0
    %1148 = vmatprep.subr.mxu0 0.0
    %1149 = vmatpush1.msra.mxu0 0.0
    %1150 = vmatprep.subr.mxu0 0.0
    %1151 = vmatpush1.msra.mxu0 0.0
    %1152 = vmatprep.subr.mxu0 0.0
    %1153 = vmatpush1.msra.mxu0 0.0
    %1154 = vmatprep.subr.mxu0 0.0
    %1155 = vmatpush1.msra.mxu0 0.0
    %1156 = vmatprep.subr.mxu0 0.0
    %1157 = vmatpush1.msra.mxu0 0.0
    %1158 = vmatprep.subr.mxu0 0.0
    %1159 = vmatpush1.msra.mxu0 0.0
    %1160 = vmatprep.subr.mxu0 0.0
    %1161 = vmatpush1.msra.mxu0 0.0
    %1162 = vmatprep.subr.mxu0 0.0
    %1163 = vmatpush1.msra.mxu0 0.0
    %1164 = vmatprep.subr.mxu0 0.0
    %1165 = vmatpush1.msra.mxu0 0.0
    %1166 = vmatprep.subr.mxu0 0.0
    %1167 = vmatpush1.msra.mxu0 0.0
    %1168 = vmatprep.subr.mxu0 0.0
    %1169 = vmatpush1.msra.mxu0 0.0
    %1170 = vmatprep.subr.mxu0 0.0
    %1171 = vmatpush1.msra.mxu0 0.0
    %1172 = vmatprep.subr.mxu0 0.0
    %1173 = vmatpush1.msra.mxu0 0.0
    %1174 = vmatprep.subr.mxu0 0.0
    %1175 = vmatpush1.msra.mxu0 0.0
    %1176 = vmatprep.subr.mxu0 0.0
    %1177 = vmatpush1.msra.mxu0 0.0
    %1178 = vmatprep.subr.mxu0 0.0
    %1179 = vmatpush1.msra.mxu0 0.0
    %1180 = vmatprep.subr.mxu0 0.0
    %1181 = vmatpush1.msra.mxu0 0.0
    %1182 = vmatprep.subr.mxu0 0.0
    %1183 = vmatpush1.msra.mxu0 0.0
    %1184 = vmatprep.subr.mxu0 0.0
    %1185 = vmatpush1.msra.mxu0 0.0
    %1186 = vmatprep.subr.mxu0 0.0
    %1187 = vmatpush1.msra.mxu0 0.0
    %1188 = vmatprep.subr.mxu0 0.0
    %1189 = vmatpush1.msra.mxu0 0.0
    %1190 = vmatprep.mubr.f32.mxu0 0.0
    %1191 = vmatmul.mubr.f32.gmra.mrb[0].mxu0 %v1121
    %v1192 = vpop.f32.mrb[0].mxu0
    %v1193 = vadd.f32 0.0, %v1192
    %v1194 = vpop.f32.mrb[0].mxu0
    %1195 = vmatprep.mubr.f32.mxu0 0.0
    %1196 = vmatmul.mubr.f32.gmra.mrb[0].mxu0 %v1124
    %v1197 = vpop.f32.mrb[0].mxu0
    %v1198 = vadd.f32 0.0, %v1197
    %v1199 = vpop.f32.mrb[0].mxu0
    %1200 = vdwg.mxu0
    %1203 = vrot.lane.b32.xlu0 %v773, 8
    %v1204 = vpop.permute.xlu0 %1203
    %1205 = vrot.lane.b32.xlu0 %v778, 8
    %v1206 = vpop.permute.xlu0 %1205
    %1211 = vrot.lane.b32.xlu0 %v983, 16
    %v1212 = vpop.permute.xlu0 %1211
    %1213 = vrot.lane.b32.xlu0 %v988, 16
    %v1214 = vpop.permute.xlu0 %1213
    %1219 = vrot.lane.b32.xlu0 %v1193, 24
    %v1220 = vpop.permute.xlu0 %1219
    %1221 = vrot.lane.b32.xlu0 %v1198, 24
    %v1222 = vpop.permute.xlu0 %1221
    %v1225 = vsel %vm367, %v563, %v1204
    %v1226 = vsel %vm367, %v568, %v1206
    %v1227 = vsel %vm455, %v1225, %v1212
    %v1228 = vsel %vm455, %v1226, %v1214
    %vm1229 = vcmask 195584
    %v1230 = vsel %vm1229, %v1227, %v1220
    %v1231 = vsel %vm1229, %v1228, %v1222
    %v1233 = vlaneseq
    %v1234 = vshrl.u32 %v1233, 7
    %v1235 = vsub.s32 0, %v1234
    %v1236 = vrot.slane %v360, %v1235
    %v1239 = vsel %vm272, %v1230, 0
    %v1242 = vsel %vm272, %v1231, 0
    %1244 = vmatprep.subr.mxu0 0.0
    %1245 = vmatpush1.msra.mxu0 %v356
    %1246 = vmatprep.subr.mxu0 0.0
    %1247 = vmatpush1.msra.mxu0 %v357
    %1248 = vmatprep.subr.mxu0 0.0
    %1249 = vmatpush1.msra.mxu0 %v358
    %1250 = vmatprep.subr.mxu0 0.0
    %1251 = vmatpush1.msra.mxu0 %v359
    %1252 = vmatprep.subr.mxu0 0.0
    %1253 = vmatpush1.msra.mxu0 0.0
    %1254 = vmatprep.subr.mxu0 0.0
    %1255 = vmatpush1.msra.mxu0 0.0
    %1256 = vmatprep.subr.mxu0 0.0
    %1257 = vmatpush1.msra.mxu0 0.0
    %1258 = vmatprep.subr.mxu0 0.0
    %1259 = vmatpush1.msra.mxu0 0.0
    %1260 = vmatprep.subr.mxu0 0.0
    %1261 = vmatpush1.msra.mxu0 0.0
    %1262 = vmatprep.subr.mxu0 0.0
    %1263 = vmatpush1.msra.mxu0 0.0
    %1264 = vmatprep.subr.mxu0 0.0
    %1265 = vmatpush1.msra.mxu0 0.0
    %1266 = vmatprep.subr.mxu0 0.0
    %1267 = vmatpush1.msra.mxu0 0.0
    %1268 = vmatprep.subr.mxu0 0.0
    %1269 = vmatpush1.msra.mxu0 0.0
    %1270 = vmatprep.subr.mxu0 0.0
    %1271 = vmatpush1.msra.mxu0 0.0
    %1272 = vmatprep.subr.mxu0 0.0
    %1273 = vmatpush1.msra.mxu0 0.0
    %1274 = vmatprep.subr.mxu0 0.0
    %1275 = vmatpush1.msra.mxu0 0.0
    %1276 = vmatprep.subr.mxu0 0.0
    %1277 = vmatpush1.msra.mxu0 0.0
    %1278 = vmatprep.subr.mxu0 0.0
    %1279 = vmatpush1.msra.mxu0 0.0
    %1280 = vmatprep.subr.mxu0 0.0
    %1281 = vmatpush1.msra.mxu0 0.0
    %1282 = vmatprep.subr.mxu0 0.0
    %1283 = vmatpush1.msra.mxu0 0.0
    %1284 = vmatprep.subr.mxu0 0.0
    %1285 = vmatpush1.msra.mxu0 0.0
    %1286 = vmatprep.subr.mxu0 0.0
    %1287 = vmatpush1.msra.mxu0 0.0
    %1288 = vmatprep.subr.mxu0 0.0
    %1289 = vmatpush1.msra.mxu0 0.0
    %1290 = vmatprep.subr.mxu0 0.0
    %1291 = vmatpush1.msra.mxu0 0.0
    %1292 = vmatprep.subr.mxu0 0.0
    %1293 = vmatpush1.msra.mxu0 0.0
    %1294 = vmatprep.subr.mxu0 0.0
    %1295 = vmatpush1.msra.mxu0 0.0
    %1296 = vmatprep.subr.mxu0 0.0
    %1297 = vmatpush1.msra.mxu0 0.0
    %1298 = vmatprep.subr.mxu0 0.0
    %1299 = vmatpush1.msra.mxu0 0.0
    %1300 = vmatprep.subr.mxu0 0.0
    %1301 = vmatpush1.msra.mxu0 0.0
    %1302 = vmatprep.subr.mxu0 0.0
    %1303 = vmatpush1.msra.mxu0 0.0
    %1304 = vmatprep.subr.mxu0 0.0
    %1305 = vmatpush1.msra.mxu0 0.0
    %1306 = vmatprep.subr.mxu0 0.0
    %1307 = vmatpush1.msra.mxu0 0.0
    %1308 = vmatprep.mubr.f32.mxu0 0.0
    %1309 = vmatmul.mubr.f32.gmra.mrb[0].mxu0 %v1239
    %v1310 = vpop.f32.mrb[0].mxu0
    %v1311 = vadd.f32 %v1236, %v1310
    %v1312 = vpop.f32.mrb[0].mxu0
    %1313 = vmatprep.mubr.f32.mxu0 0.0
    %1314 = vmatmul.mubr.f32.gmra.mrb[0].mxu0 %v1242
    %v1315 = vpop.f32.mrb[0].mxu0
    %v1316 = vadd.f32 %v1236, %v1315
    %v1317 = vpop.f32.mrb[0].mxu0
    %1318 = vdwg.mxu0
    %v1319 = vadd.f32 %v257, %v1311
    %v1320 = vadd.f32 %v258, %v1316
    %v1321 = vld [vmem:[#allocation19] sm:$0x1]
    %v1322 = vld [vmem:[#allocation20] sm:$0x1]
    %v1323 = vsel %vm272, %v1319, 0.0
    %1324 = vadd.xlane.f32.xlu0 %v1323
    %v1325 = vpop.xlane.xlu0 %1324
    %v1326 = vsel %vm272, %v1320, 0.0
    %1327 = vadd.xlane.f32.xlu0 %v1326
    %v1328 = vpop.xlane.xlu0 %1327
    %v1329 = vrcp.pop 32.0
    %v1330 = vmul.f32 %v1325, %v1329
    %v1331 = vmul.f32 %v1328, %v1329
    %v1332 = vsub.f32 %v1319, %v1330
    %v1333 = vsub.f32 %v1320, %v1331
    %v1334 = vmul.f32 %v1332, %v1332
    %v1335 = vmul.f32 %v1333, %v1333
    %v1336 = vsel %vm272, %v1334, 0.0
    %1337 = vadd.xlane.f32.xlu0 %v1336
    %v1338 = vpop.xlane.xlu0 %1337
    %v1339 = vsel %vm272, %v1335, 0.0
    %1340 = vadd.xlane.f32.xlu0 %v1339
    %v1341 = vpop.xlane.xlu0 %1340
    %v1342 = vmul.f32 %v1338, %v1329
    %v1343 = vmul.f32 %v1341, %v1329
    %v1344 = vadd.f32 %v1342, 1e-05
    %v1345 = vadd.f32 %v1343, 1e-05
    %v1346 = vrsqrt.pop %v1344
    %v1347 = vrsqrt.pop %v1345
    %v1348 = vmul.f32 %v1332, %v1346
    %v1349 = vmul.f32 %v1333, %v1347
    %v1351 = vlaneseq
    %v1352 = vshrl.u32 %v1351, 7
    %v1353 = vsub.s32 0, %v1352
    %v1354 = vrot.slane %v1321, %v1353
    %v1356 = vmul.f32 %v1348, %v1354
    %v1357 = vmul.f32 %v1349, %v1354
    %v1359 = vlaneseq
    %v1360 = vshrl.u32 %v1359, 7
    %v1361 = vsub.s32 0, %v1360
    %v1362 = vrot.slane %v1322, %v1361
    %v1364 = vadd.f32 %v1356, %v1362
    %v1365 = vadd.f32 %v1357, %v1362
    %v1366 = vld [vmem:[%s8] sm:$0xff]
    %v1367 = vld [vmem:[%s8 + $0x8] sm:$0xff]
    %v1368 = vld [vmem:[%s8 + $0x10] sm:$0xff]
    %v1369 = vld [vmem:[%s8 + $0x18] sm:$0xff]
    %v1370 = vld [vmem:[#allocation13] sm:$0x1]
    %v1372 = vlaneseq
    %v1373 = vshrl.u32 %v1372, 7
    %v1374 = vsub.s32 0, %v1373
    %v1375 = vrot.slane %v1370, %v1374
    %v1378 = vsel %vm272, %v1364, 0
    %v1381 = vsel %vm272, %v1365, 0
    %1383 = vmatprep.subr.mxu0 0.0
    %1384 = vmatpush1.msra.mxu0 %v1366
    %1385 = vmatprep.subr.mxu0 0.0
    %1386 = vmatpush1.msra.mxu0 %v1367
    %1387 = vmatprep.subr.mxu0 0.0
    %1388 = vmatpush1.msra.mxu0 %v1368
    %1389 = vmatprep.subr.mxu0 0.0
    %1390 = vmatpush1.msra.mxu0 %v1369
    %1391 = vmatprep.subr.mxu0 0.0
    %1392 = vmatpush1.msra.mxu0 0.0
    %1393 = vmatprep.subr.mxu0 0.0
    %1394 = vmatpush1.msra.mxu0 0.0
    %1395 = vmatprep.subr.mxu0 0.0
    %1396 = vmatpush1.msra.mxu0 0.0
    %1397 = vmatprep.subr.mxu0 0.0
    %1398 = vmatpush1.msra.mxu0 0.0
    %1399 = vmatprep.subr.mxu0 0.0
    %1400 = vmatpush1.msra.mxu0 0.0
    %1401 = vmatprep.subr.mxu0 0.0
    %1402 = vmatpush1.msra.mxu0 0.0
    %1403 = vmatprep.subr.mxu0 0.0
    %1404 = vmatpush1.msra.mxu0 0.0
    %1405 = vmatprep.subr.mxu0 0.0
    %1406 = vmatpush1.msra.mxu0 0.0
    %1407 = vmatprep.subr.mxu0 0.0
    %1408 = vmatpush1.msra.mxu0 0.0
    %1409 = vmatprep.subr.mxu0 0.0
    %1410 = vmatpush1.msra.mxu0 0.0
    %1411 = vmatprep.subr.mxu0 0.0
    %1412 = vmatpush1.msra.mxu0 0.0
    %1413 = vmatprep.subr.mxu0 0.0
    %1414 = vmatpush1.msra.mxu0 0.0
    %1415 = vmatprep.subr.mxu0 0.0
    %1416 = vmatpush1.msra.mxu0 0.0
    %1417 = vmatprep.subr.mxu0 0.0
    %1418 = vmatpush1.msra.mxu0 0.0
    %1419 = vmatprep.subr.mxu0 0.0
    %1420 = vmatpush1.msra.mxu0 0.0
    %1421 = vmatprep.subr.mxu0 0.0
    %1422 = vmatpush1.msra.mxu0 0.0
    %1423 = vmatprep.subr.mxu0 0.0
    %1424 = vmatpush1.msra.mxu0 0.0
    %1425 = vmatprep.subr.mxu0 0.0
    %1426 = vmatpush1.msra.mxu0 0.0
    %1427 = vmatprep.subr.mxu0 0.0
    %1428 = vmatpush1.msra.mxu0 0.0
    %1429 = vmatprep.subr.mxu0 0.0
    %1430 = vmatpush1.msra.mxu0 0.0
    %1431 = vmatprep.subr.mxu0 0.0
    %1432 = vmatpush1.msra.mxu0 0.0
    %1433 = vmatprep.subr.mxu0 0.0
    %1434 = vmatpush1.msra.mxu0 0.0
    %1435 = vmatprep.subr.mxu0 0.0
    %1436 = vmatpush1.msra.mxu0 0.0
    %1437 = vmatprep.subr.mxu0 0.0
    %1438 = vmatpush1.msra.mxu0 0.0
    %1439 = vmatprep.subr.mxu0 0.0
    %1440 = vmatpush1.msra.mxu0 0.0
    %1441 = vmatprep.subr.mxu0 0.0
    %1442 = vmatpush1.msra.mxu0 0.0
    %1443 = vmatprep.subr.mxu0 0.0
    %1444 = vmatpush1.msra.mxu0 0.0
    %1445 = vmatprep.subr.mxu0 0.0
    %1446 = vmatpush1.msra.mxu0 0.0
    %1447 = vmatprep.mubr.f32.mxu0 0.0
    %1448 = vmatmul.mubr.f32.gmra.mrb[0].mxu0 %v1378
    %v1449 = vpop.f32.mrb[0].mxu0
    %v1450 = vadd.f32 %v1375, %v1449
    %v1451 = vpop.f32.mrb[0].mxu0
    %1452 = vmatprep.mubr.f32.mxu0 0.0
    %1453 = vmatmul.mubr.f32.gmra.mrb[0].mxu0 %v1381
    %v1454 = vpop.f32.mrb[0].mxu0
    %v1455 = vadd.f32 %v1375, %v1454
    %v1456 = vpop.f32.mrb[0].mxu0
    %1457 = vdwg.mxu0
    %v1458 = vld [vmem:[%s10] sm:$0xff]
    %v1459 = vld [vmem:[%s10 + $0x8] sm:$0xff]
    %v1460 = vld [vmem:[%s10 + $0x10] sm:$0xff]
    %v1461 = vld [vmem:[%s10 + $0x18] sm:$0xff]
    %v1462 = vld [vmem:[#allocation14] sm:$0x1]
    %v1464 = vlaneseq
    %v1465 = vshrl.u32 %v1464, 7
    %v1466 = vsub.s32 0, %v1465
    %v1467 = vrot.slane %v1462, %v1466
    %v1470 = vsel %vm272, %v259, 0
    %v1473 = vsel %vm272, %v260, 0
    %1475 = vmatprep.subr.mxu0 0.0
    %1476 = vmatpush1.msra.mxu0 %v1458
    %1477 = vmatprep.subr.mxu0 0.0
    %1478 = vmatpush1.msra.mxu0 %v1459
    %1479 = vmatprep.subr.mxu0 0.0
    %1480 = vmatpush1.msra.mxu0 %v1460
    %1481 = vmatprep.subr.mxu0 0.0
    %1482 = vmatpush1.msra.mxu0 %v1461
    %1483 = vmatprep.subr.mxu0 0.0
    %1484 = vmatpush1.msra.mxu0 0.0
    %1485 = vmatprep.subr.mxu0 0.0
    %1486 = vmatpush1.msra.mxu0 0.0
    %1487 = vmatprep.subr.mxu0 0.0
    %1488 = vmatpush1.msra.mxu0 0.0
    %1489 = vmatprep.subr.mxu0 0.0
    %1490 = vmatpush1.msra.mxu0 0.0
    %1491 = vmatprep.subr.mxu0 0.0
    %1492 = vmatpush1.msra.mxu0 0.0
    %1493 = vmatprep.subr.mxu0 0.0
    %1494 = vmatpush1.msra.mxu0 0.0
    %1495 = vmatprep.subr.mxu0 0.0
    %1496 = vmatpush1.msra.mxu0 0.0
    %1497 = vmatprep.subr.mxu0 0.0
    %1498 = vmatpush1.msra.mxu0 0.0
    %1499 = vmatprep.subr.mxu0 0.0
    %1500 = vmatpush1.msra.mxu0 0.0
    %1501 = vmatprep.subr.mxu0 0.0
    %1502 = vmatpush1.msra.mxu0 0.0
    %1503 = vmatprep.subr.mxu0 0.0
    %1504 = vmatpush1.msra.mxu0 0.0
    %1505 = vmatprep.subr.mxu0 0.0
    %1506 = vmatpush1.msra.mxu0 0.0
    %1507 = vmatprep.subr.mxu0 0.0
    %1508 = vmatpush1.msra.mxu0 0.0
    %1509 = vmatprep.subr.mxu0 0.0
    %1510 = vmatpush1.msra.mxu0 0.0
    %1511 = vmatprep.subr.mxu0 0.0
    %1512 = vmatpush1.msra.mxu0 0.0
    %1513 = vmatprep.subr.mxu0 0.0
    %1514 = vmatpush1.msra.mxu0 0.0
    %1515 = vmatprep.subr.mxu0 0.0
    %1516 = vmatpush1.msra.mxu0 0.0
    %1517 = vmatprep.subr.mxu0 0.0
    %1518 = vmatpush1.msra.mxu0 0.0
    %1519 = vmatprep.subr.mxu0 0.0
    %1520 = vmatpush1.msra.mxu0 0.0
    %1521 = vmatprep.subr.mxu0 0.0
    %1522 = vmatpush1.msra.mxu0 0.0
    %1523 = vmatprep.subr.mxu0 0.0
    %1524 = vmatpush1.msra.mxu0 0.0
    %1525 = vmatprep.subr.mxu0 0.0
    %1526 = vmatpush1.msra.mxu0 0.0
    %1527 = vmatprep.subr.mxu0 0.0
    %1528 = vmatpush1.msra.mxu0 0.0
    %1529 = vmatprep.subr.mxu0 0.0
    %1530 = vmatpush1.msra.mxu0 0.0
    %1531 = vmatprep.subr.mxu0 0.0
    %1532 = vmatpush1.msra.mxu0 0.0
    %1533 = vmatprep.subr.mxu0 0.0
    %1534 = vmatpush1.msra.mxu0 0.0
    %1535 = vmatprep.subr.mxu0 0.0
    %1536 = vmatpush1.msra.mxu0 0.0
    %1537 = vmatprep.subr.mxu0 0.0
    %1538 = vmatpush1.msra.mxu0 0.0
    %1539 = vmatprep.mubr.f32.mxu0 0.0
    %1540 = vmatmul.mubr.f32.gmra.mrb[0].mxu0 %v1470
    %v1541 = vpop.f32.mrb[0].mxu0
    %v1542 = vadd.f32 %v1467, %v1541
    %v1543 = vpop.f32.mrb[0].mxu0
    %1544 = vmatprep.mubr.f32.mxu0 0.0
    %1545 = vmatmul.mubr.f32.gmra.mrb[0].mxu0 %v1473
    %v1546 = vpop.f32.mrb[0].mxu0
    %v1547 = vadd.f32 %v1467, %v1546
    %v1548 = vpop.f32.mrb[0].mxu0
    %1549 = vdwg.mxu0
    %v1550 = vld [vmem:[#allocation8] sm:$0xff]
    %v1551 = vld [vmem:[#allocation8 + $0x8] sm:$0xff]
    %v1552 = vld [vmem:[#allocation16] sm:$0xff]
    %v1553 = vld [vmem:[#allocation16 + $0x8] sm:$0xff]
    %v1554 = vld [vmem:[#allocation16 + $0x10] sm:$0xff]
    %v1555 = vld [vmem:[#allocation16 + $0x18] sm:$0xff]
    %v1556 = vld [vmem:[#allocation17] sm:$0x1]
    %v1558 = vsel %vm367, %v1450, 0
    %v1561 = vsel %vm367, %v1455, 0
    %v1564 = vsel %vm367, %v1542, 0
    %v1567 = vsel %vm367, %v1547, 0
    %1569 = vmatprep.subr.mxu0 0.0
    %1570 = vmatpush1.xpose.msra.mxu0 %v1564
    %1571 = vmatprep.subr.mxu0 0.0
    %1572 = vmatpush1.xpose.msra.mxu0 %v1567
    %1573 = vmatprep.subr.mxu0 0.0
    %1574 = vmatpush1.xpose.msra.mxu0 0.0
    %1575 = vmatprep.subr.mxu0 0.0
    %1576 = vmatpush1.xpose.msra.mxu0 0.0
    %1577 = vmatprep.subr.mxu0 0.0
    %1578 = vmatpush1.xpose.msra.mxu0 0.0
    %1579 = vmatprep.subr.mxu0 0.0
    %1580 = vmatpush1.xpose.msra.mxu0 0.0
    %1581 = vmatprep.subr.mxu0 0.0
    %1582 = vmatpush1.xpose.msra.mxu0 0.0
    %1583 = vmatprep.subr.mxu0 0.0
    %1584 = vmatpush1.xpose.msra.mxu0 0.0
    %1585 = vmatprep.subr.mxu0 0.0
    %1586 = vmatpush1.xpose.msra.mxu0 0.0
    %1587 = vmatprep.subr.mxu0 0.0
    %1588 = vmatpush1.xpose.msra.mxu0 0.0
    %1589 = vmatprep.subr.mxu0 0.0
    %1590 = vmatpush1.xpose.msra.mxu0 0.0
    %1591 = vmatprep.subr.mxu0 0.0
    %1592 = vmatpush1.xpose.msra.mxu0 0.0
    %1593 = vmatprep.subr.mxu0 0.0
    %1594 = vmatpush1.xpose.msra.mxu0 0.0
    %1595 = vmatprep.subr.mxu0 0.0
    %1596 = vmatpush1.xpose.msra.mxu0 0.0
    %1597 = vmatprep.subr.mxu0 0.0
    %1598 = vmatpush1.xpose.msra.mxu0 0.0
    %1599 = vmatprep.subr.mxu0 0.0
    %1600 = vmatpush1.xpose.msra.mxu0 0.0
    %1601 = vmatprep.subr.mxu0 0.0
    %1602 = vmatpush1.xpose.msra.mxu0 0.0
    %1603 = vmatprep.subr.mxu0 0.0
    %1604 = vmatpush1.xpose.msra.mxu0 0.0
    %1605 = vmatprep.subr.mxu0 0.0
    %1606 = vmatpush1.xpose.msra.mxu0 0.0
    %1607 = vmatprep.subr.mxu0 0.0
    %1608 = vmatpush1.xpose.msra.mxu0 0.0
    %1609 = vmatprep.subr.mxu0 0.0
    %1610 = vmatpush1.xpose.msra.mxu0 0.0
    %1611 = vmatprep.subr.mxu0 0.0
    %1612 = vmatpush1.xpose.msra.mxu0 0.0
    %1613 = vmatprep.subr.mxu0 0.0
    %1614 = vmatpush1.xpose.msra.mxu0 0.0
    %1615 = vmatprep.subr.mxu0 0.0
    %1616 = vmatpush1.xpose.msra.mxu0 0.0
    %1617 = vmatprep.subr.mxu0 0.0
    %1618 = vmatpush1.xpose.msra.mxu0 0.0
    %1619 = vmatprep.subr.mxu0 0.0
    %1620 = vmatpush1.xpose.msra.mxu0 0.0
    %1621 = vmatprep.subr.mxu0 0.0
    %1622 = vmatpush1.xpose.msra.mxu0 0.0
    %1623 = vmatprep.subr.mxu0 0.0
    %1624 = vmatpush1.xpose.msra.mxu0 0.0
    %1625 = vmatprep.subr.mxu0 0.0
    %1626 = vmatpush1.xpose.msra.mxu0 0.0
    %1627 = vmatprep.subr.mxu0 0.0
    %1628 = vmatpush1.xpose.msra.mxu0 0.0
    %1629 = vmatprep.subr.mxu0 0.0
    %1630 = vmatpush1.xpose.msra.mxu0 0.0
    %1631 = vmatprep.subr.mxu0 0.0
    %1632 = vmatpush1.xpose.msra.mxu0 0.0
    %1633 = vmatprep.mubr.f32.mxu0 0.0
    %1634 = vmatmul.mubr.f32.gmra.mrb[0].mxu0 %v1558
    %v1635 = vpop.f32.mrb[0].mxu0
    %v1636 = vadd.f32 0.0, %v1635
    %v1637 = vpop.f32.mrb[0].mxu0
    %1638 = vmatprep.mubr.f32.mxu0 0.0
    %1639 = vmatmul.mubr.f32.gmra.mrb[0].mxu0 %v1561
    %v1640 = vpop.f32.mrb[0].mxu0
    %v1641 = vadd.f32 0.0, %v1640
    %v1642 = vpop.f32.mrb[0].mxu0
    %1643 = vdwg.mxu0
    %v1644 = vmul.f32 %v1636, 0.35355338
    %v1645 = vmul.f32 %v1641, 0.35355338
    %v1646 = vadd.f32 %v1644, %v1550
    %v1647 = vadd.f32 %v1645, %v1551
    %v1648 = vsel %vm455, %v1646, -inf
    %1649 = vmax.xlane.f32.xlu0 %v1648
    %v1650 = vpop.xlane.xlu0 %1649
    %v1651 = vsel %vm455, %v1647, -inf
    %1652 = vmax.xlane.f32.xlu0 %v1651
    %v1653 = vpop.xlane.xlu0 %1652
    %v1654 = vsub.f32 %v1646, %v1650
    %v1655 = vsub.f32 %v1647, %v1653
    %v1656 = vmul.f32 %v1654, 1.442695
    %v1657 = vpow.pop %v1656
    %v1658 = vmul.f32 %v1655, 1.442695
    %v1659 = vpow.pop %v1658
    %v1660 = vsel %vm455, %v1657, 0.0
    %1661 = vadd.xlane.f32.xlu0 %v1660
    %v1662 = vpop.xlane.xlu0 %1661
    %v1663 = vsel %vm455, %v1659, 0.0
    %1664 = vadd.xlane.f32.xlu0 %v1663
    %v1665 = vpop.xlane.xlu0 %1664
    %v1666 = vrcp.pop %v1662
    %v1667 = vrcp.pop %v1665
    %v1668 = vmul.f32 %v1662, %v1666
    %v1669 = vmul.f32 %v1665, %v1667
    %v1670 = vsub.f32 2.0, %v1668
    %v1671 = vsub.f32 2.0, %v1669
    %v1672 = vmul.f32 %v1666, %v1670
    %v1673 = vmul.f32 %v1667, %v1671
    %v1674 = vmul.f32 %v1657, %v1672
    %v1675 = vmul.f32 %v1659, %v1673
    %1676 = vrot.lane.b32.xlu0 %v1542, 96
    %v1677 = vpop.permute.xlu0 %1676
    %1678 = vrot.lane.b32.xlu0 %v1547, 96
    %v1679 = vpop.permute.xlu0 %1678
    %v1683 = vsel %vm455, %v1674, 0
    %v1686 = vsel %vm455, %v1675, 0
    %1688 = vmatprep.subr.mxu0 0.0
    %1689 = vmatpush1.msra.mxu0 %v1677
    %1690 = vmatprep.subr.mxu0 0.0
    %1691 = vmatpush1.msra.mxu0 %v1679
    %1692 = vmatprep.subr.mxu0 0.0
    %1693 = vmatpush1.msra.mxu0 0.0
    %1694 = vmatprep.subr.mxu0 0.0
    %1695 = vmatpush1.msra.mxu0 0.0
    %1696 = vmatprep.subr.mxu0 0.0
    %1697 = vmatpush1.msra.mxu0 0.0
    %1698 = vmatprep.subr.mxu0 0.0
    %1699 = vmatpush1.msra.mxu0 0.0
    %1700 = vmatprep.subr.mxu0 0.0
    %1701 = vmatpush1.msra.mxu0 0.0
    %1702 = vmatprep.subr.mxu0 0.0
    %1703 = vmatpush1.msra.mxu0 0.0
    %1704 = vmatprep.subr.mxu0 0.0
    %1705 = vmatpush1.msra.mxu0 0.0
    %1706 = vmatprep.subr.mxu0 0.0
    %1707 = vmatpush1.msra.mxu0 0.0
    %1708 = vmatprep.subr.mxu0 0.0
    %1709 = vmatpush1.msra.mxu0 0.0
    %1710 = vmatprep.subr.mxu0 0.0
    %1711 = vmatpush1.msra.mxu0 0.0
    %1712 = vmatprep.subr.mxu0 0.0
    %1713 = vmatpush1.msra.mxu0 0.0
    %1714 = vmatprep.subr.mxu0 0.0
    %1715 = vmatpush1.msra.mxu0 0.0
    %1716 = vmatprep.subr.mxu0 0.0
    %1717 = vmatpush1.msra.mxu0 0.0
    %1718 = vmatprep.subr.mxu0 0.0
    %1719 = vmatpush1.msra.mxu0 0.0
    %1720 = vmatprep.subr.mxu0 0.0
    %1721 = vmatpush1.msra.mxu0 0.0
    %1722 = vmatprep.subr.mxu0 0.0
    %1723 = vmatpush1.msra.mxu0 0.0
    %1724 = vmatprep.subr.mxu0 0.0
    %1725 = vmatpush1.msra.mxu0 0.0
    %1726 = vmatprep.subr.mxu0 0.0
    %1727 = vmatpush1.msra.mxu0 0.0
    %1728 = vmatprep.subr.mxu0 0.0
    %1729 = vmatpush1.msra.mxu0 0.0
    %1730 = vmatprep.subr.mxu0 0.0
    %1731 = vmatpush1.msra.mxu0 0.0
    %1732 = vmatprep.subr.mxu0 0.0
    %1733 = vmatpush1.msra.mxu0 0.0
    %1734 = vmatprep.subr.mxu0 0.0
    %1735 = vmatpush1.msra.mxu0 0.0
    %1736 = vmatprep.subr.mxu0 0.0
    %1737 = vmatpush1.msra.mxu0 0.0
    %1738 = vmatprep.subr.mxu0 0.0
    %1739 = vmatpush1.msra.mxu0 0.0
    %1740 = vmatprep.subr.mxu0 0.0
    %1741 = vmatpush1.msra.mxu0 0.0
    %1742 = vmatprep.subr.mxu0 0.0
    %1743 = vmatpush1.msra.mxu0 0.0
    %1744 = vmatprep.subr.mxu0 0.0
    %1745 = vmatpush1.msra.mxu0 0.0
    %1746 = vmatprep.subr.mxu0 0.0
    %1747 = vmatpush1.msra.mxu0 0.0
    %1748 = vmatprep.subr.mxu0 0.0
    %1749 = vmatpush1.msra.mxu0 0.0
    %1750 = vmatprep.subr.mxu0 0.0
    %1751 = vmatpush1.msra.mxu0 0.0
    %1752 = vmatprep.mubr.f32.mxu0 0.0
    %1753 = vmatmul.mubr.f32.gmra.mrb[0].mxu0 %v1683
    %v1754 = vpop.f32.mrb[0].mxu0
    %v1755 = vadd.f32 0.0, %v1754
    %v1756 = vpop.f32.mrb[0].mxu0
    %1757 = vmatprep.mubr.f32.mxu0 0.0
    %1758 = vmatmul.mubr.f32.gmra.mrb[0].mxu0 %v1686
    %v1759 = vpop.f32.mrb[0].mxu0
    %v1760 = vadd.f32 0.0, %v1759
    %v1761 = vpop.f32.mrb[0].mxu0
    %1762 = vdwg.mxu0
    %1763 = vrot.lane.b32.xlu0 %v1450, 120
    %v1764 = vpop.permute.xlu0 %1763
    %1765 = vrot.lane.b32.xlu0 %v1455, 120
    %v1766 = vpop.permute.xlu0 %1765
    %1767 = vrot.lane.b32.xlu0 %v1542, 120
    %v1768 = vpop.permute.xlu0 %1767
    %1769 = vrot.lane.b32.xlu0 %v1547, 120
    %v1770 = vpop.permute.xlu0 %1769
    %v1771 = vsel %vm367, %v1764, 0
    %v1773 = vsel %vm367, %v1766, 0
    %v1775 = vsel %vm367, %v1768, 0
    %v1777 = vsel %vm367, %v1770, 0
    %1779 = vmatprep.subr.mxu0 0.0
    %1780 = vmatpush1.xpose.msra.mxu0 %v1775
    %1781 = vmatprep.subr.mxu0 0.0
    %1782 = vmatpush1.xpose.msra.mxu0 %v1777
    %1783 = vmatprep.subr.mxu0 0.0
    %1784 = vmatpush1.xpose.msra.mxu0 0.0
    %1785 = vmatprep.subr.mxu0 0.0
    %1786 = vmatpush1.xpose.msra.mxu0 0.0
    %1787 = vmatprep.subr.mxu0 0.0
    %1788 = vmatpush1.xpose.msra.mxu0 0.0
    %1789 = vmatprep.subr.mxu0 0.0
    %1790 = vmatpush1.xpose.msra.mxu0 0.0
    %1791 = vmatprep.subr.mxu0 0.0
    %1792 = vmatpush1.xpose.msra.mxu0 0.0
    %1793 = vmatprep.subr.mxu0 0.0
    %1794 = vmatpush1.xpose.msra.mxu0 0.0
    %1795 = vmatprep.subr.mxu0 0.0
    %1796 = vmatpush1.xpose.msra.mxu0 0.0
    %1797 = vmatprep.subr.mxu0 0.0
    %1798 = vmatpush1.xpose.msra.mxu0 0.0
    %1799 = vmatprep.subr.mxu0 0.0
    %1800 = vmatpush1.xpose.msra.mxu0 0.0
    %1801 = vmatprep.subr.mxu0 0.0
    %1802 = vmatpush1.xpose.msra.mxu0 0.0
    %1803 = vmatprep.subr.mxu0 0.0
    %1804 = vmatpush1.xpose.msra.mxu0 0.0
    %1805 = vmatprep.subr.mxu0 0.0
    %1806 = vmatpush1.xpose.msra.mxu0 0.0
    %1807 = vmatprep.subr.mxu0 0.0
    %1808 = vmatpush1.xpose.msra.mxu0 0.0
    %1809 = vmatprep.subr.mxu0 0.0
    %1810 = vmatpush1.xpose.msra.mxu0 0.0
    %1811 = vmatprep.subr.mxu0 0.0
    %1812 = vmatpush1.xpose.msra.mxu0 0.0
    %1813 = vmatprep.subr.mxu0 0.0
    %1814 = vmatpush1.xpose.msra.mxu0 0.0
    %1815 = vmatprep.subr.mxu0 0.0
    %1816 = vmatpush1.xpose.msra.mxu0 0.0
    %1817 = vmatprep.subr.mxu0 0.0
    %1818 = vmatpush1.xpose.msra.mxu0 0.0
    %1819 = vmatprep.subr.mxu0 0.0
    %1820 = vmatpush1.xpose.msra.mxu0 0.0
    %1821 = vmatprep.subr.mxu0 0.0
    %1822 = vmatpush1.xpose.msra.mxu0 0.0
    %1823 = vmatprep.subr.mxu0 0.0
    %1824 = vmatpush1.xpose.msra.mxu0 0.0
    %1825 = vmatprep.subr.mxu0 0.0
    %1826 = vmatpush1.xpose.msra.mxu0 0.0
    %1827 = vmatprep.subr.mxu0 0.0
    %1828 = vmatpush1.xpose.msra.mxu0 0.0
    %1829 = vmatprep.subr.mxu0 0.0
    %1830 = vmatpush1.xpose.msra.mxu0 0.0
    %1831 = vmatprep.subr.mxu0 0.0
    %1832 = vmatpush1.xpose.msra.mxu0 0.0
    %1833 = vmatprep.subr.mxu0 0.0
    %1834 = vmatpush1.xpose.msra.mxu0 0.0
    %1835 = vmatprep.subr.mxu0 0.0
    %1836 = vmatpush1.xpose.msra.mxu0 0.0
    %1837 = vmatprep.subr.mxu0 0.0
    %1838 = vmatpush1.xpose.msra.mxu0 0.0
    %1839 = vmatprep.subr.mxu0 0.0
    %1840 = vmatpush1.xpose.msra.mxu0 0.0
    %1841 = vmatprep.subr.mxu0 0.0
    %1842 = vmatpush1.xpose.msra.mxu0 0.0
    %1843 = vmatprep.mubr.f32.mxu0 0.0
    %1844 = vmatmul.mubr.f32.gmra.mrb[0].mxu0 %v1771
    %v1845 = vpop.f32.mrb[0].mxu0
    %v1846 = vadd.f32 0.0, %v1845
    %v1847 = vpop.f32.mrb[0].mxu0
    %1848 = vmatprep.mubr.f32.mxu0 0.0
    %1849 = vmatmul.mubr.f32.gmra.mrb[0].mxu0 %v1773
    %v1850 = vpop.f32.mrb[0].mxu0
    %v1851 = vadd.f32 0.0, %v1850
    %v1852 = vpop.f32.mrb[0].mxu0
    %1853 = vdwg.mxu0
    %v1854 = vmul.f32 %v1846, 0.35355338
    %v1855 = vmul.f32 %v1851, 0.35355338
    %v1856 = vadd.f32 %v1854, %v1550
    %v1857 = vadd.f32 %v1855, %v1551
    %v1858 = vsel %vm455, %v1856, -inf
    %1859 = vmax.xlane.f32.xlu0 %v1858
    %v1860 = vpop.xlane.xlu0 %1859
    %v1861 = vsel %vm455, %v1857, -inf
    %1862 = vmax.xlane.f32.xlu0 %v1861
    %v1863 = vpop.xlane.xlu0 %1862
    %v1864 = vsub.f32 %v1856, %v1860
    %v1865 = vsub.f32 %v1857, %v1863
    %v1866 = vmul.f32 %v1864, 1.442695
    %v1867 = vpow.pop %v1866
    %v1868 = vmul.f32 %v1865, 1.442695
    %v1869 = vpow.pop %v1868
    %v1870 = vsel %vm455, %v1867, 0.0
    %1871 = vadd.xlane.f32.xlu0 %v1870
    %v1872 = vpop.xlane.xlu0 %1871
    %v1873 = vsel %vm455, %v1869, 0.0
    %1874 = vadd.xlane.f32.xlu0 %v1873
    %v1875 = vpop.xlane.xlu0 %1874
    %v1876 = vrcp.pop %v1872
    %v1877 = vrcp.pop %v1875
    %v1878 = vmul.f32 %v1872, %v1876
    %v1879 = vmul.f32 %v1875, %v1877
    %v1880 = vsub.f32 2.0, %v1878
    %v1881 = vsub.f32 2.0, %v1879
    %v1882 = vmul.f32 %v1876, %v1880
    %v1883 = vmul.f32 %v1877, %v1881
    %v1884 = vmul.f32 %v1867, %v1882
    %v1885 = vmul.f32 %v1869, %v1883
    %1886 = vrot.lane.b32.xlu0 %v1542, 88
    %v1887 = vpop.permute.xlu0 %1886
    %1888 = vrot.lane.b32.xlu0 %v1547, 88
    %v1889 = vpop.permute.xlu0 %1888
    %v1893 = vsel %vm455, %v1884, 0
    %v1896 = vsel %vm455, %v1885, 0
    %1898 = vmatprep.subr.mxu0 0.0
    %1899 = vmatpush1.msra.mxu0 %v1887
    %1900 = vmatprep.subr.mxu0 0.0
    %1901 = vmatpush1.msra.mxu0 %v1889
    %1902 = vmatprep.subr.mxu0 0.0
    %1903 = vmatpush1.msra.mxu0 0.0
    %1904 = vmatprep.subr.mxu0 0.0
    %1905 = vmatpush1.msra.mxu0 0.0
    %1906 = vmatprep.subr.mxu0 0.0
    %1907 = vmatpush1.msra.mxu0 0.0
    %1908 = vmatprep.subr.mxu0 0.0
    %1909 = vmatpush1.msra.mxu0 0.0
    %1910 = vmatprep.subr.mxu0 0.0
    %1911 = vmatpush1.msra.mxu0 0.0
    %1912 = vmatprep.subr.mxu0 0.0
    %1913 = vmatpush1.msra.mxu0 0.0
    %1914 = vmatprep.subr.mxu0 0.0
    %1915 = vmatpush1.msra.mxu0 0.0
    %1916 = vmatprep.subr.mxu0 0.0
    %1917 = vmatpush1.msra.mxu0 0.0
    %1918 = vmatprep.subr.mxu0 0.0
    %1919 = vmatpush1.msra.mxu0 0.0
    %1920 = vmatprep.subr.mxu0 0.0
    %1921 = vmatpush1.msra.mxu0 0.0
    %1922 = vmatprep.subr.mxu0 0.0
    %1923 = vmatpush1.msra.mxu0 0.0
    %1924 = vmatprep.subr.mxu0 0.0
    %1925 = vmatpush1.msra.mxu0 0.0
    %1926 = vmatprep.subr.mxu0 0.0
    %1927 = vmatpush1.msra.mxu0 0.0
    %1928 = vmatprep.subr.mxu0 0.0
    %1929 = vmatpush1.msra.mxu0 0.0
    %1930 = vmatprep.subr.mxu0 0.0
    %1931 = vmatpush1.msra.mxu0 0.0
    %1932 = vmatprep.subr.mxu0 0.0
    %1933 = vmatpush1.msra.mxu0 0.0
    %1934 = vmatprep.subr.mxu0 0.0
    %1935 = vmatpush1.msra.mxu0 0.0
    %1936 = vmatprep.subr.mxu0 0.0
    %1937 = vmatpush1.msra.mxu0 0.0
    %1938 = vmatprep.subr.mxu0 0.0
    %1939 = vmatpush1.msra.mxu0 0.0
    %1940 = vmatprep.subr.mxu0 0.0
    %1941 = vmatpush1.msra.mxu0 0.0
    %1942 = vmatprep.subr.mxu0 0.0
    %1943 = vmatpush1.msra.mxu0 0.0
    %1944 = vmatprep.subr.mxu0 0.0
    %1945 = vmatpush1.msra.mxu0 0.0
    %1946 = vmatprep.subr.mxu0 0.0
    %1947 = vmatpush1.msra.mxu0 0.0
    %1948 = vmatprep.subr.mxu0 0.0
    %1949 = vmatpush1.msra.mxu0 0.0
    %1950 = vmatprep.subr.mxu0 0.0
    %1951 = vmatpush1.msra.mxu0 0.0
    %1952 = vmatprep.subr.mxu0 0.0
    %1953 = vmatpush1.msra.mxu0 0.0
    %1954 = vmatprep.subr.mxu0 0.0
    %1955 = vmatpush1.msra.mxu0 0.0
    %1956 = vmatprep.subr.mxu0 0.0
    %1957 = vmatpush1.msra.mxu0 0.0
    %1958 = vmatprep.subr.mxu0 0.0
    %1959 = vmatpush1.msra.mxu0 0.0
    %1960 = vmatprep.subr.mxu0 0.0
    %1961 = vmatpush1.msra.mxu0 0.0
    %1962 = vmatprep.mubr.f32.mxu0 0.0
    %1963 = vmatmul.mubr.f32.gmra.mrb[0].mxu0 %v1893
    %v1964 = vpop.f32.mrb[0].mxu0
    %v1965 = vadd.f32 0.0, %v1964
    %v1966 = vpop.f32.mrb[0].mxu0
    %1967 = vmatprep.mubr.f32.mxu0 0.0
    %1968 = vmatmul.mubr.f32.gmra.mrb[0].mxu0 %v1896
    %v1969 = vpop.f32.mrb[0].mxu0
    %v1970 = vadd.f32 0.0, %v1969
    %v1971 = vpop.f32.mrb[0].mxu0
    %1972 = vdwg.mxu0
    %1973 = vrot.lane.b32.xlu0 %v1450, 112
    %v1974 = vpop.permute.xlu0 %1973
    %1975 = vrot.lane.b32.xlu0 %v1455, 112
    %v1976 = vpop.permute.xlu0 %1975
    %1977 = vrot.lane.b32.xlu0 %v1542, 112
    %v1978 = vpop.permute.xlu0 %1977
    %1979 = vrot.lane.b32.xlu0 %v1547, 112
    %v1980 = vpop.permute.xlu0 %1979
    %v1981 = vsel %vm367, %v1974, 0
    %v1983 = vsel %vm367, %v1976, 0
    %v1985 = vsel %vm367, %v1978, 0
    %v1987 = vsel %vm367, %v1980, 0
    %1989 = vmatprep.subr.mxu0 0.0
    %1990 = vmatpush1.xpose.msra.mxu0 %v1985
    %1991 = vmatprep.subr.mxu0 0.0
    %1992 = vmatpush1.xpose.msra.mxu0 %v1987
    %1993 = vmatprep.subr.mxu0 0.0
    %1994 = vmatpush1.xpose.msra.mxu0 0.0
    %1995 = vmatprep.subr.mxu0 0.0
    %1996 = vmatpush1.xpose.msra.mxu0 0.0
    %1997 = vmatprep.subr.mxu0 0.0
    %1998 = vmatpush1.xpose.msra.mxu0 0.0
    %1999 = vmatprep.subr.mxu0 0.0
    %2000 = vmatpush1.xpose.msra.mxu0 0.0
    %2001 = vmatprep.subr.mxu0 0.0
    %2002 = vmatpush1.xpose.msra.mxu0 0.0
    %2003 = vmatprep.subr.mxu0 0.0
    %2004 = vmatpush1.xpose.msra.mxu0 0.0
    %2005 = vmatprep.subr.mxu0 0.0
    %2006 = vmatpush1.xpose.msra.mxu0 0.0
    %2007 = vmatprep.subr.mxu0 0.0
    %2008 = vmatpush1.xpose.msra.mxu0 0.0
    %2009 = vmatprep.subr.mxu0 0.0
    %2010 = vmatpush1.xpose.msra.mxu0 0.0
    %2011 = vmatprep.subr.mxu0 0.0
    %2012 = vmatpush1.xpose.msra.mxu0 0.0
    %2013 = vmatprep.subr.mxu0 0.0
    %2014 = vmatpush1.xpose.msra.mxu0 0.0
    %2015 = vmatprep.subr.mxu0 0.0
    %2016 = vmatpush1.xpose.msra.mxu0 0.0
    %2017 = vmatprep.subr.mxu0 0.0
    %2018 = vmatpush1.xpose.msra.mxu0 0.0
    %2019 = vmatprep.subr.mxu0 0.0
    %2020 = vmatpush1.xpose.msra.mxu0 0.0
    %2021 = vmatprep.subr.mxu0 0.0
    %2022 = vmatpush1.xpose.msra.mxu0 0.0
    %2023 = vmatprep.subr.mxu0 0.0
    %2024 = vmatpush1.xpose.msra.mxu0 0.0
    %2025 = vmatprep.subr.mxu0 0.0
    %2026 = vmatpush1.xpose.msra.mxu0 0.0
    %2027 = vmatprep.subr.mxu0 0.0
    %2028 = vmatpush1.xpose.msra.mxu0 0.0
    %2029 = vmatprep.subr.mxu0 0.0
    %2030 = vmatpush1.xpose.msra.mxu0 0.0
    %2031 = vmatprep.subr.mxu0 0.0
    %2032 = vmatpush1.xpose.msra.mxu0 0.0
    %2033 = vmatprep.subr.mxu0 0.0
    %2034 = vmatpush1.xpose.msra.mxu0 0.0
    %2035 = vmatprep.subr.mxu0 0.0
    %2036 = vmatpush1.xpose.msra.mxu0 0.0
    %2037 = vmatprep.subr.mxu0 0.0
    %2038 = vmatpush1.xpose.msra.mxu0 0.0
    %2039 = vmatprep.subr.mxu0 0.0
    %2040 = vmatpush1.xpose.msra.mxu0 0.0
    %2041 = vmatprep.subr.mxu0 0.0
    %2042 = vmatpush1.xpose.msra.mxu0 0.0
    %2043 = vmatprep.subr.mxu0 0.0
    %2044 = vmatpush1.xpose.msra.mxu0 0.0
    %2045 = vmatprep.subr.mxu0 0.0
    %2046 = vmatpush1.xpose.msra.mxu0 0.0
    %2047 = vmatprep.subr.mxu0 0.0
    %2048 = vmatpush1.xpose.msra.mxu0 0.0
    %2049 = vmatprep.subr.mxu0 0.0
    %2050 = vmatpush1.xpose.msra.mxu0 0.0
    %2051 = vmatprep.subr.mxu0 0.0
    %2052 = vmatpush1.xpose.msra.mxu0 0.0
    %2053 = vmatprep.mubr.f32.mxu0 0.0
    %2054 = vmatmul.mubr.f32.gmra.mrb[0].mxu0 %v1981
    %v2055 = vpop.f32.mrb[0].mxu0
    %v2056 = vadd.f32 0.0, %v2055
    %v2057 = vpop.f32.mrb[0].mxu0
    %2058 = vmatprep.mubr.f32.mxu0 0.0
    %2059 = vmatmul.mubr.f32.gmra.mrb[0].mxu0 %v1983
    %v2060 = vpop.f32.mrb[0].mxu0
    %v2061 = vadd.f32 0.0, %v2060
    %v2062 = vpop.f32.mrb[0].mxu0
    %2063 = vdwg.mxu0
    %v2064 = vmul.f32 %v2056, 0.35355338
    %v2065 = vmul.f32 %v2061, 0.35355338
    %v2066 = vadd.f32 %v2064, %v1550
    %v2067 = vadd.f32 %v2065, %v1551
    %v2068 = vsel %vm455, %v2066, -inf
    %2069 = vmax.xlane.f32.xlu0 %v2068
    %v2070 = vpop.xlane.xlu0 %2069
    %v2071 = vsel %vm455, %v2067, -inf
    %2072 = vmax.xlane.f32.xlu0 %v2071
    %v2073 = vpop.xlane.xlu0 %2072
    %v2074 = vsub.f32 %v2066, %v2070
    %v2075 = vsub.f32 %v2067, %v2073
    %v2076 = vmul.f32 %v2074, 1.442695
    %v2077 = vpow.pop %v2076
    %v2078 = vmul.f32 %v2075, 1.442695
    %v2079 = vpow.pop %v2078
    %v2080 = vsel %vm455, %v2077, 0.0
    %2081 = vadd.xlane.f32.xlu0 %v2080
    %v2082 = vpop.xlane.xlu0 %2081
    %v2083 = vsel %vm455, %v2079, 0.0
    %2084 = vadd.xlane.f32.xlu0 %v2083
    %v2085 = vpop.xlane.xlu0 %2084
    %v2086 = vrcp.pop %v2082
    %v2087 = vrcp.pop %v2085
    %v2088 = vmul.f32 %v2082, %v2086
    %v2089 = vmul.f32 %v2085, %v2087
    %v2090 = vsub.f32 2.0, %v2088
    %v2091 = vsub.f32 2.0, %v2089
    %v2092 = vmul.f32 %v2086, %v2090
    %v2093 = vmul.f32 %v2087, %v2091
    %v2094 = vmul.f32 %v2077, %v2092
    %v2095 = vmul.f32 %v2079, %v2093
    %2096 = vrot.lane.b32.xlu0 %v1542, 80
    %v2097 = vpop.permute.xlu0 %2096
    %2098 = vrot.lane.b32.xlu0 %v1547, 80
    %v2099 = vpop.permute.xlu0 %2098
    %v2103 = vsel %vm455, %v2094, 0
    %v2106 = vsel %vm455, %v2095, 0
    %2108 = vmatprep.subr.mxu0 0.0
    %2109 = vmatpush1.msra.mxu0 %v2097
    %2110 = vmatprep.subr.mxu0 0.0
    %2111 = vmatpush1.msra.mxu0 %v2099
    %2112 = vmatprep.subr.mxu0 0.0
    %2113 = vmatpush1.msra.mxu0 0.0
    %2114 = vmatprep.subr.mxu0 0.0
    %2115 = vmatpush1.msra.mxu0 0.0
    %2116 = vmatprep.subr.mxu0 0.0
    %2117 = vmatpush1.msra.mxu0 0.0
    %2118 = vmatprep.subr.mxu0 0.0
    %2119 = vmatpush1.msra.mxu0 0.0
    %2120 = vmatprep.subr.mxu0 0.0
    %2121 = vmatpush1.msra.mxu0 0.0
    %2122 = vmatprep.subr.mxu0 0.0
    %2123 = vmatpush1.msra.mxu0 0.0
    %2124 = vmatprep.subr.mxu0 0.0
    %2125 = vmatpush1.msra.mxu0 0.0
    %2126 = vmatprep.subr.mxu0 0.0
    %2127 = vmatpush1.msra.mxu0 0.0
    %2128 = vmatprep.subr.mxu0 0.0
    %2129 = vmatpush1.msra.mxu0 0.0
    %2130 = vmatprep.subr.mxu0 0.0
    %2131 = vmatpush1.msra.mxu0 0.0
    %2132 = vmatprep.subr.mxu0 0.0
    %2133 = vmatpush1.msra.mxu0 0.0
    %2134 = vmatprep.subr.mxu0 0.0
    %2135 = vmatpush1.msra.mxu0 0.0
    %2136 = vmatprep.subr.mxu0 0.0
    %2137 = vmatpush1.msra.mxu0 0.0
    %2138 = vmatprep.subr.mxu0 0.0
    %2139 = vmatpush1.msra.mxu0 0.0
    %2140 = vmatprep.subr.mxu0 0.0
    %2141 = vmatpush1.msra.mxu0 0.0
    %2142 = vmatprep.subr.mxu0 0.0
    %2143 = vmatpush1.msra.mxu0 0.0
    %2144 = vmatprep.subr.mxu0 0.0
    %2145 = vmatpush1.msra.mxu0 0.0
    %2146 = vmatprep.subr.mxu0 0.0
    %2147 = vmatpush1.msra.mxu0 0.0
    %2148 = vmatprep.subr.mxu0 0.0
    %2149 = vmatpush1.msra.mxu0 0.0
    %2150 = vmatprep.subr.mxu0 0.0
    %2151 = vmatpush1.msra.mxu0 0.0
    %2152 = vmatprep.subr.mxu0 0.0
    %2153 = vmatpush1.msra.mxu0 0.0
    %2154 = vmatprep.subr.mxu0 0.0
    %2155 = vmatpush1.msra.mxu0 0.0
    %2156 = vmatprep.subr.mxu0 0.0
    %2157 = vmatpush1.msra.mxu0 0.0
    %2158 = vmatprep.subr.mxu0 0.0
    %2159 = vmatpush1.msra.mxu0 0.0
    %2160 = vmatprep.subr.mxu0 0.0
    %2161 = vmatpush1.msra.mxu0 0.0
    %2162 = vmatprep.subr.mxu0 0.0
    %2163 = vmatpush1.msra.mxu0 0.0
    %2164 = vmatprep.subr.mxu0 0.0
    %2165 = vmatpush1.msra.mxu0 0.0
    %2166 = vmatprep.subr.mxu0 0.0
    %2167 = vmatpush1.msra.mxu0 0.0
    %2168 = vmatprep.subr.mxu0 0.0
    %2169 = vmatpush1.msra.mxu0 0.0
    %2170 = vmatprep.subr.mxu0 0.0
    %2171 = vmatpush1.msra.mxu0 0.0
    %2172 = vmatprep.mubr.f32.mxu0 0.0
    %2173 = vmatmul.mubr.f32.gmra.mrb[0].mxu0 %v2103
    %v2174 = vpop.f32.mrb[0].mxu0
    %v2175 = vadd.f32 0.0, %v2174
    %v2176 = vpop.f32.mrb[0].mxu0
    %2177 = vmatprep.mubr.f32.mxu0 0.0
    %2178 = vmatmul.mubr.f32.gmra.mrb[0].mxu0 %v2106
    %v2179 = vpop.f32.mrb[0].mxu0
    %v2180 = vadd.f32 0.0, %v2179
    %v2181 = vpop.f32.mrb[0].mxu0
    %2182 = vdwg.mxu0
    %2183 = vrot.lane.b32.xlu0 %v1450, 104
    %v2184 = vpop.permute.xlu0 %2183
    %2185 = vrot.lane.b32.xlu0 %v1455, 104
    %v2186 = vpop.permute.xlu0 %2185
    %2187 = vrot.lane.b32.xlu0 %v1542, 104
    %v2188 = vpop.permute.xlu0 %2187
    %2189 = vrot.lane.b32.xlu0 %v1547, 104
    %v2190 = vpop.permute.xlu0 %2189
    %v2191 = vsel %vm367, %v2184, 0
    %v2193 = vsel %vm367, %v2186, 0
    %v2195 = vsel %vm367, %v2188, 0
    %v2197 = vsel %vm367, %v2190, 0
    %2199 = vmatprep.subr.mxu0 0.0
    %2200 = vmatpush1.xpose.msra.mxu0 %v2195
    %2201 = vmatprep.subr.mxu0 0.0
    %2202 = vmatpush1.xpose.msra.mxu0 %v2197
    %2203 = vmatprep.subr.mxu0 0.0
    %2204 = vmatpush1.xpose.msra.mxu0 0.0
    %2205 = vmatprep.subr.mxu0 0.0
    %2206 = vmatpush1.xpose.msra.mxu0 0.0
    %2207 = vmatprep.subr.mxu0 0.0
    %2208 = vmatpush1.xpose.msra.mxu0 0.0
    %2209 = vmatprep.subr.mxu0 0.0
    %2210 = vmatpush1.xpose.msra.mxu0 0.0
    %2211 = vmatprep.subr.mxu0 0.0
    %2212 = vmatpush1.xpose.msra.mxu0 0.0
    %2213 = vmatprep.subr.mxu0 0.0
    %2214 = vmatpush1.xpose.msra.mxu0 0.0
    %2215 = vmatprep.subr.mxu0 0.0
    %2216 = vmatpush1.xpose.msra.mxu0 0.0
    %2217 = vmatprep.subr.mxu0 0.0
    %2218 = vmatpush1.xpose.msra.mxu0 0.0
    %2219 = vmatprep.subr.mxu0 0.0
    %2220 = vmatpush1.xpose.msra.mxu0 0.0
    %2221 = vmatprep.subr.mxu0 0.0
    %2222 = vmatpush1.xpose.msra.mxu0 0.0
    %2223 = vmatprep.subr.mxu0 0.0
    %2224 = vmatpush1.xpose.msra.mxu0 0.0
    %2225 = vmatprep.subr.mxu0 0.0
    %2226 = vmatpush1.xpose.msra.mxu0 0.0
    %2227 = vmatprep.subr.mxu0 0.0
    %2228 = vmatpush1.xpose.msra.mxu0 0.0
    %2229 = vmatprep.subr.mxu0 0.0
    %2230 = vmatpush1.xpose.msra.mxu0 0.0
    %2231 = vmatprep.subr.mxu0 0.0
    %2232 = vmatpush1.xpose.msra.mxu0 0.0
    %2233 = vmatprep.subr.mxu0 0.0
    %2234 = vmatpush1.xpose.msra.mxu0 0.0
    %2235 = vmatprep.subr.mxu0 0.0
    %2236 = vmatpush1.xpose.msra.mxu0 0.0
    %2237 = vmatprep.subr.mxu0 0.0
    %2238 = vmatpush1.xpose.msra.mxu0 0.0
    %2239 = vmatprep.subr.mxu0 0.0
    %2240 = vmatpush1.xpose.msra.mxu0 0.0
    %2241 = vmatprep.subr.mxu0 0.0
    %2242 = vmatpush1.xpose.msra.mxu0 0.0
    %2243 = vmatprep.subr.mxu0 0.0
    %2244 = vmatpush1.xpose.msra.mxu0 0.0
    %2245 = vmatprep.subr.mxu0 0.0
    %2246 = vmatpush1.xpose.msra.mxu0 0.0
    %2247 = vmatprep.subr.mxu0 0.0
    %2248 = vmatpush1.xpose.msra.mxu0 0.0
    %2249 = vmatprep.subr.mxu0 0.0
    %2250 = vmatpush1.xpose.msra.mxu0 0.0
    %2251 = vmatprep.subr.mxu0 0.0
    %2252 = vmatpush1.xpose.msra.mxu0 0.0
    %2253 = vmatprep.subr.mxu0 0.0
    %2254 = vmatpush1.xpose.msra.mxu0 0.0
    %2255 = vmatprep.subr.mxu0 0.0
    %2256 = vmatpush1.xpose.msra.mxu0 0.0
    %2257 = vmatprep.subr.mxu0 0.0
    %2258 = vmatpush1.xpose.msra.mxu0 0.0
    %2259 = vmatprep.subr.mxu0 0.0
    %2260 = vmatpush1.xpose.msra.mxu0 0.0
    %2261 = vmatprep.subr.mxu0 0.0
    %2262 = vmatpush1.xpose.msra.mxu0 0.0
    %2263 = vmatprep.mubr.f32.mxu0 0.0
    %2264 = vmatmul.mubr.f32.gmra.mrb[0].mxu0 %v2191
    %v2265 = vpop.f32.mrb[0].mxu0
    %v2266 = vadd.f32 0.0, %v2265
    %v2267 = vpop.f32.mrb[0].mxu0
    %2268 = vmatprep.mubr.f32.mxu0 0.0
    %2269 = vmatmul.mubr.f32.gmra.mrb[0].mxu0 %v2193
    %v2270 = vpop.f32.mrb[0].mxu0
    %v2271 = vadd.f32 0.0, %v2270
    %v2272 = vpop.f32.mrb[0].mxu0
    %2273 = vdwg.mxu0
    %v2274 = vmul.f32 %v2266, 0.35355338
    %v2275 = vmul.f32 %v2271, 0.35355338
    %v2276 = vadd.f32 %v2274, %v1550
    %v2277 = vadd.f32 %v2275, %v1551
    %v2278 = vsel %vm455, %v2276, -inf
    %2279 = vmax.xlane.f32.xlu0 %v2278
    %v2280 = vpop.xlane.xlu0 %2279
    %v2281 = vsel %vm455, %v2277, -inf
    %2282 = vmax.xlane.f32.xlu0 %v2281
    %v2283 = vpop.xlane.xlu0 %2282
    %v2284 = vsub.f32 %v2276, %v2280
    %v2285 = vsub.f32 %v2277, %v2283
    %v2286 = vmul.f32 %v2284, 1.442695
    %v2287 = vpow.pop %v2286
    %v2288 = vmul.f32 %v2285, 1.442695
    %v2289 = vpow.pop %v2288
    %v2290 = vsel %vm455, %v2287, 0.0
    %2291 = vadd.xlane.f32.xlu0 %v2290
    %v2292 = vpop.xlane.xlu0 %2291
    %v2293 = vsel %vm455, %v2289, 0.0
    %2294 = vadd.xlane.f32.xlu0 %v2293
    %v2295 = vpop.xlane.xlu0 %2294
    %v2296 = vrcp.pop %v2292
    %v2297 = vrcp.pop %v2295
    %v2298 = vmul.f32 %v2292, %v2296
    %v2299 = vmul.f32 %v2295, %v2297
    %v2300 = vsub.f32 2.0, %v2298
    %v2301 = vsub.f32 2.0, %v2299
    %v2302 = vmul.f32 %v2296, %v2300
    %v2303 = vmul.f32 %v2297, %v2301
    %v2304 = vmul.f32 %v2287, %v2302
    %v2305 = vmul.f32 %v2289, %v2303
    %2306 = vrot.lane.b32.xlu0 %v1542, 72
    %v2307 = vpop.permute.xlu0 %2306
    %2308 = vrot.lane.b32.xlu0 %v1547, 72
    %v2309 = vpop.permute.xlu0 %2308
    %v2313 = vsel %vm455, %v2304, 0
    %v2316 = vsel %vm455, %v2305, 0
    %2318 = vmatprep.subr.mxu0 0.0
    %2319 = vmatpush1.msra.mxu0 %v2307
    %2320 = vmatprep.subr.mxu0 0.0
    %2321 = vmatpush1.msra.mxu0 %v2309
    %2322 = vmatprep.subr.mxu0 0.0
    %2323 = vmatpush1.msra.mxu0 0.0
    %2324 = vmatprep.subr.mxu0 0.0
    %2325 = vmatpush1.msra.mxu0 0.0
    %2326 = vmatprep.subr.mxu0 0.0
    %2327 = vmatpush1.msra.mxu0 0.0
    %2328 = vmatprep.subr.mxu0 0.0
    %2329 = vmatpush1.msra.mxu0 0.0
    %2330 = vmatprep.subr.mxu0 0.0
    %2331 = vmatpush1.msra.mxu0 0.0
    %2332 = vmatprep.subr.mxu0 0.0
    %2333 = vmatpush1.msra.mxu0 0.0
    %2334 = vmatprep.subr.mxu0 0.0
    %2335 = vmatpush1.msra.mxu0 0.0
    %2336 = vmatprep.subr.mxu0 0.0
    %2337 = vmatpush1.msra.mxu0 0.0
    %2338 = vmatprep.subr.mxu0 0.0
    %2339 = vmatpush1.msra.mxu0 0.0
    %2340 = vmatprep.subr.mxu0 0.0
    %2341 = vmatpush1.msra.mxu0 0.0
    %2342 = vmatprep.subr.mxu0 0.0
    %2343 = vmatpush1.msra.mxu0 0.0
    %2344 = vmatprep.subr.mxu0 0.0
    %2345 = vmatpush1.msra.mxu0 0.0
    %2346 = vmatprep.subr.mxu0 0.0
    %2347 = vmatpush1.msra.mxu0 0.0
    %2348 = vmatprep.subr.mxu0 0.0
    %2349 = vmatpush1.msra.mxu0 0.0
    %2350 = vmatprep.subr.mxu0 0.0
    %2351 = vmatpush1.msra.mxu0 0.0
    %2352 = vmatprep.subr.mxu0 0.0
    %2353 = vmatpush1.msra.mxu0 0.0
    %2354 = vmatprep.subr.mxu0 0.0
    %2355 = vmatpush1.msra.mxu0 0.0
    %2356 = vmatprep.subr.mxu0 0.0
    %2357 = vmatpush1.msra.mxu0 0.0
    %2358 = vmatprep.subr.mxu0 0.0
    %2359 = vmatpush1.msra.mxu0 0.0
    %2360 = vmatprep.subr.mxu0 0.0
    %2361 = vmatpush1.msra.mxu0 0.0
    %2362 = vmatprep.subr.mxu0 0.0
    %2363 = vmatpush1.msra.mxu0 0.0
    %2364 = vmatprep.subr.mxu0 0.0
    %2365 = vmatpush1.msra.mxu0 0.0
    %2366 = vmatprep.subr.mxu0 0.0
    %2367 = vmatpush1.msra.mxu0 0.0
    %2368 = vmatprep.subr.mxu0 0.0
    %2369 = vmatpush1.msra.mxu0 0.0
    %2370 = vmatprep.subr.mxu0 0.0
    %2371 = vmatpush1.msra.mxu0 0.0
    %2372 = vmatprep.subr.mxu0 0.0
    %2373 = vmatpush1.msra.mxu0 0.0
    %2374 = vmatprep.subr.mxu0 0.0
    %2375 = vmatpush1.msra.mxu0 0.0
    %2376 = vmatprep.subr.mxu0 0.0
    %2377 = vmatpush1.msra.mxu0 0.0
    %2378 = vmatprep.subr.mxu0 0.0
    %2379 = vmatpush1.msra.mxu0 0.0
    %2380 = vmatprep.subr.mxu0 0.0
    %2381 = vmatpush1.msra.mxu0 0.0
    %2382 = vmatprep.mubr.f32.mxu0 0.0
    %2383 = vmatmul.mubr.f32.gmra.mrb[0].mxu0 %v2313
    %v2384 = vpop.f32.mrb[0].mxu0
    %v2385 = vadd.f32 0.0, %v2384
    %v2386 = vpop.f32.mrb[0].mxu0
    %2387 = vmatprep.mubr.f32.mxu0 0.0
    %2388 = vmatmul.mubr.f32.gmra.mrb[0].mxu0 %v2316
    %v2389 = vpop.f32.mrb[0].mxu0
    %v2390 = vadd.f32 0.0, %v2389
    %v2391 = vpop.f32.mrb[0].mxu0
    %2392 = vdwg.mxu0
    %2395 = vrot.lane.b32.xlu0 %v1965, 8
    %v2396 = vpop.permute.xlu0 %2395
    %2397 = vrot.lane.b32.xlu0 %v1970, 8
    %v2398 = vpop.permute.xlu0 %2397
    %2403 = vrot.lane.b32.xlu0 %v2175, 16
    %v2404 = vpop.permute.xlu0 %2403
    %2405 = vrot.lane.b32.xlu0 %v2180, 16
    %v2406 = vpop.permute.xlu0 %2405
    %2411 = vrot.lane.b32.xlu0 %v2385, 24
    %v2412 = vpop.permute.xlu0 %2411
    %2413 = vrot.lane.b32.xlu0 %v2390, 24
    %v2414 = vpop.permute.xlu0 %2413
    %v2417 = vsel %vm367, %v1755, %v2396
    %v2418 = vsel %vm367, %v1760, %v2398
    %v2419 = vsel %vm455, %v2417, %v2404
    %v2420 = vsel %vm455, %v2418, %v2406
    %v2421 = vsel %vm1229, %v2419, %v2412
    %v2422 = vsel %vm1229, %v2420, %v2414
    %v2424 = vlaneseq
    %v2425 = vshrl.u32 %v2424, 7
    %v2426 = vsub.s32 0, %v2425
    %v2427 = vrot.slane %v1556, %v2426
    %v2430 = vsel %vm272, %v2421, 0
    %v2433 = vsel %vm272, %v2422, 0
    %2435 = vmatprep.subr.mxu0 0.0
    %2436 = vmatpush1.msra.mxu0 %v1552
    %2437 = vmatprep.subr.mxu0 0.0
    %2438 = vmatpush1.msra.mxu0 %v1553
    %2439 = vmatprep.subr.mxu0 0.0
    %2440 = vmatpush1.msra.mxu0 %v1554
    %2441 = vmatprep.subr.mxu0 0.0
    %2442 = vmatpush1.msra.mxu0 %v1555
    %2443 = vmatprep.subr.mxu0 0.0
    %2444 = vmatpush1.msra.mxu0 0.0
    %2445 = vmatprep.subr.mxu0 0.0
    %2446 = vmatpush1.msra.mxu0 0.0
    %2447 = vmatprep.subr.mxu0 0.0
    %2448 = vmatpush1.msra.mxu0 0.0
    %2449 = vmatprep.subr.mxu0 0.0
    %2450 = vmatpush1.msra.mxu0 0.0
    %2451 = vmatprep.subr.mxu0 0.0
    %2452 = vmatpush1.msra.mxu0 0.0
    %2453 = vmatprep.subr.mxu0 0.0
    %2454 = vmatpush1.msra.mxu0 0.0
    %2455 = vmatprep.subr.mxu0 0.0
    %2456 = vmatpush1.msra.mxu0 0.0
    %2457 = vmatprep.subr.mxu0 0.0
    %2458 = vmatpush1.msra.mxu0 0.0
    %2459 = vmatprep.subr.mxu0 0.0
    %2460 = vmatpush1.msra.mxu0 0.0
    %2461 = vmatprep.subr.mxu0 0.0
    %2462 = vmatpush1.msra.mxu0 0.0
    %2463 = vmatprep.subr.mxu0 0.0
    %2464 = vmatpush1.msra.mxu0 0.0
    %2465 = vmatprep.subr.mxu0 0.0
    %2466 = vmatpush1.msra.mxu0 0.0
    %2467 = vmatprep.subr.mxu0 0.0
    %2468 = vmatpush1.msra.mxu0 0.0
    %2469 = vmatprep.subr.mxu0 0.0
    %2470 = vmatpush1.msra.mxu0 0.0
    %2471 = vmatprep.subr.mxu0 0.0
    %2472 = vmatpush1.msra.mxu0 0.0
    %2473 = vmatprep.subr.mxu0 0.0
    %2474 = vmatpush1.msra.mxu0 0.0
    %2475 = vmatprep.subr.mxu0 0.0
    %2476 = vmatpush1.msra.mxu0 0.0
    %2477 = vmatprep.subr.mxu0 0.0
    %2478 = vmatpush1.msra.mxu0 0.0
    %2479 = vmatprep.subr.mxu0 0.0
    %2480 = vmatpush1.msra.mxu0 0.0
    %2481 = vmatprep.subr.mxu0 0.0
    %2482 = vmatpush1.msra.mxu0 0.0
    %2483 = vmatprep.subr.mxu0 0.0
    %2484 = vmatpush1.msra.mxu0 0.0
    %2485 = vmatprep.subr.mxu0 0.0
    %2486 = vmatpush1.msra.mxu0 0.0
    %2487 = vmatprep.subr.mxu0 0.0
    %2488 = vmatpush1.msra.mxu0 0.0
    %2489 = vmatprep.subr.mxu0 0.0
    %2490 = vmatpush1.msra.mxu0 0.0
    %2491 = vmatprep.subr.mxu0 0.0
    %2492 = vmatpush1.msra.mxu0 0.0
    %2493 = vmatprep.subr.mxu0 0.0
    %2494 = vmatpush1.msra.mxu0 0.0
    %2495 = vmatprep.subr.mxu0 0.0
    %2496 = vmatpush1.msra.mxu0 0.0
    %2497 = vmatprep.subr.mxu0 0.0
    %2498 = vmatpush1.msra.mxu0 0.0
    %2499 = vmatprep.mubr.f32.mxu0 0.0
    %2500 = vmatmul.mubr.f32.gmra.mrb[0].mxu0 %v2430
    %v2501 = vpop.f32.mrb[0].mxu0
    %v2502 = vadd.f32 %v2427, %v2501
    %v2503 = vpop.f32.mrb[0].mxu0
    %2504 = vmatprep.mubr.f32.mxu0 0.0
    %2505 = vmatmul.mubr.f32.gmra.mrb[0].mxu0 %v2433
    %v2506 = vpop.f32.mrb[0].mxu0
    %v2507 = vadd.f32 %v2427, %v2506
    %v2508 = vpop.f32.mrb[0].mxu0
    %2509 = vdwg.mxu0
    %v2510 = vadd.f32 %v1364, %v2502
    %v2511 = vadd.f32 %v1365, %v2507
    %v2512 = vld [vmem:[#allocation22] sm:$0x1]
    %v2513 = vld [vmem:[#allocation23] sm:$0x1]
    %v2514 = vsel %vm272, %v2510, 0.0
    %2515 = vadd.xlane.f32.xlu0 %v2514
    %v2516 = vpop.xlane.xlu0 %2515
    %v2517 = vsel %vm272, %v2511, 0.0
    %2518 = vadd.xlane.f32.xlu0 %v2517
    %v2519 = vpop.xlane.xlu0 %2518
    %v2520 = vmul.f32 %v2516, %v1329
    %v2521 = vmul.f32 %v2519, %v1329
    %v2522 = vsub.f32 %v2510, %v2520
    %v2523 = vsub.f32 %v2511, %v2521
    %v2524 = vmul.f32 %v2522, %v2522
    %v2525 = vmul.f32 %v2523, %v2523
    %v2526 = vsel %vm272, %v2524, 0.0
    %2527 = vadd.xlane.f32.xlu0 %v2526
    %v2528 = vpop.xlane.xlu0 %2527
    %v2529 = vsel %vm272, %v2525, 0.0
    %2530 = vadd.xlane.f32.xlu0 %v2529
    %v2531 = vpop.xlane.xlu0 %2530
    %v2532 = vmul.f32 %v2528, %v1329
    %v2533 = vmul.f32 %v2531, %v1329
    %v2534 = vadd.f32 %v2532, 1e-05
    %v2535 = vadd.f32 %v2533, 1e-05
    %v2536 = vrsqrt.pop %v2534
    %v2537 = vrsqrt.pop %v2535
    %v2538 = vmul.f32 %v2522, %v2536
    %v2539 = vmul.f32 %v2523, %v2537
    %v2541 = vlaneseq
    %v2542 = vshrl.u32 %v2541, 7
    %v2543 = vsub.s32 0, %v2542
    %v2544 = vrot.slane %v2512, %v2543
    %v2546 = vmul.f32 %v2538, %v2544
    %v2547 = vmul.f32 %v2539, %v2544
    %v2549 = vlaneseq
    %v2550 = vshrl.u32 %v2549, 7
    %v2551 = vsub.s32 0, %v2550
    %v2552 = vrot.slane %v2513, %v2551
    %v2554 = vadd.f32 %v2546, %v2552
    %v2555 = vadd.f32 %v2547, %v2552
    %v2556 = vld [vmem:[#allocation25] sm:$0xff]
    %v2557 = vld [vmem:[#allocation25 + $0x8] sm:$0xff]
    %v2558 = vld [vmem:[#allocation25 + $0x10] sm:$0xff]
    %v2559 = vld [vmem:[#allocation25 + $0x18] sm:$0xff]
    %v2560 = vld [vmem:[%s19] sm:$0x1]
    %v2562 = vlaneseq
    %v2563 = vshrl.u32 %v2562, 7
    %v2564 = vsub.s32 0, %v2563
    %v2565 = vrot.slane %v2560, %v2564
    %v2568 = vsel %vm272, %v2554, 0
    %v2571 = vsel %vm272, %v2555, 0
    %2573 = vmatprep.subr.mxu0 0.0
    %2574 = vmatpush1.msra.mxu0 %v2556
    %2575 = vmatprep.subr.mxu0 0.0
    %2576 = vmatpush1.msra.mxu0 %v2557
    %2577 = vmatprep.subr.mxu0 0.0
    %2578 = vmatpush1.msra.mxu0 %v2558
    %2579 = vmatprep.subr.mxu0 0.0
    %2580 = vmatpush1.msra.mxu0 %v2559
    %2581 = vmatprep.subr.mxu0 0.0
    %2582 = vmatpush1.msra.mxu0 0.0
    %2583 = vmatprep.subr.mxu0 0.0
    %2584 = vmatpush1.msra.mxu0 0.0
    %2585 = vmatprep.subr.mxu0 0.0
    %2586 = vmatpush1.msra.mxu0 0.0
    %2587 = vmatprep.subr.mxu0 0.0
    %2588 = vmatpush1.msra.mxu0 0.0
    %2589 = vmatprep.subr.mxu0 0.0
    %2590 = vmatpush1.msra.mxu0 0.0
    %2591 = vmatprep.subr.mxu0 0.0
    %2592 = vmatpush1.msra.mxu0 0.0
    %2593 = vmatprep.subr.mxu0 0.0
    %2594 = vmatpush1.msra.mxu0 0.0
    %2595 = vmatprep.subr.mxu0 0.0
    %2596 = vmatpush1.msra.mxu0 0.0
    %2597 = vmatprep.subr.mxu0 0.0
    %2598 = vmatpush1.msra.mxu0 0.0
    %2599 = vmatprep.subr.mxu0 0.0
    %2600 = vmatpush1.msra.mxu0 0.0
    %2601 = vmatprep.subr.mxu0 0.0
    %2602 = vmatpush1.msra.mxu0 0.0
    %2603 = vmatprep.subr.mxu0 0.0
    %2604 = vmatpush1.msra.mxu0 0.0
    %2605 = vmatprep.subr.mxu0 0.0
    %2606 = vmatpush1.msra.mxu0 0.0
    %2607 = vmatprep.subr.mxu0 0.0
    %2608 = vmatpush1.msra.mxu0 0.0
    %2609 = vmatprep.subr.mxu0 0.0
    %2610 = vmatpush1.msra.mxu0 0.0
    %2611 = vmatprep.subr.mxu0 0.0
    %2612 = vmatpush1.msra.mxu0 0.0
    %2613 = vmatprep.subr.mxu0 0.0
    %2614 = vmatpush1.msra.mxu0 0.0
    %2615 = vmatprep.subr.mxu0 0.0
    %2616 = vmatpush1.msra.mxu0 0.0
    %2617 = vmatprep.subr.mxu0 0.0
    %2618 = vmatpush1.msra.mxu0 0.0
    %2619 = vmatprep.subr.mxu0 0.0
    %2620 = vmatpush1.msra.mxu0 0.0
    %2621 = vmatprep.subr.mxu0 0.0
    %2622 = vmatpush1.msra.mxu0 0.0
    %2623 = vmatprep.subr.mxu0 0.0
    %2624 = vmatpush1.msra.mxu0 0.0
    %2625 = vmatprep.subr.mxu0 0.0
    %2626 = vmatpush1.msra.mxu0 0.0
    %2627 = vmatprep.subr.mxu0 0.0
    %2628 = vmatpush1.msra.mxu0 0.0
    %2629 = vmatprep.subr.mxu0 0.0
    %2630 = vmatpush1.msra.mxu0 0.0
    %2631 = vmatprep.subr.mxu0 0.0
    %2632 = vmatpush1.msra.mxu0 0.0
    %2633 = vmatprep.subr.mxu0 0.0
    %2634 = vmatpush1.msra.mxu0 0.0
    %2635 = vmatprep.subr.mxu0 0.0
    %2636 = vmatpush1.msra.mxu0 0.0
    %2637 = vmatprep.mubr.f32.mxu0 0.0
    %2638 = vmatmul.mubr.f32.gmra.mrb[0].mxu0 %v2568
    %v2639 = vpop.f32.mrb[0].mxu0
    %v2640 = vadd.f32 %v2565, %v2639
    %v2641 = vpop.f32.mrb[0].mxu0
    %2642 = vmatprep.mubr.f32.mxu0 0.0
    %2643 = vmatmul.mubr.f32.gmra.mrb[0].mxu0 %v2571
    %v2644 = vpop.f32.mrb[0].mxu0
    %v2645 = vadd.f32 %v2565, %v2644
    %v2646 = vpop.f32.mrb[0].mxu0
    %2647 = vdwg.mxu0
    %v2648 = vmax.f32 %v2640, 0.0
    %v2649 = vmax.f32 %v2645, 0.0
    %v2650 = vld [vmem:[%s20] sm:$0xff]
    %v2651 = vld [vmem:[%s20 + $0x8] sm:$0xff]
    %v2652 = vld [vmem:[%s20 + $0x10] sm:$0xff]
    %v2653 = vld [vmem:[%s20 + $0x18] sm:$0xff]
    %v2654 = vld [vmem:[%s20 + $0x20] sm:$0xff]
    %v2655 = vld [vmem:[%s20 + $0x28] sm:$0xff]
    %v2656 = vld [vmem:[%s20 + $0x30] sm:$0xff]
    %v2657 = vld [vmem:[%s20 + $0x38] sm:$0xff]
    %v2658 = vld [vmem:[%s21] sm:$0x1]
    %v2660 = vlaneseq
    %v2661 = vshrl.u32 %v2660, 7
    %v2662 = vsub.s32 0, %v2661
    %v2663 = vrot.slane %v2658, %v2662
    %vm2665 = vcmask 523264
    %v2667 = vsel %vm2665, %v2648, 0
    %v2670 = vsel %vm2665, %v2649, 0
    %2672 = vmatprep.subr.mxu0 0.0
    %2673 = vmatpush1.msra.mxu0 %v2650
    %2674 = vmatprep.subr.mxu0 0.0
    %2675 = vmatpush1.msra.mxu0 %v2651
    %2676 = vmatprep.subr.mxu0 0.0
    %2677 = vmatpush1.msra.mxu0 %v2652
    %2678 = vmatprep.subr.mxu0 0.0
    %2679 = vmatpush1.msra.mxu0 %v2653
    %2680 = vmatprep.subr.mxu0 0.0
    %2681 = vmatpush1.msra.mxu0 %v2654
    %2682 = vmatprep.subr.mxu0 0.0
    %2683 = vmatpush1.msra.mxu0 %v2655
    %2684 = vmatprep.subr.mxu0 0.0
    %2685 = vmatpush1.msra.mxu0 %v2656
    %2686 = vmatprep.subr.mxu0 0.0
    %2687 = vmatpush1.msra.mxu0 %v2657
    %2688 = vmatprep.subr.mxu0 0.0
    %2689 = vmatpush1.msra.mxu0 0.0
    %2690 = vmatprep.subr.mxu0 0.0
    %2691 = vmatpush1.msra.mxu0 0.0
    %2692 = vmatprep.subr.mxu0 0.0
    %2693 = vmatpush1.msra.mxu0 0.0
    %2694 = vmatprep.subr.mxu0 0.0
    %2695 = vmatpush1.msra.mxu0 0.0
    %2696 = vmatprep.subr.mxu0 0.0
    %2697 = vmatpush1.msra.mxu0 0.0
    %2698 = vmatprep.subr.mxu0 0.0
    %2699 = vmatpush1.msra.mxu0 0.0
    %2700 = vmatprep.subr.mxu0 0.0
    %2701 = vmatpush1.msra.mxu0 0.0
    %2702 = vmatprep.subr.mxu0 0.0
    %2703 = vmatpush1.msra.mxu0 0.0
    %2704 = vmatprep.subr.mxu0 0.0
    %2705 = vmatpush1.msra.mxu0 0.0
    %2706 = vmatprep.subr.mxu0 0.0
    %2707 = vmatpush1.msra.mxu0 0.0
    %2708 = vmatprep.subr.mxu0 0.0
    %2709 = vmatpush1.msra.mxu0 0.0
    %2710 = vmatprep.subr.mxu0 0.0
    %2711 = vmatpush1.msra.mxu0 0.0
    %2712 = vmatprep.subr.mxu0 0.0
    %2713 = vmatpush1.msra.mxu0 0.0
    %2714 = vmatprep.subr.mxu0 0.0
    %2715 = vmatpush1.msra.mxu0 0.0
    %2716 = vmatprep.subr.mxu0 0.0
    %2717 = vmatpush1.msra.mxu0 0.0
    %2718 = vmatprep.subr.mxu0 0.0
    %2719 = vmatpush1.msra.mxu0 0.0
    %2720 = vmatprep.subr.mxu0 0.0
    %2721 = vmatpush1.msra.mxu0 0.0
    %2722 = vmatprep.subr.mxu0 0.0
    %2723 = vmatpush1.msra.mxu0 0.0
    %2724 = vmatprep.subr.mxu0 0.0
    %2725 = vmatpush1.msra.mxu0 0.0
    %2726 = vmatprep.subr.mxu0 0.0
    %2727 = vmatpush1.msra.mxu0 0.0
    %2728 = vmatprep.subr.mxu0 0.0
    %2729 = vmatpush1.msra.mxu0 0.0
    %2730 = vmatprep.subr.mxu0 0.0
    %2731 = vmatpush1.msra.mxu0 0.0
    %2732 = vmatprep.subr.mxu0 0.0
    %2733 = vmatpush1.msra.mxu0 0.0
    %2734 = vmatprep.subr.mxu0 0.0
    %2735 = vmatpush1.msra.mxu0 0.0
    %2736 = vmatprep.mubr.f32.mxu0 0.0
    %2737 = vmatmul.mubr.f32.gmra.mrb[0].mxu0 %v2667
    %v2738 = vpop.f32.mrb[0].mxu0
    %v2739 = vadd.f32 %v2663, %v2738
    %v2740 = vpop.f32.mrb[0].mxu0
    %2741 = vmatprep.mubr.f32.mxu0 0.0
    %2742 = vmatmul.mubr.f32.gmra.mrb[0].mxu0 %v2670
    %v2743 = vpop.f32.mrb[0].mxu0
    %v2744 = vadd.f32 %v2663, %v2743
    %v2745 = vpop.f32.mrb[0].mxu0
    %2746 = vdwg.mxu0
    %2747 = vst.msk [vmem:[#allocation26] sm:$0xff] %vm272, %v2739
    %2748 = vst.msk [vmem:[#allocation26 + $0x8] sm:$0xff] %vm272, %v2744
    // Predicated region
    $region150: #{tpu_custom_call.1} parent=1 // pred_check
      _
    $region151: #{tpu_custom_call.1} parent=1 // pred_check_branch
      %2750 = sbr.rel (0) target = $region153
    $region152: #{tpu_custom_call.1} parent=1 // pred_region
      %s2752 = ssub.s32 256, 256
      %2753 = vsyncadd [#allocation4], %s2752
      %s2754 = sshll.u32 [#allocation26], 4
      %s2755 = int_to_ptr.vmem [resolvable:$true] %s2754
      %2760 = dma.vmem_to_hbm [thread:$0]  %s2755, 256, %s22, [#allocation4], 128, 128, 8
    $region153: #{tpu_custom_call.1} parent=1 // pred_fallthru
      _
    // Predicated region
    $region154: #{tpu_custom_call.1} parent=1 // pred_check
      _
    $region155: #{tpu_custom_call.1} parent=1 // pred_check_branch
      %2762 = sbr.rel (0) target = $region157
    $region156: #{tpu_custom_call.1} parent=1 // pred_region
      %2763 = dma.done [#allocation4], 256
    $region157: #{tpu_custom_call.1} parent=1 // pred_fallthru
      _
    %2764 = vsyncpa [#allocation3], 1
    %2765 = vsyncpa [#allocation6], 1
    %2766 = vsyncpa [#allocation9], 1
    %2767 = vsyncpa [#allocation12], 1
    %2768 = vsyncpa [#allocation15], 1
    %2769 = vsyncpa [#allocation18], 1
    %2770 = vsyncpa [#allocation21], 1
    %2771 = vsyncpa [#allocation24], 1
    %2772 = vsyncpa [#allocation4], 1

</llo_original>
